<compile_context>
chip_gen: v6e
topology: v6e:2x2x1
jax: 0.10.0
libtpu: 0.0.40
codegen_flags: <defaults>
</compile_context>

<pallas_src>
import math

import jax
import jax.numpy as jnp
from jax import lax
from jax.experimental import pallas as pl
from jax.experimental.pallas import tpu as pltpu

D_IN = [1603, 1024, 256, 32, 16, 4]
D_OUT = [1024, 256, 32, 16, 4, 1]
EPS = 1e-5

K1_PAD = 1664            # 1603 -> 13 * 128 : lane/K alignment for layer-1 matmul
TJ = 512                 # layer-1 output-feature tile (sweepable: 256/512/1024)
NJ = D_OUT[0] // TJ      # 2 grid steps


def _batchnorm(h):
    # BatchNorm1d, training-mode batch stats, gamma=1, beta=0, biased variance.
    # Single pass: var = E[h^2] - E[h]^2 (benign for post-ReLU O(1) activations).
    mean = jnp.mean(h, axis=0, keepdims=True)
    msq = jnp.mean(h * h, axis=0, keepdims=True)
    var = jnp.maximum(msq - mean * mean, 0.0)
    return (h - mean) * lax.rsqrt(var + EPS)


def hybrid_kernel(x_ref, w1_ref, b1_ref, w2_ref, b2_ref,
                  w3_ref, b3_ref, w4_ref, b4_ref,
                  w5_ref, b5_ref, w6_ref, b6_ref,
                  out_ref, xp_ref, acc_ref):
    j = pl.program_id(0)

    # ---- One-time in-kernel pad/cast of x into a resident VMEM scratch ----
    @pl.when(j == 0)
    def _():
        xp_ref[...] = jnp.zeros_like(xp_ref)
        xp_ref[:, :D_IN[0]] = x_ref[...]        # masked f32 store, tail stays 0

    # ---- Layer 1, output-feature tile j (BN is per-feature -> tile-local) ----
    xb = xp_ref[...].astype(jnp.bfloat16)       # tiny (n, 1664) cast
    h1 = jnp.dot(xb, w1_ref[...], preferred_element_type=jnp.float32)
    h1 = jnp.maximum(h1 + b1_ref[...], 0.0)
    h1 = _batchnorm(h1)

    # ---- Layer-2 partial product: acc (+)= h1_j @ W2[j*TJ:(j+1)*TJ, :] ----
    partial = jnp.dot(h1.astype(jnp.bfloat16), w2_ref[...],
                      preferred_element_type=jnp.float32)

    @pl.when(j == 0)
    def _():
        acc_ref[...] = partial

    @pl.when(j > 0)
    def _():
        acc_ref[...] += partial

    # ---- Finalize layers 2..6 once all K-tiles of layer 2 are accumulated ----
    @pl.when(j == pl.num_programs(0) - 1)
    def _():
        h = _batchnorm(jnp.maximum(acc_ref[...] + b2_ref[...], 0.0))
        for w_ref, b_ref in ((w3_ref, b3_ref), (w4_ref, b4_ref),
                             (w5_ref, b5_ref), (w6_ref, b6_ref)):
            h = jnp.dot(h, w_ref[...], preferred_element_type=jnp.float32)
            h = _batchnorm(jnp.maximum(h + b_ref[...], 0.0))
        out_ref[...] = h.astype(out_ref.dtype)


def init_params(key):
    """Deterministic init matching network.py: xavier_uniform weights, bias=0.01."""
    params = []
    for d_in, d_out in zip(D_IN, D_OUT):
        key, sub = jax.random.split(key)
        bound = math.sqrt(6.0 / (d_in + d_out))  # xavier_uniform (gain=1)
        w = jax.random.uniform(sub, (d_in, d_out), jnp.float32, -bound, bound)
        b = jnp.full((1, d_out), 0.01, jnp.float32)
        params.append((w, b))
    return params


def prepare_params(params):
    """Pad W1's K dim to 1664, store W1/W2 in bf16, and pre-pack W1 as
    (NJ, K1_PAD, TJ) so each grid step's W1 tile is a contiguous HBM block."""
    (w1, b1), (w2, b2) = params[0], params[1]
    w1p = jnp.zeros((K1_PAD, D_OUT[0]), jnp.float32).at[:D_IN[0]].set(w1)
    w1p = w1p.astype(jnp.bfloat16)
    # tile j holds columns [j*TJ, (j+1)*TJ) of the padded W1
    w1t = w1p.reshape(K1_PAD, NJ, TJ).transpose(1, 0, 2)    # (NJ, K1_PAD, TJ)
    prepped = [(w1t, b1), (w2.astype(jnp.bfloat16), b2)]
    prepped += [(w, b) for w, b in params[2:]]               # layers 3-6 stay f32
    return prepped


def _hybrid_forward(x, prepped):
    n = x.shape[0]
    (w1, b1), (w2, b2), (w3, b3), (w4, b4), (w5, b5), (w6, b6) = prepped

    def full(arr):  # whole-array block, constant index -> DMA'd once
        return pl.BlockSpec(arr.shape, lambda j: (0,) * arr.ndim)

    in_specs = [
        pl.BlockSpec((n, D_IN[0]), lambda j: (0, 0)),          # x f32 (resident)
        pl.BlockSpec((None, K1_PAD, TJ), lambda j: (j, 0, 0)),  # W1 tile (contiguous, pipelined)
        pl.BlockSpec((1, TJ), lambda j: (0, j)),               # b1 tile
        pl.BlockSpec((TJ, D_OUT[1]), lambda j: (j, 0)),        # W2 K-tile (contiguous, pipelined)
        full(b2), full(w3), full(b3), full(w4), full(b4),
        full(w5), full(b5), full(w6), full(b6),
    ]

    return pl.pallas_call(
        hybrid_kernel,
        out_shape=jax.ShapeDtypeStruct((n, 1), jnp.float32),
        grid_spec=pltpu.PrefetchScalarGridSpec(
            num_scalar_prefetch=0,
            grid=(NJ,),
            in_specs=in_specs,
            out_specs=pl.BlockSpec((n, 1), lambda j: (0, 0)),
            scratch_shapes=[pltpu.VMEM((n, K1_PAD), jnp.float32),   # padded x
                            pltpu.VMEM((n, D_OUT[1]), jnp.float32)],  # layer-2 acc
        ),
        compiler_params=pltpu.CompilerParams(
            dimension_semantics=("arbitrary",),        # cross-iteration accumulator
            vmem_limit_bytes=32 << 20,                 # fits v5e/v6e/v7x budgets
        ),
    )(x, w1, b1, w2, b2, w3, b3, w4, b4, w5, b5, w6, b6)


hybrid_forward = jax.jit(_hybrid_forward)


def hybrid_reference(x, prepped):
    """Plain-JAX reference using the exact same (bf16-quantized, padded) params
    and dtype flow as the kernel, for a tight correctness check."""
    n = x.shape[0]
    (w1t, b1) = prepped[0]
    w1 = jnp.transpose(w1t, (1, 0, 2)).reshape(K1_PAD, D_OUT[0])  # unpack tiles
    flat = [(w1, b1)] + list(prepped[1:])

    h = jnp.zeros((n, K1_PAD), jnp.bfloat16).at[:, :D_IN[0]].set(
        x.astype(jnp.bfloat16))
    for i, (w, b) in enumerate(flat):
        z = jnp.dot(h, w, preferred_element_type=jnp.float32) + b
        a = jnp.maximum(z, 0.0)
        mean = jnp.mean(a, axis=0, keepdims=True)
        var = jnp.maximum(jnp.mean(a * a, axis=0, keepdims=True) - mean * mean, 0.0)
        h = (a - mean) * lax.rsqrt(var + EPS)
        if i == 0:
            h = h.astype(jnp.bfloat16)   # layer-2 matmul runs bf16 x bf16 in the kernel
    return h


if __name__ == "__main__":
    key = jax.random.PRNGKey(0)
    key, xkey = jax.random.split(key)

    batch = 8  # BatchNorm needs batch > 1; multiple of 8 keeps sublanes dense
    x = jax.random.normal(xkey, (batch, D_IN[0]), jnp.float32)

    params = init_params(key)
    prepped = prepare_params(params)

    out = hybrid_forward(x, prepped)
    out = jax.block_until_ready(out)

    ref = hybrid_reference(x, prepped)
    assert out.shape == (batch, 1)
    # bf16 weight storage is matched in the reference, so the kernel/reference
    # comparison stays tight.
    assert jnp.allclose(out, ref, atol=2e-3, rtol=2e-3), (out, ref)

    print("KERNEL_OK")
</pallas_src>

<mosaic_0001>
module attributes {stable_mosaic.version = 11 : i64} {
  func.func @hybrid_kernel(%arg0: i32, %arg1: memref<8x1603xf32, #tpu.memory_space<vmem>>, %arg2: memref<1x1664x512xbf16, #tpu.memory_space<vmem>>, %arg3: memref<1x512xf32, #tpu.memory_space<vmem>>, %arg4: memref<512x256xbf16, #tpu.memory_space<vmem>>, %arg5: memref<1x256xf32, #tpu.memory_space<vmem>>, %arg6: memref<256x32xf32, #tpu.memory_space<vmem>>, %arg7: memref<1x32xf32, #tpu.memory_space<vmem>>, %arg8: memref<32x16xf32, #tpu.memory_space<vmem>>, %arg9: memref<1x16xf32, #tpu.memory_space<vmem>>, %arg10: memref<16x4xf32, #tpu.memory_space<vmem>>, %arg11: memref<1x4xf32, #tpu.memory_space<vmem>>, %arg12: memref<4x1xf32, #tpu.memory_space<vmem>>, %arg13: memref<1x1xf32, #tpu.memory_space<vmem>>, %arg14: memref<8x1xf32, #tpu.memory_space<vmem>>, %arg15: memref<8x1664xf32, #tpu.memory_space<vmem>>, %arg16: memref<8x256xf32, #tpu.memory_space<vmem>>) attributes {dimension_semantics = [#tpu.dimension_semantics<arbitrary>], iteration_bounds = array<i64: 2>, scalar_prefetch = 0 : i64, scratch_operands = 2 : i64, tpu.core_type = #tpu.core_type<tc>, window_params = [{pipeline_mode = #tpu.pipeline_mode<synchronous>, transform_indices = @transform_0, window_bounds = array<i64: 8, 1603>}, {transform_indices = @transform_1, window_bounds = array<i64: 1, 1664, 512>}, {transform_indices = @transform_2, window_bounds = array<i64: 1, 512>}, {transform_indices = @transform_3, window_bounds = array<i64: 512, 256>}, {pipeline_mode = #tpu.pipeline_mode<synchronous>, transform_indices = @transform_4, window_bounds = array<i64: 1, 256>}, {pipeline_mode = #tpu.pipeline_mode<synchronous>, transform_indices = @transform_5, window_bounds = array<i64: 256, 32>}, {pipeline_mode = #tpu.pipeline_mode<synchronous>, transform_indices = @transform_6, window_bounds = array<i64: 1, 32>}, {pipeline_mode = #tpu.pipeline_mode<synchronous>, transform_indices = @transform_7, window_bounds = array<i64: 32, 16>}, {pipeline_mode = #tpu.pipeline_mode<synchronous>, transform_indices = @transform_8, window_bounds = array<i64: 1, 16>}, {pipeline_mode = #tpu.pipeline_mode<synchronous>, transform_indices = @transform_9, window_bounds = array<i64: 16, 4>}, {pipeline_mode = #tpu.pipeline_mode<synchronous>, transform_indices = @transform_10, window_bounds = array<i64: 1, 4>}, {pipeline_mode = #tpu.pipeline_mode<synchronous>, transform_indices = @transform_11, window_bounds = array<i64: 4, 1>}, {pipeline_mode = #tpu.pipeline_mode<synchronous>, transform_indices = @transform_12, window_bounds = array<i64: 1, 1>}, {pipeline_mode = #tpu.pipeline_mode<synchronous>, transform_indices = @transform_13, window_bounds = array<i64: 8, 1>}]} {
    %c0_i32 = arith.constant 0 : i32
    %0 = arith.cmpi eq, %arg0, %c0_i32 : i32
    %1 = arith.extui %0 : i1 to i32
    %c0_i32_0 = arith.constant 0 : i32
    %2 = arith.cmpi ne, %1, %c0_i32_0 : i32
    scf.if %2 {
      %cst_22 = arith.constant 0.000000e+00 : f32
      %45 = vector.broadcast %cst_22 : f32 to vector<8x1664xf32>
      %c0_23 = arith.constant 0 : index
      %c0_24 = arith.constant 0 : index
      %46 = vector.load %arg15[%c0_23, %c0_24] : memref<8x1664xf32, #tpu.memory_space<vmem>>, vector<8x1664xf32>
      tpu.vector_store %arg15[%c0_23, %c0_24], %45 {strides = array<i32>} : memref<8x1664xf32, #tpu.memory_space<vmem>>, vector<8x1664xf32>,
      %c0_25 = arith.constant 0 : index
      %c0_26 = arith.constant 0 : index
      %47 = vector.load %arg1[%c0_25, %c0_26] : memref<8x1603xf32, #tpu.memory_space<vmem>>, vector<8x1603xf32>
      %c0_27 = arith.constant 0 : index
      %c0_28 = arith.constant 0 : index
      %48 = vector.load %arg15[%c0_27, %c0_28] : memref<8x1664xf32, #tpu.memory_space<vmem>>, vector<8x1603xf32>
      tpu.vector_store %arg15[%c0_27, %c0_28], %47 {strides = array<i32>} : memref<8x1664xf32, #tpu.memory_space<vmem>>, vector<8x1603xf32>,
    } else {
    }
    %c0 = arith.constant 0 : index
    %c0_1 = arith.constant 0 : index
    %3 = vector.load %arg15[%c0, %c0_1] : memref<8x1664xf32, #tpu.memory_space<vmem>>, vector<8x1664xf32>
    %4 = arith.truncf %3 : vector<8x1664xf32> to vector<8x1664xbf16>
    %c0_2 = arith.constant 0 : index
    %c0_3 = arith.constant 0 : index
    %c0_4 = arith.constant 0 : index
    %5 = vector.load %arg2[%c0_2, %c0_3, %c0_4] : memref<1x1664x512xbf16, #tpu.memory_space<vmem>>, vector<1x1664x512xbf16>
    %6 = vector.shape_cast %5 : vector<1x1664x512xbf16> to vector<1664x512xbf16>
    %cst = arith.constant dense<0.000000e+00> : vector<8x512xf32>
    %7 = tpu.matmul %4, %6, %cst {dimension_numbers = #tpu.dot_dimension_numbers<[1], [0], [0], [1], [0, 0, 1, 1], [], []>} : vector<8x1664xbf16>, vector<1664x512xbf16>, vector<8x512xf32> -> vector<8x512xf32>
    %c0_5 = arith.constant 0 : index
    %c0_6 = arith.constant 0 : index
    %8 = vector.load %arg3[%c0_5, %c0_6] : memref<1x512xf32, #tpu.memory_space<vmem>>, vector<1x512xf32>
    %9 = vector.broadcast %8 : vector<1x512xf32> to vector<8x512xf32>
    %10 = arith.addf %7, %9 : vector<8x512xf32>
    %cst_7 = arith.constant 0.000000e+00 : f32
    %11 = vector.broadcast %cst_7 : f32 to vector<8x512xf32>
    %12 = arith.maximumf %10, %11 : vector<8x512xf32>
    %cst_8 = arith.constant dense<0.000000e+00> : vector<512xf32>
    %13 = vector.multi_reduction <add>, %12, %cst_8 [0] : vector<8x512xf32> to vector<512xf32>
    %14 = vector.shape_cast %13 : vector<512xf32> to vector<1x512xf32>
    %cst_9 = arith.constant 8.000000e+00 : f32
    %15 = vector.broadcast %cst_9 : f32 to vector<1x512xf32>
    %16 = arith.divf %14, %15 : vector<1x512xf32>
    %17 = arith.mulf %12, %12 : vector<8x512xf32>
    %cst_10 = arith.constant dense<0.000000e+00> : vector<512xf32>
    %18 = vector.multi_reduction <add>, %17, %cst_10 [0] : vector<8x512xf32> to vector<512xf32>
    %19 = vector.shape_cast %18 : vector<512xf32> to vector<1x512xf32>
    %cst_11 = arith.constant 8.000000e+00 : f32
    %20 = vector.broadcast %cst_11 : f32 to vector<1x512xf32>
    %21 = arith.divf %19, %20 : vector<1x512xf32>
    %22 = arith.mulf %16, %16 : vector<1x512xf32>
    %23 = arith.subf %21, %22 : vector<1x512xf32>
    %cst_12 = arith.constant 0.000000e+00 : f32
    %24 = vector.broadcast %cst_12 : f32 to vector<1x512xf32>
    %25 = arith.maximumf %23, %24 : vector<1x512xf32>
    %26 = vector.broadcast %16 : vector<1x512xf32> to vector<8x512xf32>
    %27 = arith.subf %12, %26 : vector<8x512xf32>
    %cst_13 = arith.constant 9.99999974E-6 : f32
    %28 = vector.broadcast %cst_13 : f32 to vector<1x512xf32>
    %29 = arith.addf %25, %28 : vector<1x512xf32>
    %30 = math.rsqrt %29 : vector<1x512xf32>
    %31 = vector.broadcast %30 : vector<1x512xf32> to vector<8x512xf32>
    %32 = arith.mulf %27, %31 : vector<8x512xf32>
    %33 = arith.truncf %32 : vector<8x512xf32> to vector<8x512xbf16>
    %c0_14 = arith.constant 0 : index
    %c0_15 = arith.constant 0 : index
    %34 = vector.load %arg4[%c0_14, %c0_15] : memref<512x256xbf16, #tpu.memory_space<vmem>>, vector<512x256xbf16>
    %cst_16 = arith.constant dense<0.000000e+00> : vector<8x256xf32>
    %35 = tpu.matmul %33, %34, %cst_16 {dimension_numbers = #tpu.dot_dimension_numbers<[1], [0], [0], [1], [0, 0, 1, 1], [], []>} : vector<8x512xbf16>, vector<512x256xbf16>, vector<8x256xf32> -> vector<8x256xf32>
    %c0_i32_17 = arith.constant 0 : i32
    %36 = arith.cmpi eq, %arg0, %c0_i32_17 : i32
    %37 = arith.extui %36 : i1 to i32
    %c0_i32_18 = arith.constant 0 : i32
    %38 = arith.cmpi ne, %37, %c0_i32_18 : i32
    scf.if %38 {
      %c0_22 = arith.constant 0 : index
      %c0_23 = arith.constant 0 : index
      %45 = vector.load %arg16[%c0_22, %c0_23] : memref<8x256xf32, #tpu.memory_space<vmem>>, vector<8x256xf32>
      tpu.vector_store %arg16[%c0_22, %c0_23], %35 {strides = array<i32>} : memref<8x256xf32, #tpu.memory_space<vmem>>, vector<8x256xf32>,
    } else {
    }
    %c0_i32_19 = arith.constant 0 : i32
    %39 = arith.cmpi sgt, %arg0, %c0_i32_19 : i32
    %40 = arith.extui %39 : i1 to i32
    %c0_i32_20 = arith.constant 0 : i32
    %41 = arith.cmpi ne, %40, %c0_i32_20 : i32
    scf.if %41 {
      %c0_22 = arith.constant 0 : index
      %c0_23 = arith.constant 0 : index
      %45 = vector.load %arg16[%c0_22, %c0_23] : memref<8x256xf32, #tpu.memory_space<vmem>>, vector<8x256xf32>
      %46 = arith.addf %45, %35 : vector<8x256xf32>
      %c0_24 = arith.constant 0 : index
      %c0_25 = arith.constant 0 : index
      %47 = vector.load %arg16[%c0_24, %c0_25] : memref<8x256xf32, #tpu.memory_space<vmem>>, vector<8x256xf32>
      tpu.vector_store %arg16[%c0_24, %c0_25], %46 {strides = array<i32>} : memref<8x256xf32, #tpu.memory_space<vmem>>, vector<8x256xf32>,
    } else {
    }
    %c1_i32 = arith.constant 1 : i32
    %42 = arith.cmpi eq, %arg0, %c1_i32 : i32
    %43 = arith.extui %42 : i1 to i32
    %c0_i32_21 = arith.constant 0 : i32
    %44 = arith.cmpi ne, %43, %c0_i32_21 : i32
    scf.if %44 {
      %c0_22 = arith.constant 0 : index
      %c0_23 = arith.constant 0 : index
      %45 = vector.load %arg16[%c0_22, %c0_23] : memref<8x256xf32, #tpu.memory_space<vmem>>, vector<8x256xf32>
      %c0_24 = arith.constant 0 : index
      %c0_25 = arith.constant 0 : index
      %46 = vector.load %arg5[%c0_24, %c0_25] : memref<1x256xf32, #tpu.memory_space<vmem>>, vector<1x256xf32>
      %47 = vector.broadcast %46 : vector<1x256xf32> to vector<8x256xf32>
      %48 = arith.addf %45, %47 : vector<8x256xf32>
      %cst_26 = arith.constant 0.000000e+00 : f32
      %49 = vector.broadcast %cst_26 : f32 to vector<8x256xf32>
      %50 = arith.maximumf %48, %49 : vector<8x256xf32>
      %cst_27 = arith.constant dense<0.000000e+00> : vector<256xf32>
      %51 = vector.multi_reduction <add>, %50, %cst_27 [0] : vector<8x256xf32> to vector<256xf32>
      %52 = vector.shape_cast %51 : vector<256xf32> to vector<1x256xf32>
      %cst_28 = arith.constant 8.000000e+00 : f32
      %53 = vector.broadcast %cst_28 : f32 to vector<1x256xf32>
      %54 = arith.divf %52, %53 : vector<1x256xf32>
      %55 = arith.mulf %50, %50 : vector<8x256xf32>
      %cst_29 = arith.constant dense<0.000000e+00> : vector<256xf32>
      %56 = vector.multi_reduction <add>, %55, %cst_29 [0] : vector<8x256xf32> to vector<256xf32>
      %57 = vector.shape_cast %56 : vector<256xf32> to vector<1x256xf32>
      %cst_30 = arith.constant 8.000000e+00 : f32
      %58 = vector.broadcast %cst_30 : f32 to vector<1x256xf32>
      %59 = arith.divf %57, %58 : vector<1x256xf32>
      %60 = arith.mulf %54, %54 : vector<1x256xf32>
      %61 = arith.subf %59, %60 : vector<1x256xf32>
      %cst_31 = arith.constant 0.000000e+00 : f32
      %62 = vector.broadcast %cst_31 : f32 to vector<1x256xf32>
      %63 = arith.maximumf %61, %62 : vector<1x256xf32>
      %64 = vector.broadcast %54 : vector<1x256xf32> to vector<8x256xf32>
      %65 = arith.subf %50, %64 : vector<8x256xf32>
      %cst_32 = arith.constant 9.99999974E-6 : f32
      %66 = vector.broadcast %cst_32 : f32 to vector<1x256xf32>
      %67 = arith.addf %63, %66 : vector<1x256xf32>
      %68 = math.rsqrt %67 : vector<1x256xf32>
      %69 = vector.broadcast %68 : vector<1x256xf32> to vector<8x256xf32>
      %70 = arith.mulf %65, %69 : vector<8x256xf32>
      %c0_33 = arith.constant 0 : index
      %c0_34 = arith.constant 0 : index
      %71 = vector.load %arg6[%c0_33, %c0_34] : memref<256x32xf32, #tpu.memory_space<vmem>>, vector<256x32xf32>
      %cst_35 = arith.constant dense<0.000000e+00> : vector<8x32xf32>
      %72 = tpu.matmul %70, %71, %cst_35 {dimension_numbers = #tpu.dot_dimension_numbers<[1], [0], [0], [1], [0, 0, 1, 1], [], []>} : vector<8x256xf32>, vector<256x32xf32>, vector<8x32xf32> -> vector<8x32xf32>
      %c0_36 = arith.constant 0 : index
      %c0_37 = arith.constant 0 : index
      %73 = vector.load %arg7[%c0_36, %c0_37] : memref<1x32xf32, #tpu.memory_space<vmem>>, vector<1x32xf32>
      %74 = vector.broadcast %73 : vector<1x32xf32> to vector<8x32xf32>
      %75 = arith.addf %72, %74 : vector<8x32xf32>
      %cst_38 = arith.constant 0.000000e+00 : f32
      %76 = vector.broadcast %cst_38 : f32 to vector<8x32xf32>
      %77 = arith.maximumf %75, %76 : vector<8x32xf32>
      %cst_39 = arith.constant dense<0.000000e+00> : vector<32xf32>
      %78 = vector.multi_reduction <add>, %77, %cst_39 [0] : vector<8x32xf32> to vector<32xf32>
      %79 = vector.shape_cast %78 : vector<32xf32> to vector<1x32xf32>
      %cst_40 = arith.constant 8.000000e+00 : f32
      %80 = vector.broadcast %cst_40 : f32 to vector<1x32xf32>
      %81 = arith.divf %79, %80 : vector<1x32xf32>
      %82 = arith.mulf %77, %77 : vector<8x32xf32>
      %cst_41 = arith.constant dense<0.000000e+00> : vector<32xf32>
      %83 = vector.multi_reduction <add>, %82, %cst_41 [0] : vector<8x32xf32> to vector<32xf32>
      %84 = vector.shape_cast %83 : vector<32xf32> to vector<1x32xf32>
      %cst_42 = arith.constant 8.000000e+00 : f32
      %85 = vector.broadcast %cst_42 : f32 to vector<1x32xf32>
      %86 = arith.divf %84, %85 : vector<1x32xf32>
      %87 = arith.mulf %81, %81 : vector<1x32xf32>
      %88 = arith.subf %86, %87 : vector<1x32xf32>
      %cst_43 = arith.constant 0.000000e+00 : f32
      %89 = vector.broadcast %cst_43 : f32 to vector<1x32xf32>
      %90 = arith.maximumf %88, %89 : vector<1x32xf32>
      %91 = vector.broadcast %81 : vector<1x32xf32> to vector<8x32xf32>
      %92 = arith.subf %77, %91 : vector<8x32xf32>
      %cst_44 = arith.constant 9.99999974E-6 : f32
      %93 = vector.broadcast %cst_44 : f32 to vector<1x32xf32>
      %94 = arith.addf %90, %93 : vector<1x32xf32>
      %95 = math.rsqrt %94 : vector<1x32xf32>
      %96 = vector.broadcast %95 : vector<1x32xf32> to vector<8x32xf32>
      %97 = arith.mulf %92, %96 : vector<8x32xf32>
      %c0_45 = arith.constant 0 : index
      %c0_46 = arith.constant 0 : index
      %98 = vector.load %arg8[%c0_45, %c0_46] : memref<32x16xf32, #tpu.memory_space<vmem>>, vector<32x16xf32>
      %cst_47 = arith.constant dense<0.000000e+00> : vector<8x16xf32>
      %99 = tpu.matmul %97, %98, %cst_47 {dimension_numbers = #tpu.dot_dimension_numbers<[1], [0], [0], [1], [0, 0, 1, 1], [], []>} : vector<8x32xf32>, vector<32x16xf32>, vector<8x16xf32> -> vector<8x16xf32>
      %c0_48 = arith.constant 0 : index
      %c0_49 = arith.constant 0 : index
      %100 = vector.load %arg9[%c0_48, %c0_49] : memref<1x16xf32, #tpu.memory_space<vmem>>, vector<1x16xf32>
      %101 = vector.broadcast %100 : vector<1x16xf32> to vector<8x16xf32>
      %102 = arith.addf %99, %101 : vector<8x16xf32>
      %cst_50 = arith.constant 0.000000e+00 : f32
      %103 = vector.broadcast %cst_50 : f32 to vector<8x16xf32>
      %104 = arith.maximumf %102, %103 : vector<8x16xf32>
      %cst_51 = arith.constant dense<0.000000e+00> : vector<16xf32>
      %105 = vector.multi_reduction <add>, %104, %cst_51 [0] : vector<8x16xf32> to vector<16xf32>
      %106 = vector.shape_cast %105 : vector<16xf32> to vector<1x16xf32>
      %cst_52 = arith.constant 8.000000e+00 : f32
      %107 = vector.broadcast %cst_52 : f32 to vector<1x16xf32>
      %108 = arith.divf %106, %107 : vector<1x16xf32>
      %109 = arith.mulf %104, %104 : vector<8x16xf32>
      %cst_53 = arith.constant dense<0.000000e+00> : vector<16xf32>
      %110 = vector.multi_reduction <add>, %109, %cst_53 [0] : vector<8x16xf32> to vector<16xf32>
      %111 = vector.shape_cast %110 : vector<16xf32> to vector<1x16xf32>
      %cst_54 = arith.constant 8.000000e+00 : f32
      %112 = vector.broadcast %cst_54 : f32 to vector<1x16xf32>
      %113 = arith.divf %111, %112 : vector<1x16xf32>
      %114 = arith.mulf %108, %108 : vector<1x16xf32>
      %115 = arith.subf %113, %114 : vector<1x16xf32>
      %cst_55 = arith.constant 0.000000e+00 : f32
      %116 = vector.broadcast %cst_55 : f32 to vector<1x16xf32>
      %117 = arith.maximumf %115, %116 : vector<1x16xf32>
      %118 = vector.broadcast %108 : vector<1x16xf32> to vector<8x16xf32>
      %119 = arith.subf %104, %118 : vector<8x16xf32>
      %cst_56 = arith.constant 9.99999974E-6 : f32
      %120 = vector.broadcast %cst_56 : f32 to vector<1x16xf32>
      %121 = arith.addf %117, %120 : vector<1x16xf32>
      %122 = math.rsqrt %121 : vector<1x16xf32>
      %123 = vector.broadcast %122 : vector<1x16xf32> to vector<8x16xf32>
      %124 = arith.mulf %119, %123 : vector<8x16xf32>
      %c0_57 = arith.constant 0 : index
      %c0_58 = arith.constant 0 : index
      %125 = vector.load %arg10[%c0_57, %c0_58] : memref<16x4xf32, #tpu.memory_space<vmem>>, vector<16x4xf32>
      %cst_59 = arith.constant dense<0.000000e+00> : vector<8x4xf32>
      %126 = tpu.matmul %124, %125, %cst_59 {dimension_numbers = #tpu.dot_dimension_numbers<[1], [0], [0], [1], [0, 0, 1, 1], [], []>} : vector<8x16xf32>, vector<16x4xf32>, vector<8x4xf32> -> vector<8x4xf32>
      %c0_60 = arith.constant 0 : index
      %c0_61 = arith.constant 0 : index
      %127 = vector.load %arg11[%c0_60, %c0_61] : memref<1x4xf32, #tpu.memory_space<vmem>>, vector<1x4xf32>
      %128 = vector.broadcast %127 : vector<1x4xf32> to vector<8x4xf32>
      %129 = arith.addf %126, %128 : vector<8x4xf32>
      %cst_62 = arith.constant 0.000000e+00 : f32
      %130 = vector.broadcast %cst_62 : f32 to vector<8x4xf32>
      %131 = arith.maximumf %129, %130 : vector<8x4xf32>
      %cst_63 = arith.constant dense<0.000000e+00> : vector<4xf32>
      %132 = vector.multi_reduction <add>, %131, %cst_63 [0] : vector<8x4xf32> to vector<4xf32>
      %133 = vector.shape_cast %132 : vector<4xf32> to vector<1x4xf32>
      %cst_64 = arith.constant 8.000000e+00 : f32
      %134 = vector.broadcast %cst_64 : f32 to vector<1x4xf32>
      %135 = arith.divf %133, %134 : vector<1x4xf32>
      %136 = arith.mulf %131, %131 : vector<8x4xf32>
      %cst_65 = arith.constant dense<0.000000e+00> : vector<4xf32>
      %137 = vector.multi_reduction <add>, %136, %cst_65 [0] : vector<8x4xf32> to vector<4xf32>
      %138 = vector.shape_cast %137 : vector<4xf32> to vector<1x4xf32>
      %cst_66 = arith.constant 8.000000e+00 : f32
      %139 = vector.broadcast %cst_66 : f32 to vector<1x4xf32>
      %140 = arith.divf %138, %139 : vector<1x4xf32>
      %141 = arith.mulf %135, %135 : vector<1x4xf32>
      %142 = arith.subf %140, %141 : vector<1x4xf32>
      %cst_67 = arith.constant 0.000000e+00 : f32
      %143 = vector.broadcast %cst_67 : f32 to vector<1x4xf32>
      %144 = arith.maximumf %142, %143 : vector<1x4xf32>
      %145 = vector.broadcast %135 : vector<1x4xf32> to vector<8x4xf32>
      %146 = arith.subf %131, %145 : vector<8x4xf32>
      %cst_68 = arith.constant 9.99999974E-6 : f32
      %147 = vector.broadcast %cst_68 : f32 to vector<1x4xf32>
      %148 = arith.addf %144, %147 : vector<1x4xf32>
      %149 = math.rsqrt %148 : vector<1x4xf32>
      %150 = vector.broadcast %149 : vector<1x4xf32> to vector<8x4xf32>
      %151 = arith.mulf %146, %150 : vector<8x4xf32>
      %c0_69 = arith.constant 0 : index
      %c0_70 = arith.constant 0 : index
      %152 = vector.load %arg12[%c0_69, %c0_70] : memref<4x1xf32, #tpu.memory_space<vmem>>, vector<4x1xf32>
      %cst_71 = arith.constant dense<0.000000e+00> : vector<8x1xf32>
      %153 = tpu.matmul %151, %152, %cst_71 {dimension_numbers = #tpu.dot_dimension_numbers<[1], [0], [0], [1], [0, 0, 1, 1], [], []>} : vector<8x4xf32>, vector<4x1xf32>, vector<8x1xf32> -> vector<8x1xf32>
      %c0_72 = arith.constant 0 : index
      %c0_73 = arith.constant 0 : index
      %154 = vector.load %arg13[%c0_72, %c0_73] : memref<1x1xf32, #tpu.memory_space<vmem>>, vector<1x1xf32>
      %155 = vector.broadcast %154 : vector<1x1xf32> to vector<8x1xf32>
      %156 = arith.addf %153, %155 : vector<8x1xf32>
      %cst_74 = arith.constant 0.000000e+00 : f32
      %157 = vector.broadcast %cst_74 : f32 to vector<8x1xf32>
      %158 = arith.maximumf %156, %157 : vector<8x1xf32>
      %cst_75 = arith.constant dense<0.000000e+00> : vector<1xf32>
      %159 = vector.multi_reduction <add>, %158, %cst_75 [0] : vector<8x1xf32> to vector<1xf32>
      %160 = vector.shape_cast %159 : vector<1xf32> to vector<1x1xf32>
      %cst_76 = arith.constant 8.000000e+00 : f32
      %161 = vector.broadcast %cst_76 : f32 to vector<1x1xf32>
      %162 = arith.divf %160, %161 : vector<1x1xf32>
      %163 = arith.mulf %158, %158 : vector<8x1xf32>
      %cst_77 = arith.constant dense<0.000000e+00> : vector<1xf32>
      %164 = vector.multi_reduction <add>, %163, %cst_77 [0] : vector<8x1xf32> to vector<1xf32>
      %165 = vector.shape_cast %164 : vector<1xf32> to vector<1x1xf32>
      %cst_78 = arith.constant 8.000000e+00 : f32
      %166 = vector.broadcast %cst_78 : f32 to vector<1x1xf32>
      %167 = arith.divf %165, %166 : vector<1x1xf32>
      %168 = arith.mulf %162, %162 : vector<1x1xf32>
      %169 = arith.subf %167, %168 : vector<1x1xf32>
      %cst_79 = arith.constant 0.000000e+00 : f32
      %170 = vector.broadcast %cst_79 : f32 to vector<1x1xf32>
      %171 = arith.maximumf %169, %170 : vector<1x1xf32>
      %172 = vector.broadcast %162 : vector<1x1xf32> to vector<8x1xf32>
      %173 = arith.subf %158, %172 : vector<8x1xf32>
      %cst_80 = arith.constant 9.99999974E-6 : f32
      %174 = vector.broadcast %cst_80 : f32 to vector<1x1xf32>
      %175 = arith.addf %171, %174 : vector<1x1xf32>
      %176 = math.rsqrt %175 : vector<1x1xf32>
      %177 = vector.broadcast %176 : vector<1x1xf32> to vector<8x1xf32>
      %178 = arith.mulf %173, %177 : vector<8x1xf32>
      %c0_81 = arith.constant 0 : index
      %c0_82 = arith.constant 0 : index
      %179 = vector.load %arg14[%c0_81, %c0_82] : memref<8x1xf32, #tpu.memory_space<vmem>>, vector<8x1xf32>
      tpu.vector_store %arg14[%c0_81, %c0_82], %178 {strides = array<i32>} : memref<8x1xf32, #tpu.memory_space<vmem>>, vector<8x1xf32>,
    } else {
    }
    return
  }
  func.func @transform_0(%arg0: i32) -> (i32, i32) {
    %c0_i32 = arith.constant 0 : i32
    %c0_i32_0 = arith.constant 0 : i32
    %c0_i32_1 = arith.constant 0 : i32
    return %c0_i32, %c0_i32_0 : i32, i32
  }
  func.func @transform_1(%arg0: i32) -> (i32, i32, i32) {
    %c0_i32 = arith.constant 0 : i32
    %c0_i32_0 = arith.constant 0 : i32
    %c0_i32_1 = arith.constant 0 : i32
    return %arg0, %c0_i32, %c0_i32_0 : i32, i32, i32
  }
  func.func @transform_2(%arg0: i32) -> (i32, i32) {
    %c0_i32 = arith.constant 0 : i32
    %c0_i32_0 = arith.constant 0 : i32
    return %c0_i32, %arg0 : i32, i32
  }
  func.func @transform_3(%arg0: i32) -> (i32, i32) {
    %c0_i32 = arith.constant 0 : i32
    %c0_i32_0 = arith.constant 0 : i32
    return %arg0, %c0_i32 : i32, i32
  }
  func.func @transform_4(%arg0: i32) -> (i32, i32) {
    %c0_i32 = arith.constant 0 : i32
    %c0_i32_0 = arith.constant 0 : i32
    %c0_i32_1 = arith.constant 0 : i32
    return %c0_i32, %c0_i32_0 : i32, i32
  }
  func.func @transform_5(%arg0: i32) -> (i32, i32) {
    %c0_i32 = arith.constant 0 : i32
    %c0_i32_0 = arith.constant 0 : i32
    %c0_i32_1 = arith.constant 0 : i32
    return %c0_i32, %c0_i32_0 : i32, i32
  }
  func.func @transform_6(%arg0: i32) -> (i32, i32) {
    %c0_i32 = arith.constant 0 : i32
    %c0_i32_0 = arith.constant 0 : i32
    %c0_i32_1 = arith.constant 0 : i32
    return %c0_i32, %c0_i32_0 : i32, i32
  }
  func.func @transform_7(%arg0: i32) -> (i32, i32) {
    %c0_i32 = arith.constant 0 : i32
    %c0_i32_0 = arith.constant 0 : i32
    %c0_i32_1 = arith.constant 0 : i32
    return %c0_i32, %c0_i32_0 : i32, i32
  }
  func.func @transform_8(%arg0: i32) -> (i32, i32) {
    %c0_i32 = arith.constant 0 : i32
    %c0_i32_0 = arith.constant 0 : i32
    %c0_i32_1 = arith.constant 0 : i32
    return %c0_i32, %c0_i32_0 : i32, i32
  }
  func.func @transform_9(%arg0: i32) -> (i32, i32) {
    %c0_i32 = arith.constant 0 : i32
    %c0_i32_0 = arith.constant 0 : i32
    %c0_i32_1 = arith.constant 0 : i32
    return %c0_i32, %c0_i32_0 : i32, i32
  }
  func.func @transform_10(%arg0: i32) -> (i32, i32) {
    %c0_i32 = arith.constant 0 : i32
    %c0_i32_0 = arith.constant 0 : i32
    %c0_i32_1 = arith.constant 0 : i32
    return %c0_i32, %c0_i32_0 : i32, i32
  }
  func.func @transform_11(%arg0: i32) -> (i32, i32) {
    %c0_i32 = arith.constant 0 : i32
    %c0_i32_0 = arith.constant 0 : i32
    %c0_i32_1 = arith.constant 0 : i32
    return %c0_i32, %c0_i32_0 : i32, i32
  }
  func.func @transform_12(%arg0: i32) -> (i32, i32) {
    %c0_i32 = arith.constant 0 : i32
    %c0_i32_0 = arith.constant 0 : i32
    %c0_i32_1 = arith.constant 0 : i32
    return %c0_i32, %c0_i32_0 : i32, i32
  }
  func.func @transform_13(%arg0: i32) -> (i32, i32) {
    %c0_i32 = arith.constant 0 : i32
    %c0_i32_0 = arith.constant 0 : i32
    %c0_i32_1 = arith.constant 0 : i32
    return %c0_i32, %c0_i32_0 : i32, i32
  }
}

</mosaic_0001>

<llo_original>
// kernel: _hybrid_forward.1
$region0: #{_hybrid_forward.1}
  #allocation0 [shape = 'u32[]', space=smem, size = 0x4, offset = 0x4, fixed_abs, tag = 'smem constant byte address 0x4 - core index']
  #allocation1 [shape = 'u32[144,128]{1,0:T(1,128)}', space=vmem, size = 0x12000, scoped, tag = 'internal scratch']
  #allocation2 [shape = 'f32[8,1664]{1,0:T(8,128)}', space=vmem, size = 0xd000, scoped, tag = 'scratch operand']
  #allocation3 [shape = 'f32[8,256]{1,0:T(8,128)}', space=vmem, size = 0x2000, scoped, tag = 'scratch operand']
  #allocation4 [shape = 'f32[1,1]{1,0:T(1,128)S(1)}', space=vmem, size = 0x200, scoped, tag = 'scoped memory for _hybrid_forward.1']
  %s0 = inlined_call_operand.hbm [shape: f32[8,1603], index: 0, kind: input, shape index: {}]
  %s1 = inlined_call_operand.hbm [shape: bf16[2,1664,512], index: 1, kind: input, shape index: {}]
  %s2 = inlined_call_operand.hbm [shape: f32[1,1024], index: 2, kind: input, shape index: {}]
  %s3 = inlined_call_operand.hbm [shape: bf16[1024,256], index: 3, kind: input, shape index: {}]
  %s4 = inlined_call_operand.hbm [shape: f32[1,256], index: 4, kind: input, shape index: {}]
  %s5 = inlined_call_operand.vmem [shape: f32[256,32], index: 5, kind: input, shape index: {}]
  %s6 = inlined_call_operand.hbm [shape: f32[1,32], index: 6, kind: input, shape index: {}]
  %s7 = inlined_call_operand.vmem [shape: f32[32,16], index: 7, kind: input, shape index: {}]
  %s8 = inlined_call_operand.hbm [shape: f32[1,16], index: 8, kind: input, shape index: {}]
  %s9 = inlined_call_operand.vmem [shape: f32[16,4], index: 9, kind: input, shape index: {}]
  %s10 = inlined_call_operand.hbm [shape: f32[1,4], index: 10, kind: input, shape index: {}]
  %s11 = inlined_call_operand.vmem [shape: f32[4,1], index: 11, kind: input, shape index: {}]
  %s12 = inlined_call_operand.<no memory space> [shape: f32[1,1], index: 12, kind: input, shape index: {}]
  %s13 = inlined_call_operand.vmem [shape: f32[8,1], index: 13, kind: output, shape index: {}]
  %s14 = sld [smem:[#allocation0]]
  $region133: #{_hybrid_forward.1} parent=0
    _
  %s16 = ssub.s32 1, %s14
  %s17 = scalar_select 0, %s16, %s14
  %v18 = vstv %s12
  %19 = vst [vmem:[#allocation4] sm:$0x1] %v18
  $region1: #{_hybrid_forward.1} parent=0
    #allocation5 [shape = 'u8[53248]{0}', space=vmem, size = 0xd000, scoped, tag = 'input window, operand 0, single buffered']
    #allocation6 [shape = 's32[2]{0}', space=sflag, size = 0x8, scoped, tag = 'scoped memory for _hybrid_forward.1']
    #allocation7 [shape = 'u8[3407872]{0}', space=vmem, size = 0x340000, scoped, tag = 'input window, operand 1']
    #allocation8 [shape = 's32[2]{0}', space=sflag, size = 0x8, scoped, tag = 'scoped memory for _hybrid_forward.1']
    #allocation9 [shape = 'u8[4096]{0}', space=vmem, size = 0x1000, scoped, tag = 'input window, operand 2']
    #allocation10 [shape = 'u8[524288]{0}', space=vmem, size = 0x80000, scoped, tag = 'input window, operand 3']
    #allocation11 [shape = 's32[2]{0}', space=sflag, size = 0x8, scoped, tag = 'scoped memory for _hybrid_forward.1']
    #allocation12 [shape = 'u8[1024]{0}', space=vmem, size = 0x400, scoped, tag = 'input window, operand 4, single buffered']
    #allocation13 [shape = 'u8[512]{0}', space=vmem, size = 0x400, scoped, tag = 'input window, operand 6, single buffered']
    #allocation14 [shape = 's32[1]{0}', space=sflag, size = 0x4, scoped, tag = 'scoped memory for _hybrid_forward.1']
    #allocation15 [shape = 'u8[512]{0}', space=vmem, size = 0x400, scoped, tag = 'input window, operand 8, single buffered']
    #allocation16 [shape = 'u8[512]{0}', space=vmem, size = 0x400, scoped, tag = 'input window, operand 10, single buffered']
    #allocation17 [shape = 's32[1]{0}', space=sflag, size = 0x4, scoped, tag = 'scoped memory for _hybrid_forward.1']
    %20 = vsyncpa [#allocation6], 0
    %21 = vsyncpa [#allocation8], 0
    %s22 = scalar_lea.sflag [#allocation8], 1
    %23 = vsyncpa %s22, 0
    %24 = vsyncpa [#allocation11], 0
    %s25 = scalar_lea.sflag [#allocation11], 1
    %26 = vsyncpa %s25, 0
    %27 = vsyncpa [#allocation14], 0
    %28 = vsyncpa [#allocation17], 0
    loop: start=0, step=1, limit=4
    $region2: #{_hybrid_forward.1} parent=1 // loop_pre_header
      _
    $region3: #{_hybrid_forward.1} parent=1 // loop_header
      %s30 = sphi 0, %s34
      %p31 = scmp.ge.s32.totalorder %s30, 4
      %s38 = sphi 0, %s38
      %s40 = sphi 0, %s38
      %s41 = sphi 0, %s40
      %s55 = sphi 0, %s41
      %s61 = sphi 0, %s63
      %s64 = sphi 0, %s61
      %s65 = sphi 0, %s64
      %s81 = sphi 0, %s65
      %s87 = sphi 0, %s89
      %s90 = sphi 0, %s87
      %s91 = sphi 0, %s90
      %s107 = sphi 0, %s91
      %s113 = sphi 0, %s115
      %s116 = sphi 0, %s113
      %s117 = sphi 0, %s116
      %s133 = sphi 0, %s117
      %s137 = sphi 0, %s137
      %s139 = sphi 0, %s137
      %s140 = sphi 0, %s139
      %s154 = sphi 0, %s140
      %s158 = sphi 0, %s158
      %s160 = sphi 0, %s158
      %s161 = sphi 0, %s160
      %s175 = sphi 0, %s161
      %s179 = sphi 0, %s179
      %s181 = sphi 0, %s179
      %s182 = sphi 0, %s181
      %s196 = sphi 0, %s182
      %s200 = sphi 0, %s200
      %s202 = sphi 0, %s200
      %s203 = sphi 0, %s202
      %s217 = sphi 0, %s203
      %s221 = sphi 0, %s221
      %s223 = sphi 0, %s221
      %s224 = sphi 0, %s223
      %s238 = sphi 0, %s224
      %s242 = sphi 0, %s242
      %s244 = sphi 0, %s242
      %s245 = sphi 0, %s244
      %s259 = sphi 0, %s245
      %s263 = sphi 0, %s263
      %s265 = sphi 0, %s263
      %s266 = sphi 0, %s265
      %s280 = sphi 0, %s266
      %s284 = sphi 0, %s284
      %s286 = sphi 0, %s284
      %s287 = sphi 0, %s286
      %s301 = sphi 0, %s287
      %s305 = sphi 0, %s305
      %s307 = sphi 0, %s305
      %s308 = sphi 0, %s307
      %s322 = sphi 0, %s308
      %s326 = sphi 0, %s326
      %s328 = sphi 0, %s326
      %s329 = sphi 0, %s328
      %s343 = sphi 0, %s329
    $region4: #{_hybrid_forward.1} parent=1 // loop_header_branch
      %33 = sbr.rel (%p31) target = $region8
    $region5: #{_hybrid_forward.1} parent=1 // loop_body
      %s35 = ssub.s32 %s30, 1
      %s36 = ssub.s32 %s30, 2
      %s37 = sadd.s32 %s30, 1
      %s39 = sadd.s32 %s38, 1
      %p42 = scmp.eq.s32.totalorder %s30, 1
      %p43 = scmp.ne.s32.totalorder %s38, %s40
      %p44 = scmp.eq.s32.totalorder %s30, 0
      %p45 = por %p43, %p44
      %p46 = scmp.ne.s32.totalorder %s38, %s40
      %p47 = scmp.eq.s32.totalorder %s35, 1
      %p48 = por %p46, %p47
      %p49 = scmp.ne.s32.totalorder %s40, %s41
      %p50 = scmp.eq.s32.totalorder %s35, 0
      %p51 = por %p49, %p50
      %p52 = scmp.ne.s32.totalorder %s40, %s41
      %p53 = scmp.eq.s32.totalorder %s36, 1
      %p54 = por %p52, %p53
      %p56 = scmp.ne.s32.totalorder %s41, %s55
      %p57 = scmp.eq.s32.totalorder %s36, 0
      %p58 = por %p56, %p57
      %s59 = ssub.s32 %s30, %s37
      %p60 = scmp.eq.s32.totalorder %s59, 0
      %s62 = sadd.s32 %s61, 1
      %s63 = scalar_select %p60, %s61, %s62
      %p66 = pneg %p60
      %p67 = scmp.eq.s32.totalorder %s30, 1
      %p68 = por %p66, %p67
      %p69 = scmp.ne.s32.totalorder %s61, %s64
      %p70 = scmp.eq.s32.totalorder %s30, 0
      %p71 = por %p69, %p70
      %p72 = scmp.ne.s32.totalorder %s61, %s64
      %p73 = scmp.eq.s32.totalorder %s35, 1
      %p74 = por %p72, %p73
      %p75 = scmp.ne.s32.totalorder %s64, %s65
      %p76 = scmp.eq.s32.totalorder %s35, 0
      %p77 = por %p75, %p76
      %p78 = scmp.ne.s32.totalorder %s64, %s65
      %p79 = scmp.eq.s32.totalorder %s36, 1
      %p80 = por %p78, %p79
      %p82 = scmp.ne.s32.totalorder %s65, %s81
      %p83 = scmp.eq.s32.totalorder %s36, 0
      %p84 = por %p82, %p83
      %s85 = ssub.s32 %s30, %s37
      %p86 = scmp.eq.s32.totalorder %s85, 0
      %s88 = sadd.s32 %s87, 1
      %s89 = scalar_select %p86, %s87, %s88
      %p92 = pneg %p86
      %p93 = scmp.eq.s32.totalorder %s30, 1
      %p94 = por %p92, %p93
      %p95 = scmp.ne.s32.totalorder %s87, %s90
      %p96 = scmp.eq.s32.totalorder %s30, 0
      %p97 = por %p95, %p96
      %p98 = scmp.ne.s32.totalorder %s87, %s90
      %p99 = scmp.eq.s32.totalorder %s35, 1
      %p100 = por %p98, %p99
      %p101 = scmp.ne.s32.totalorder %s90, %s91
      %p102 = scmp.eq.s32.totalorder %s35, 0
      %p103 = por %p101, %p102
      %p104 = scmp.ne.s32.totalorder %s90, %s91
      %p105 = scmp.eq.s32.totalorder %s36, 1
      %p106 = por %p104, %p105
      %p108 = scmp.ne.s32.totalorder %s91, %s107
      %p109 = scmp.eq.s32.totalorder %s36, 0
      %p110 = por %p108, %p109
      %s111 = ssub.s32 %s30, %s37
      %p112 = scmp.eq.s32.totalorder %s111, 0
      %s114 = sadd.s32 %s113, 1
      %s115 = scalar_select %p112, %s113, %s114
      %p118 = pneg %p112
      %p119 = scmp.eq.s32.totalorder %s30, 1
      %p120 = por %p118, %p119
      %p121 = scmp.ne.s32.totalorder %s113, %s116
      %p122 = scmp.eq.s32.totalorder %s30, 0
      %p123 = por %p121, %p122
      %p124 = scmp.ne.s32.totalorder %s113, %s116
      %p125 = scmp.eq.s32.totalorder %s35, 1
      %p126 = por %p124, %p125
      %p127 = scmp.ne.s32.totalorder %s116, %s117
      %p128 = scmp.eq.s32.totalorder %s35, 0
      %p129 = por %p127, %p128
      %p130 = scmp.ne.s32.totalorder %s116, %s117
      %p131 = scmp.eq.s32.totalorder %s36, 1
      %p132 = por %p130, %p131
      %p134 = scmp.ne.s32.totalorder %s117, %s133
      %p135 = scmp.eq.s32.totalorder %s36, 0
      %p136 = por %p134, %p135
      %s138 = sadd.s32 %s137, 1
      %p141 = scmp.eq.s32.totalorder %s30, 1
      %p142 = scmp.ne.s32.totalorder %s137, %s139
      %p143 = scmp.eq.s32.totalorder %s30, 0
      %p144 = por %p142, %p143
      %p145 = scmp.ne.s32.totalorder %s137, %s139
      %p146 = scmp.eq.s32.totalorder %s35, 1
      %p147 = por %p145, %p146
      %p148 = scmp.ne.s32.totalorder %s139, %s140
      %p149 = scmp.eq.s32.totalorder %s35, 0
      %p150 = por %p148, %p149
      %p151 = scmp.ne.s32.totalorder %s139, %s140
      %p152 = scmp.eq.s32.totalorder %s36, 1
      %p153 = por %p151, %p152
      %p155 = scmp.ne.s32.totalorder %s140, %s154
      %p156 = scmp.eq.s32.totalorder %s36, 0
      %p157 = por %p155, %p156
      %s159 = sadd.s32 %s158, 1
      %p162 = scmp.eq.s32.totalorder %s30, 1
      %p163 = scmp.ne.s32.totalorder %s158, %s160
      %p164 = scmp.eq.s32.totalorder %s30, 0
      %p165 = por %p163, %p164
      %p166 = scmp.ne.s32.totalorder %s158, %s160
      %p167 = scmp.eq.s32.totalorder %s35, 1
      %p168 = por %p166, %p167
      %p169 = scmp.ne.s32.totalorder %s160, %s161
      %p170 = scmp.eq.s32.totalorder %s35, 0
      %p171 = por %p169, %p170
      %p172 = scmp.ne.s32.totalorder %s160, %s161
      %p173 = scmp.eq.s32.totalorder %s36, 1
      %p174 = por %p172, %p173
      %p176 = scmp.ne.s32.totalorder %s161, %s175
      %p177 = scmp.eq.s32.totalorder %s36, 0
      %p178 = por %p176, %p177
      %s180 = sadd.s32 %s179, 1
      %p183 = scmp.eq.s32.totalorder %s30, 1
      %p184 = scmp.ne.s32.totalorder %s179, %s181
      %p185 = scmp.eq.s32.totalorder %s30, 0
      %p186 = por %p184, %p185
      %p187 = scmp.ne.s32.totalorder %s179, %s181
      %p188 = scmp.eq.s32.totalorder %s35, 1
      %p189 = por %p187, %p188
      %p190 = scmp.ne.s32.totalorder %s181, %s182
      %p191 = scmp.eq.s32.totalorder %s35, 0
      %p192 = por %p190, %p191
      %p193 = scmp.ne.s32.totalorder %s181, %s182
      %p194 = scmp.eq.s32.totalorder %s36, 1
      %p195 = por %p193, %p194
      %p197 = scmp.ne.s32.totalorder %s182, %s196
      %p198 = scmp.eq.s32.totalorder %s36, 0
      %p199 = por %p197, %p198
      %s201 = sadd.s32 %s200, 1
      %p204 = scmp.eq.s32.totalorder %s30, 1
      %p205 = scmp.ne.s32.totalorder %s200, %s202
      %p206 = scmp.eq.s32.totalorder %s30, 0
      %p207 = por %p205, %p206
      %p208 = scmp.ne.s32.totalorder %s200, %s202
      %p209 = scmp.eq.s32.totalorder %s35, 1
      %p210 = por %p208, %p209
      %p211 = scmp.ne.s32.totalorder %s202, %s203
      %p212 = scmp.eq.s32.totalorder %s35, 0
      %p213 = por %p211, %p212
      %p214 = scmp.ne.s32.totalorder %s202, %s203
      %p215 = scmp.eq.s32.totalorder %s36, 1
      %p216 = por %p214, %p215
      %p218 = scmp.ne.s32.totalorder %s203, %s217
      %p219 = scmp.eq.s32.totalorder %s36, 0
      %p220 = por %p218, %p219
      %s222 = sadd.s32 %s221, 1
      %p225 = scmp.eq.s32.totalorder %s30, 1
      %p226 = scmp.ne.s32.totalorder %s221, %s223
      %p227 = scmp.eq.s32.totalorder %s30, 0
      %p228 = por %p226, %p227
      %p229 = scmp.ne.s32.totalorder %s221, %s223
      %p230 = scmp.eq.s32.totalorder %s35, 1
      %p231 = por %p229, %p230
      %p232 = scmp.ne.s32.totalorder %s223, %s224
      %p233 = scmp.eq.s32.totalorder %s35, 0
      %p234 = por %p232, %p233
      %p235 = scmp.ne.s32.totalorder %s223, %s224
      %p236 = scmp.eq.s32.totalorder %s36, 1
      %p237 = por %p235, %p236
      %p239 = scmp.ne.s32.totalorder %s224, %s238
      %p240 = scmp.eq.s32.totalorder %s36, 0
      %p241 = por %p239, %p240
      %s243 = sadd.s32 %s242, 1
      %p246 = scmp.eq.s32.totalorder %s30, 1
      %p247 = scmp.ne.s32.totalorder %s242, %s244
      %p248 = scmp.eq.s32.totalorder %s30, 0
      %p249 = por %p247, %p248
      %p250 = scmp.ne.s32.totalorder %s242, %s244
      %p251 = scmp.eq.s32.totalorder %s35, 1
      %p252 = por %p250, %p251
      %p253 = scmp.ne.s32.totalorder %s244, %s245
      %p254 = scmp.eq.s32.totalorder %s35, 0
      %p255 = por %p253, %p254
      %p256 = scmp.ne.s32.totalorder %s244, %s245
      %p257 = scmp.eq.s32.totalorder %s36, 1
      %p258 = por %p256, %p257
      %p260 = scmp.ne.s32.totalorder %s245, %s259
      %p261 = scmp.eq.s32.totalorder %s36, 0
      %p262 = por %p260, %p261
      %s264 = sadd.s32 %s263, 1
      %p267 = scmp.eq.s32.totalorder %s30, 1
      %p268 = scmp.ne.s32.totalorder %s263, %s265
      %p269 = scmp.eq.s32.totalorder %s30, 0
      %p270 = por %p268, %p269
      %p271 = scmp.ne.s32.totalorder %s263, %s265
      %p272 = scmp.eq.s32.totalorder %s35, 1
      %p273 = por %p271, %p272
      %p274 = scmp.ne.s32.totalorder %s265, %s266
      %p275 = scmp.eq.s32.totalorder %s35, 0
      %p276 = por %p274, %p275
      %p277 = scmp.ne.s32.totalorder %s265, %s266
      %p278 = scmp.eq.s32.totalorder %s36, 1
      %p279 = por %p277, %p278
      %p281 = scmp.ne.s32.totalorder %s266, %s280
      %p282 = scmp.eq.s32.totalorder %s36, 0
      %p283 = por %p281, %p282
      %s285 = sadd.s32 %s284, 1
      %p288 = scmp.eq.s32.totalorder %s30, 1
      %p289 = scmp.ne.s32.totalorder %s284, %s286
      %p290 = scmp.eq.s32.totalorder %s30, 0
      %p291 = por %p289, %p290
      %p292 = scmp.ne.s32.totalorder %s284, %s286
      %p293 = scmp.eq.s32.totalorder %s35, 1
      %p294 = por %p292, %p293
      %p295 = scmp.ne.s32.totalorder %s286, %s287
      %p296 = scmp.eq.s32.totalorder %s35, 0
      %p297 = por %p295, %p296
      %p298 = scmp.ne.s32.totalorder %s286, %s287
      %p299 = scmp.eq.s32.totalorder %s36, 1
      %p300 = por %p298, %p299
      %p302 = scmp.ne.s32.totalorder %s287, %s301
      %p303 = scmp.eq.s32.totalorder %s36, 0
      %p304 = por %p302, %p303
      %s306 = sadd.s32 %s305, 1
      %p309 = scmp.eq.s32.totalorder %s30, 1
      %p310 = scmp.ne.s32.totalorder %s305, %s307
      %p311 = scmp.eq.s32.totalorder %s30, 0
      %p312 = por %p310, %p311
      %p313 = scmp.ne.s32.totalorder %s305, %s307
      %p314 = scmp.eq.s32.totalorder %s35, 1
      %p315 = por %p313, %p314
      %p316 = scmp.ne.s32.totalorder %s307, %s308
      %p317 = scmp.eq.s32.totalorder %s35, 0
      %p318 = por %p316, %p317
      %p319 = scmp.ne.s32.totalorder %s307, %s308
      %p320 = scmp.eq.s32.totalorder %s36, 1
      %p321 = por %p319, %p320
      %p323 = scmp.ne.s32.totalorder %s308, %s322
      %p324 = scmp.eq.s32.totalorder %s36, 0
      %p325 = por %p323, %p324
      %s327 = sadd.s32 %s326, 1
      %p330 = scmp.eq.s32.totalorder %s30, 1
      %p331 = scmp.ne.s32.totalorder %s326, %s328
      %p332 = scmp.eq.s32.totalorder %s30, 0
      %p333 = por %p331, %p332
      %p334 = scmp.ne.s32.totalorder %s326, %s328
      %p335 = scmp.eq.s32.totalorder %s35, 1
      %p336 = por %p334, %p335
      %p337 = scmp.ne.s32.totalorder %s328, %s329
      %p338 = scmp.eq.s32.totalorder %s35, 0
      %p339 = por %p337, %p338
      %p340 = scmp.ne.s32.totalorder %s328, %s329
      %p341 = scmp.eq.s32.totalorder %s36, 1
      %p342 = por %p340, %p341
      %p344 = scmp.ne.s32.totalorder %s329, %s343
      %p345 = scmp.eq.s32.totalorder %s36, 0
      %p346 = por %p344, %p345
      %p347 = scmp.le.s32.totalorder 1, %s30
      %p348 = scmp.lt.s32.totalorder %s30, 3
      %p349 = pnand %p347, %p348
      %p350 = pneg %p349
      // Predicated region
      $region9: #{_hybrid_forward.1} parent=5 // pred_check
        _
      $region10: #{_hybrid_forward.1} parent=5 // pred_check_branch
        %352 = sbr.rel (%p349) target = $region12
      $region11: #{_hybrid_forward.1} parent=5 // pred_region
        %s353 = ssub.s32 %s30, 1
        // Predicated region
        $region13: #{_hybrid_forward.1} parent=11 // pred_check
          %p354 = pneg %p51
        $region14: #{_hybrid_forward.1} parent=11 // pred_check_branch
          %356 = sbr.rel (%p354) target = $region16
        $region15: #{_hybrid_forward.1} parent=11 // pred_region
          %s358 = ssub.s32 1664, 1664
          %359 = vsyncadd [#allocation6], %s358
          %s361 = sshll.u32 [#allocation5], 4
          %s362 = int_to_ptr.vmem [resolvable:$true] %s361
          %364 = dma.hbm_to_vmem [thread:$0]  %s0, 1664, %s362, [#allocation6]
        $region16: #{_hybrid_forward.1} parent=11 // pred_fallthru
          _
        // Predicated region
        $region17: #{_hybrid_forward.1} parent=11 // pred_check
          %p365 = pneg %p150
        $region18: #{_hybrid_forward.1} parent=11 // pred_check_branch
          %367 = sbr.rel (%p365) target = $region20
        $region19: #{_hybrid_forward.1} parent=11 // pred_region
          %s369 = ssub.s32 32, 32
          %370 = vsyncadd [#allocation11], %s369
          %s372 = sshll.u32 [#allocation12], 4
          %s373 = int_to_ptr.vmem [resolvable:$true] %s372
          %375 = dma.hbm_to_vmem [thread:$0]  %s4, 32, %s373, [#allocation11]
        $region20: #{_hybrid_forward.1} parent=11 // pred_fallthru
          _
        // Predicated region
        $region21: #{_hybrid_forward.1} parent=11 // pred_check
          %p376 = pneg %p171
        $region22: #{_hybrid_forward.1} parent=11 // pred_check_branch
          %378 = sbr.rel (%p376) target = $region24
        $region23: #{_hybrid_forward.1} parent=11 // pred_region
          _
        $region24: #{_hybrid_forward.1} parent=11 // pred_fallthru
          _
        // Predicated region
        $region25: #{_hybrid_forward.1} parent=11 // pred_check
          %p379 = pneg %p192
        $region26: #{_hybrid_forward.1} parent=11 // pred_check_branch
          %381 = sbr.rel (%p379) target = $region28
        $region27: #{_hybrid_forward.1} parent=11 // pred_region
          %s383 = ssub.s32 16, 16
          %384 = vsyncadd [#allocation14], %s383
          %s386 = sshll.u32 [#allocation13], 4
          %s387 = int_to_ptr.vmem [resolvable:$true] %s386
          %389 = dma.hbm_to_vmem [thread:$0]  %s6, 16, %s387, [#allocation14]
        $region28: #{_hybrid_forward.1} parent=11 // pred_fallthru
          _
        // Predicated region
        $region29: #{_hybrid_forward.1} parent=11 // pred_check
          %p390 = pneg %p213
        $region30: #{_hybrid_forward.1} parent=11 // pred_check_branch
          %392 = sbr.rel (%p390) target = $region32
        $region31: #{_hybrid_forward.1} parent=11 // pred_region
          _
        $region32: #{_hybrid_forward.1} parent=11 // pred_fallthru
          _
        // Predicated region
        $region33: #{_hybrid_forward.1} parent=11 // pred_check
          %p393 = pneg %p234
        $region34: #{_hybrid_forward.1} parent=11 // pred_check_branch
          %395 = sbr.rel (%p393) target = $region36
        $region35: #{_hybrid_forward.1} parent=11 // pred_region
          %s397 = ssub.s32 16, 16
          %398 = vsyncadd [#allocation14], %s397
          %s400 = sshll.u32 [#allocation15], 4
          %s401 = int_to_ptr.vmem [resolvable:$true] %s400
          %403 = dma.hbm_to_vmem [thread:$0]  %s8, 16, %s401, [#allocation14]
        $region36: #{_hybrid_forward.1} parent=11 // pred_fallthru
          _
        // Predicated region
        $region37: #{_hybrid_forward.1} parent=11 // pred_check
          %p404 = pneg %p255
        $region38: #{_hybrid_forward.1} parent=11 // pred_check_branch
          %406 = sbr.rel (%p404) target = $region40
        $region39: #{_hybrid_forward.1} parent=11 // pred_region
          _
        $region40: #{_hybrid_forward.1} parent=11 // pred_fallthru
          _
        // Predicated region
        $region41: #{_hybrid_forward.1} parent=11 // pred_check
          %p407 = pneg %p276
        $region42: #{_hybrid_forward.1} parent=11 // pred_check_branch
          %409 = sbr.rel (%p407) target = $region44
        $region43: #{_hybrid_forward.1} parent=11 // pred_region
          %s411 = ssub.s32 16, 16
          %412 = vsyncadd [#allocation17], %s411
          %s414 = sshll.u32 [#allocation16], 4
          %s415 = int_to_ptr.vmem [resolvable:$true] %s414
          %417 = dma.hbm_to_vmem [thread:$0]  %s10, 16, %s415, [#allocation17]
        $region44: #{_hybrid_forward.1} parent=11 // pred_fallthru
          _
        // Predicated region
        $region45: #{_hybrid_forward.1} parent=11 // pred_check
          %p418 = pneg %p297
        $region46: #{_hybrid_forward.1} parent=11 // pred_check_branch
          %420 = sbr.rel (%p418) target = $region48
        $region47: #{_hybrid_forward.1} parent=11 // pred_region
          _
        $region48: #{_hybrid_forward.1} parent=11 // pred_fallthru
          _
        // Predicated region
        $region49: #{_hybrid_forward.1} parent=11 // pred_check
          %p421 = pneg %p318
        $region50: #{_hybrid_forward.1} parent=11 // pred_check_branch
          %423 = sbr.rel (%p421) target = $region52
        $region51: #{_hybrid_forward.1} parent=11 // pred_region
          _
        $region52: #{_hybrid_forward.1} parent=11 // pred_fallthru
          _
      $region12: #{_hybrid_forward.1} parent=5 // pred_fallthru
        _
      %p424 = scmp.lt.s32.totalorder %s30, 2
      // Predicated region
      $region53: #{_hybrid_forward.1} parent=5 // pred_check
        %p425 = pneg %p424
      $region54: #{_hybrid_forward.1} parent=5 // pred_check_branch
        %427 = sbr.rel (%p425) target = $region56
      $region55: #{_hybrid_forward.1} parent=5 // pred_region
        // Predicated region
        $region57: #{_hybrid_forward.1} parent=55 // pred_check
          %p428 = pneg %p71
        $region58: #{_hybrid_forward.1} parent=55 // pred_check_branch
          %430 = sbr.rel (%p428) target = $region60
        $region59: #{_hybrid_forward.1} parent=55 // pred_region
          %s431 = sand.u32 %s30, 1
          %s432 = scalar_lea.sflag [#allocation8], %s431
          %s433 = sand.u32 %s61, 1
          %s434 = smul.addr %s433, 3328
          %s435 = scalar_lea.vmem [#allocation7], %s434
          %s437 = ssub.s32 53248, 53248
          %438 = vsyncadd %s432, %s437
          %s439 = smul.addr %s30, 832
          %s440 = smul.addr %s439, 64
          %s441 = scalar_lea.hbm %s1, %s440
          %s442 = sshll.u32 %s435, 4
          %s443 = int_to_ptr.vmem [resolvable:$true] %s442
          %448 = dma.hbm_to_vmem [thread:$0]  %s441, 53248, %s443, %s432, 256, 256, 16
        $region60: #{_hybrid_forward.1} parent=55 // pred_fallthru
          _
        // Predicated region
        $region61: #{_hybrid_forward.1} parent=55 // pred_check
          %p449 = pneg %p97
        $region62: #{_hybrid_forward.1} parent=55 // pred_check_branch
          %451 = sbr.rel (%p449) target = $region64
        $region63: #{_hybrid_forward.1} parent=55 // pred_region
          %s452 = sand.u32 %s30, 1
          %s453 = scalar_lea.sflag [#allocation8], %s452
          %s454 = sand.u32 %s87, 1
          %s455 = smul.addr %s454, 4
          %s456 = scalar_lea.vmem [#allocation9], %s455
          %s457 = smul.u32 4, %s30
          %s459 = ssub.s32 64, 64
          %460 = vsyncadd %s453, %s459
          %s461 = smul.addr %s457, 16
          %s462 = scalar_lea.hbm %s2, %s461
          %s464 = sshll.u32 %s456, 4
          %s465 = int_to_ptr.vmem [resolvable:$true] %s464
          %467 = dma.hbm_to_vmem [thread:$0]  %s462, 64, %s465, %s453
        $region64: #{_hybrid_forward.1} parent=55 // pred_fallthru
          _
        // Predicated region
        $region65: #{_hybrid_forward.1} parent=55 // pred_check
          %p468 = pneg %p123
        $region66: #{_hybrid_forward.1} parent=55 // pred_check_branch
          %470 = sbr.rel (%p468) target = $region68
        $region67: #{_hybrid_forward.1} parent=55 // pred_region
          %s471 = sand.u32 %s30, 1
          %s472 = scalar_lea.sflag [#allocation11], %s471
          %s473 = sand.u32 %s113, 1
          %s474 = smul.addr %s473, 512
          %s475 = scalar_lea.vmem [#allocation10], %s474
          %s476 = smul.u32 64, %s30
          %s478 = ssub.s32 8192, 8192
          %479 = vsyncadd %s472, %s478
          %s480 = smul.addr %s476, 2
          %s481 = smul.addr %s480, 64
          %s482 = scalar_lea.hbm %s3, %s481
          %s483 = sshll.u32 %s475, 4
          %s484 = int_to_ptr.vmem [resolvable:$true] %s483
          %489 = dma.hbm_to_vmem [thread:$0]  %s482, 8192, %s484, %s472, 128, 128, 8
        $region68: #{_hybrid_forward.1} parent=55 // pred_fallthru
          _
      $region56: #{_hybrid_forward.1} parent=5 // pred_fallthru
        _
      %p490 = scmp.le.s32.totalorder 1, %s30
      %p491 = scmp.lt.s32.totalorder %s30, 3
      %p492 = pnand %p490, %p491
      %p493 = pneg %p492
      // Predicated region
      $region69: #{_hybrid_forward.1} parent=5 // pred_check
        _
      $region70: #{_hybrid_forward.1} parent=5 // pred_check_branch
        %495 = sbr.rel (%p492) target = $region72
      $region71: #{_hybrid_forward.1} parent=5 // pred_region
        %s496 = ssub.s32 %s30, 1
        // Predicated region
        $region73: #{_hybrid_forward.1} parent=71 // pred_check
          %p497 = pneg %p51
        $region74: #{_hybrid_forward.1} parent=71 // pred_check_branch
          %499 = sbr.rel (%p497) target = $region76
        $region75: #{_hybrid_forward.1} parent=71 // pred_region
          %500 = dma.done [#allocation6], 1664
        $region76: #{_hybrid_forward.1} parent=71 // pred_fallthru
          _
        %s501 = sand.u32 %s35, 1
        %s502 = scalar_lea.sflag [#allocation8], %s501
        %s503 = sand.u32 %s64, 1
        %s504 = smul.addr %s503, 3328
        %s505 = scalar_lea.vmem [#allocation7], %s504
        // Predicated region
        $region77: #{_hybrid_forward.1} parent=71 // pred_check
          %p506 = pneg %p77
        $region78: #{_hybrid_forward.1} parent=71 // pred_check_branch
          %508 = sbr.rel (%p506) target = $region80
        $region79: #{_hybrid_forward.1} parent=71 // pred_region
          %509 = dma.done %s502, 53248
        $region80: #{_hybrid_forward.1} parent=71 // pred_fallthru
          _
        %s510 = sand.u32 %s35, 1
        %s511 = scalar_lea.sflag [#allocation8], %s510
        %s512 = sand.u32 %s90, 1
        %s513 = smul.addr %s512, 4
        %s514 = scalar_lea.vmem [#allocation9], %s513
        // Predicated region
        $region81: #{_hybrid_forward.1} parent=71 // pred_check
          %p515 = pneg %p103
        $region82: #{_hybrid_forward.1} parent=71 // pred_check_branch
          %517 = sbr.rel (%p515) target = $region84
        $region83: #{_hybrid_forward.1} parent=71 // pred_region
          %518 = dma.done %s511, 64
        $region84: #{_hybrid_forward.1} parent=71 // pred_fallthru
          _
        %s519 = sand.u32 %s35, 1
        %s520 = scalar_lea.sflag [#allocation11], %s519
        %s521 = sand.u32 %s116, 1
        %s522 = smul.addr %s521, 512
        %s523 = scalar_lea.vmem [#allocation10], %s522
        // Predicated region
        $region85: #{_hybrid_forward.1} parent=71 // pred_check
          %p524 = pneg %p129
        $region86: #{_hybrid_forward.1} parent=71 // pred_check_branch
          %526 = sbr.rel (%p524) target = $region88
        $region87: #{_hybrid_forward.1} parent=71 // pred_region
          %527 = dma.done %s520, 8192
        $region88: #{_hybrid_forward.1} parent=71 // pred_fallthru
          _
        // Predicated region
        $region89: #{_hybrid_forward.1} parent=71 // pred_check
          %p528 = pneg %p150
        $region90: #{_hybrid_forward.1} parent=71 // pred_check_branch
          %530 = sbr.rel (%p528) target = $region92
        $region91: #{_hybrid_forward.1} parent=71 // pred_region
          %531 = dma.done [#allocation11], 32
        $region92: #{_hybrid_forward.1} parent=71 // pred_fallthru
          _
        // Predicated region
        $region93: #{_hybrid_forward.1} parent=71 // pred_check
          %p532 = pneg %p192
        $region94: #{_hybrid_forward.1} parent=71 // pred_check_branch
          %534 = sbr.rel (%p532) target = $region96
        $region95: #{_hybrid_forward.1} parent=71 // pred_region
          %535 = dma.done [#allocation14], 16
        $region96: #{_hybrid_forward.1} parent=71 // pred_fallthru
          _
        // Predicated region
        $region97: #{_hybrid_forward.1} parent=71 // pred_check
          %p536 = pneg %p234
        $region98: #{_hybrid_forward.1} parent=71 // pred_check_branch
          %538 = sbr.rel (%p536) target = $region100
        $region99: #{_hybrid_forward.1} parent=71 // pred_region
          %539 = dma.done [#allocation14], 16
        $region100: #{_hybrid_forward.1} parent=71 // pred_fallthru
          _
        // Predicated region
        $region101: #{_hybrid_forward.1} parent=71 // pred_check
          %p540 = pneg %p276
        $region102: #{_hybrid_forward.1} parent=71 // pred_check_branch
          %542 = sbr.rel (%p540) target = $region104
        $region103: #{_hybrid_forward.1} parent=71 // pred_region
          %543 = dma.done [#allocation17], 16
        $region104: #{_hybrid_forward.1} parent=71 // pred_fallthru
          _
        %p544 = pneg %p51
        %p545 = pneg %p48
        %s546 = sand.u32 %s35, 1
        %s547 = scalar_lea.sflag [#allocation8], %s546
        %s548 = sand.u32 %s64, 1
        %s549 = smul.addr %s548, 3328
        %s550 = scalar_lea.vmem [#allocation7], %s549
        %p551 = pneg %p77
        %p552 = pneg %p74
        %s553 = sand.u32 %s35, 1
        %s554 = scalar_lea.sflag [#allocation8], %s553
        %s555 = sand.u32 %s90, 1
        %s556 = smul.addr %s555, 4
        %s557 = scalar_lea.vmem [#allocation9], %s556
        %p558 = pneg %p103
        %p559 = pneg %p100
        %s560 = sand.u32 %s35, 1
        %s561 = scalar_lea.sflag [#allocation11], %s560
        %s562 = sand.u32 %s116, 1
        %s563 = smul.addr %s562, 512
        %s564 = scalar_lea.vmem [#allocation10], %s563
        %p565 = pneg %p129
        %p566 = pneg %p126
        %p567 = pneg %p150
        %p568 = pneg %p147
        %p569 = pneg %p171
        %p570 = pneg %p168
        %p571 = pneg %p192
        %p572 = pneg %p189
        %p573 = pneg %p213
        %p574 = pneg %p210
        %p575 = pneg %p234
        %p576 = pneg %p231
        %p577 = pneg %p255
        %p578 = pneg %p252
        %p579 = pneg %p276
        %p580 = pneg %p273
        %p581 = pneg %p297
        %p582 = pneg %p294
        %p583 = pneg %p318
        %p584 = pneg %p315
        %p585 = pneg %p339
        %p586 = pneg %p336
        %s587 = smul.u32 4, %s35
        %s588 = smul.u32 64, %s35
        %p590 = scmp.eq.s32.totalorder %s35, 0
        // Predicated region
        $region105: #{_hybrid_forward.1} parent=71 // pred_check
          %p591 = pneg %p590
        $region106: #{_hybrid_forward.1} parent=71 // pred_check_branch
          %593 = sbr.rel (%p591) target = $region108
        $region107: #{_hybrid_forward.1} parent=71 // pred_region
          %594 = vst [vmem:[#allocation2] sm:$0xff] 0.0
          %595 = vst [vmem:[#allocation2 + $0x8] sm:$0xff] 0.0
          %596 = vst [vmem:[#allocation2 + $0x10] sm:$0xff] 0.0
          %597 = vst [vmem:[#allocation2 + $0x18] sm:$0xff] 0.0
          %598 = vst [vmem:[#allocation2 + $0x20] sm:$0xff] 0.0
          %599 = vst [vmem:[#allocation2 + $0x28] sm:$0xff] 0.0
          %600 = vst [vmem:[#allocation2 + $0x30] sm:$0xff] 0.0
          %601 = vst [vmem:[#allocation2 + $0x38] sm:$0xff] 0.0
          %602 = vst [vmem:[#allocation2 + $0x40] sm:$0xff] 0.0
          %603 = vst [vmem:[#allocation2 + $0x48] sm:$0xff] 0.0
          %604 = vst [vmem:[#allocation2 + $0x50] sm:$0xff] 0.0
          %605 = vst [vmem:[#allocation2 + $0x58] sm:$0xff] 0.0
          %606 = vst [vmem:[#allocation2 + $0x60] sm:$0xff] 0.0
          %v607 = vld [vmem:[#allocation5] sm:$0xff]
          %v608 = vld [vmem:[#allocation5 + $0x8] sm:$0xff]
          %v609 = vld [vmem:[#allocation5 + $0x10] sm:$0xff]
          %v610 = vld [vmem:[#allocation5 + $0x18] sm:$0xff]
          %v611 = vld [vmem:[#allocation5 + $0x20] sm:$0xff]
          %v612 = vld [vmem:[#allocation5 + $0x28] sm:$0xff]
          %v613 = vld [vmem:[#allocation5 + $0x30] sm:$0xff]
          %v614 = vld [vmem:[#allocation5 + $0x38] sm:$0xff]
          %v615 = vld [vmem:[#allocation5 + $0x40] sm:$0xff]
          %v616 = vld [vmem:[#allocation5 + $0x48] sm:$0xff]
          %v617 = vld [vmem:[#allocation5 + $0x50] sm:$0xff]
          %v618 = vld [vmem:[#allocation5 + $0x58] sm:$0xff]
          %v619 = vld [vmem:[#allocation5 + $0x60] sm:$0xff]
          %620 = vst [vmem:[#allocation2] sm:$0xff] %v607
          %621 = vst [vmem:[#allocation2 + $0x8] sm:$0xff] %v608
          %622 = vst [vmem:[#allocation2 + $0x10] sm:$0xff] %v609
          %623 = vst [vmem:[#allocation2 + $0x18] sm:$0xff] %v610
          %624 = vst [vmem:[#allocation2 + $0x20] sm:$0xff] %v611
          %625 = vst [vmem:[#allocation2 + $0x28] sm:$0xff] %v612
          %626 = vst [vmem:[#allocation2 + $0x30] sm:$0xff] %v613
          %627 = vst [vmem:[#allocation2 + $0x38] sm:$0xff] %v614
          %628 = vst [vmem:[#allocation2 + $0x40] sm:$0xff] %v615
          %629 = vst [vmem:[#allocation2 + $0x48] sm:$0xff] %v616
          %630 = vst [vmem:[#allocation2 + $0x50] sm:$0xff] %v617
          %631 = vst [vmem:[#allocation2 + $0x58] sm:$0xff] %v618
          %vm632 = vcmask 547840
          %633 = vst.msk [vmem:[#allocation2 + $0x60] sm:$0xff] %vm632, %v619
        $region108: #{_hybrid_forward.1} parent=71 // pred_fallthru
          _
        %v634 = vld [vmem:[#allocation2] sm:$0xff]
        %v635 = vld [vmem:[#allocation2 + $0x8] sm:$0xff]
        %v636 = vld [vmem:[#allocation2 + $0x10] sm:$0xff]
        %v637 = vld [vmem:[#allocation2 + $0x18] sm:$0xff]
        %v638 = vld [vmem:[#allocation2 + $0x20] sm:$0xff]
        %v639 = vld [vmem:[#allocation2 + $0x28] sm:$0xff]
        %v640 = vld [vmem:[#allocation2 + $0x30] sm:$0xff]
        %v641 = vld [vmem:[#allocation2 + $0x38] sm:$0xff]
        %v642 = vld [vmem:[#allocation2 + $0x40] sm:$0xff]
        %v643 = vld [vmem:[#allocation2 + $0x48] sm:$0xff]
        %v644 = vld [vmem:[#allocation2 + $0x50] sm:$0xff]
        %v645 = vld [vmem:[#allocation2 + $0x58] sm:$0xff]
        %v646 = vld [vmem:[#allocation2 + $0x60] sm:$0xff]
        %v647 = vpack.c.bf16 %v634, %v634
        %v648 = vpack.c.bf16 %v635, %v635
        %v649 = vpack.c.bf16 %v636, %v636
        %v650 = vpack.c.bf16 %v637, %v637
        %v651 = vpack.c.bf16 %v638, %v638
        %v652 = vpack.c.bf16 %v639, %v639
        %v653 = vpack.c.bf16 %v640, %v640
        %v654 = vpack.c.bf16 %v641, %v641
        %v655 = vpack.c.bf16 %v642, %v642
        %v656 = vpack.c.bf16 %v643, %v643
        %v657 = vpack.c.bf16 %v644, %v644
        %v658 = vpack.c.bf16 %v645, %v645
        %v659 = vpack.c.bf16 %v646, %v646
        %v660 = vld [vmem:[%s505] sm:$0xff]
        %v661 = vld [vmem:[%s505 + $0x8] sm:$0xff]
        %v662 = vld [vmem:[%s505 + $0x10] sm:$0xff]
        %v663 = vld [vmem:[%s505 + $0x18] sm:$0xff]
        %v664 = vld [vmem:[%s505 + $0x20] sm:$0xff]
        %v665 = vld [vmem:[%s505 + $0x28] sm:$0xff]
        %v666 = vld [vmem:[%s505 + $0x30] sm:$0xff]
        %v667 = vld [vmem:[%s505 + $0x38] sm:$0xff]
        %v668 = vld [vmem:[%s505 + $0x40] sm:$0xff]
        %v669 = vld [vmem:[%s505 + $0x48] sm:$0xff]
        %v670 = vld [vmem:[%s505 + $0x50] sm:$0xff]
        %v671 = vld [vmem:[%s505 + $0x58] sm:$0xff]
        %v672 = vld [vmem:[%s505 + $0x60] sm:$0xff]
        %v673 = vld [vmem:[%s505 + $0x68] sm:$0xff]
        %v674 = vld [vmem:[%s505 + $0x70] sm:$0xff]
        %v675 = vld [vmem:[%s505 + $0x78] sm:$0xff]
        %v676 = vld [vmem:[%s505 + $0x80] sm:$0xff]
        %v677 = vld [vmem:[%s505 + $0x88] sm:$0xff]
        %v678 = vld [vmem:[%s505 + $0x90] sm:$0xff]
        %v679 = vld [vmem:[%s505 + $0x98] sm:$0xff]
        %v680 = vld [vmem:[%s505 + $0xa0] sm:$0xff]
        %v681 = vld [vmem:[%s505 + $0xa8] sm:$0xff]
        %v682 = vld [vmem:[%s505 + $0xb0] sm:$0xff]
        %v683 = vld [vmem:[%s505 + $0xb8] sm:$0xff]
        %v684 = vld [vmem:[%s505 + $0xc0] sm:$0xff]
        %v685 = vld [vmem:[%s505 + $0xc8] sm:$0xff]
        %v686 = vld [vmem:[%s505 + $0xd0] sm:$0xff]
        %v687 = vld [vmem:[%s505 + $0xd8] sm:$0xff]
        %v688 = vld [vmem:[%s505 + $0xe0] sm:$0xff]
        %v689 = vld [vmem:[%s505 + $0xe8] sm:$0xff]
        %v690 = vld [vmem:[%s505 + $0xf0] sm:$0xff]
        %v691 = vld [vmem:[%s505 + $0xf8] sm:$0xff]
        %v692 = vld [vmem:[%s505 + $0x100] sm:$0xff]
        %v693 = vld [vmem:[%s505 + $0x108] sm:$0xff]
        %v694 = vld [vmem:[%s505 + $0x110] sm:$0xff]
        %v695 = vld [vmem:[%s505 + $0x118] sm:$0xff]
        %v696 = vld [vmem:[%s505 + $0x120] sm:$0xff]
        %v697 = vld [vmem:[%s505 + $0x128] sm:$0xff]
        %v698 = vld [vmem:[%s505 + $0x130] sm:$0xff]
        %v699 = vld [vmem:[%s505 + $0x138] sm:$0xff]
        %v700 = vld [vmem:[%s505 + $0x140] sm:$0xff]
        %v701 = vld [vmem:[%s505 + $0x148] sm:$0xff]
        %v702 = vld [vmem:[%s505 + $0x150] sm:$0xff]
        %v703 = vld [vmem:[%s505 + $0x158] sm:$0xff]
        %v704 = vld [vmem:[%s505 + $0x160] sm:$0xff]
        %v705 = vld [vmem:[%s505 + $0x168] sm:$0xff]
        %v706 = vld [vmem:[%s505 + $0x170] sm:$0xff]
        %v707 = vld [vmem:[%s505 + $0x178] sm:$0xff]
        %v708 = vld [vmem:[%s505 + $0x180] sm:$0xff]
        %v709 = vld [vmem:[%s505 + $0x188] sm:$0xff]
        %v710 = vld [vmem:[%s505 + $0x190] sm:$0xff]
        %v711 = vld [vmem:[%s505 + $0x198] sm:$0xff]
        %v712 = vld [vmem:[%s505 + $0x1a0] sm:$0xff]
        %v713 = vld [vmem:[%s505 + $0x1a8] sm:$0xff]
        %v714 = vld [vmem:[%s505 + $0x1b0] sm:$0xff]
        %v715 = vld [vmem:[%s505 + $0x1b8] sm:$0xff]
        %v716 = vld [vmem:[%s505 + $0x1c0] sm:$0xff]
        %v717 = vld [vmem:[%s505 + $0x1c8] sm:$0xff]
        %v718 = vld [vmem:[%s505 + $0x1d0] sm:$0xff]
        %v719 = vld [vmem:[%s505 + $0x1d8] sm:$0xff]
        %v720 = vld [vmem:[%s505 + $0x1e0] sm:$0xff]
        %v721 = vld [vmem:[%s505 + $0x1e8] sm:$0xff]
        %v722 = vld [vmem:[%s505 + $0x1f0] sm:$0xff]
        %v723 = vld [vmem:[%s505 + $0x1f8] sm:$0xff]
        %v724 = vld [vmem:[%s505 + $0x200] sm:$0xff]
        %v725 = vld [vmem:[%s505 + $0x208] sm:$0xff]
        %v726 = vld [vmem:[%s505 + $0x210] sm:$0xff]
        %v727 = vld [vmem:[%s505 + $0x218] sm:$0xff]
        %v728 = vld [vmem:[%s505 + $0x220] sm:$0xff]
        %v729 = vld [vmem:[%s505 + $0x228] sm:$0xff]
        %v730 = vld [vmem:[%s505 + $0x230] sm:$0xff]
        %v731 = vld [vmem:[%s505 + $0x238] sm:$0xff]
        %v732 = vld [vmem:[%s505 + $0x240] sm:$0xff]
        %v733 = vld [vmem:[%s505 + $0x248] sm:$0xff]
        %v734 = vld [vmem:[%s505 + $0x250] sm:$0xff]
        %v735 = vld [vmem:[%s505 + $0x258] sm:$0xff]
        %v736 = vld [vmem:[%s505 + $0x260] sm:$0xff]
        %v737 = vld [vmem:[%s505 + $0x268] sm:$0xff]
        %v738 = vld [vmem:[%s505 + $0x270] sm:$0xff]
        %v739 = vld [vmem:[%s505 + $0x278] sm:$0xff]
        %v740 = vld [vmem:[%s505 + $0x280] sm:$0xff]
        %v741 = vld [vmem:[%s505 + $0x288] sm:$0xff]
        %v742 = vld [vmem:[%s505 + $0x290] sm:$0xff]
        %v743 = vld [vmem:[%s505 + $0x298] sm:$0xff]
        %v744 = vld [vmem:[%s505 + $0x2a0] sm:$0xff]
        %v745 = vld [vmem:[%s505 + $0x2a8] sm:$0xff]
        %v746 = vld [vmem:[%s505 + $0x2b0] sm:$0xff]
        %v747 = vld [vmem:[%s505 + $0x2b8] sm:$0xff]
        %v748 = vld [vmem:[%s505 + $0x2c0] sm:$0xff]
        %v749 = vld [vmem:[%s505 + $0x2c8] sm:$0xff]
        %v750 = vld [vmem:[%s505 + $0x2d0] sm:$0xff]
        %v751 = vld [vmem:[%s505 + $0x2d8] sm:$0xff]
        %v752 = vld [vmem:[%s505 + $0x2e0] sm:$0xff]
        %v753 = vld [vmem:[%s505 + $0x2e8] sm:$0xff]
        %v754 = vld [vmem:[%s505 + $0x2f0] sm:$0xff]
        %v755 = vld [vmem:[%s505 + $0x2f8] sm:$0xff]
        %v756 = vld [vmem:[%s505 + $0x300] sm:$0xff]
        %v757 = vld [vmem:[%s505 + $0x308] sm:$0xff]
        %v758 = vld [vmem:[%s505 + $0x310] sm:$0xff]
        %v759 = vld [vmem:[%s505 + $0x318] sm:$0xff]
        %v760 = vld [vmem:[%s505 + $0x320] sm:$0xff]
        %v761 = vld [vmem:[%s505 + $0x328] sm:$0xff]
        %v762 = vld [vmem:[%s505 + $0x330] sm:$0xff]
        %v763 = vld [vmem:[%s505 + $0x338] sm:$0xff]
        %v764 = vld [vmem:[%s505 + $0x340] sm:$0xff]
        %v765 = vld [vmem:[%s505 + $0x348] sm:$0xff]
        %v766 = vld [vmem:[%s505 + $0x350] sm:$0xff]
        %v767 = vld [vmem:[%s505 + $0x358] sm:$0xff]
        %v768 = vld [vmem:[%s505 + $0x360] sm:$0xff]
        %v769 = vld [vmem:[%s505 + $0x368] sm:$0xff]
        %v770 = vld [vmem:[%s505 + $0x370] sm:$0xff]
        %v771 = vld [vmem:[%s505 + $0x378] sm:$0xff]
        %v772 = vld [vmem:[%s505 + $0x380] sm:$0xff]
        %v773 = vld [vmem:[%s505 + $0x388] sm:$0xff]
        %v774 = vld [vmem:[%s505 + $0x390] sm:$0xff]
        %v775 = vld [vmem:[%s505 + $0x398] sm:$0xff]
        %v776 = vld [vmem:[%s505 + $0x3a0] sm:$0xff]
        %v777 = vld [vmem:[%s505 + $0x3a8] sm:$0xff]
        %v778 = vld [vmem:[%s505 + $0x3b0] sm:$0xff]
        %v779 = vld [vmem:[%s505 + $0x3b8] sm:$0xff]
        %v780 = vld [vmem:[%s505 + $0x3c0] sm:$0xff]
        %v781 = vld [vmem:[%s505 + $0x3c8] sm:$0xff]
        %v782 = vld [vmem:[%s505 + $0x3d0] sm:$0xff]
        %v783 = vld [vmem:[%s505 + $0x3d8] sm:$0xff]
        %v784 = vld [vmem:[%s505 + $0x3e0] sm:$0xff]
        %v785 = vld [vmem:[%s505 + $0x3e8] sm:$0xff]
        %v786 = vld [vmem:[%s505 + $0x3f0] sm:$0xff]
        %v787 = vld [vmem:[%s505 + $0x3f8] sm:$0xff]
        %v788 = vld [vmem:[%s505 + $0x400] sm:$0xff]
        %v789 = vld [vmem:[%s505 + $0x408] sm:$0xff]
        %v790 = vld [vmem:[%s505 + $0x410] sm:$0xff]
        %v791 = vld [vmem:[%s505 + $0x418] sm:$0xff]
        %v792 = vld [vmem:[%s505 + $0x420] sm:$0xff]
        %v793 = vld [vmem:[%s505 + $0x428] sm:$0xff]
        %v794 = vld [vmem:[%s505 + $0x430] sm:$0xff]
        %v795 = vld [vmem:[%s505 + $0x438] sm:$0xff]
        %v796 = vld [vmem:[%s505 + $0x440] sm:$0xff]
        %v797 = vld [vmem:[%s505 + $0x448] sm:$0xff]
        %v798 = vld [vmem:[%s505 + $0x450] sm:$0xff]
        %v799 = vld [vmem:[%s505 + $0x458] sm:$0xff]
        %v800 = vld [vmem:[%s505 + $0x460] sm:$0xff]
        %v801 = vld [vmem:[%s505 + $0x468] sm:$0xff]
        %v802 = vld [vmem:[%s505 + $0x470] sm:$0xff]
        %v803 = vld [vmem:[%s505 + $0x478] sm:$0xff]
        %v804 = vld [vmem:[%s505 + $0x480] sm:$0xff]
        %v805 = vld [vmem:[%s505 + $0x488] sm:$0xff]
        %v806 = vld [vmem:[%s505 + $0x490] sm:$0xff]
        %v807 = vld [vmem:[%s505 + $0x498] sm:$0xff]
        %v808 = vld [vmem:[%s505 + $0x4a0] sm:$0xff]
        %v809 = vld [vmem:[%s505 + $0x4a8] sm:$0xff]
        %v810 = vld [vmem:[%s505 + $0x4b0] sm:$0xff]
        %v811 = vld [vmem:[%s505 + $0x4b8] sm:$0xff]
        %v812 = vld [vmem:[%s505 + $0x4c0] sm:$0xff]
        %v813 = vld [vmem:[%s505 + $0x4c8] sm:$0xff]
        %v814 = vld [vmem:[%s505 + $0x4d0] sm:$0xff]
        %v815 = vld [vmem:[%s505 + $0x4d8] sm:$0xff]
        %v816 = vld [vmem:[%s505 + $0x4e0] sm:$0xff]
        %v817 = vld [vmem:[%s505 + $0x4e8] sm:$0xff]
        %v818 = vld [vmem:[%s505 + $0x4f0] sm:$0xff]
        %v819 = vld [vmem:[%s505 + $0x4f8] sm:$0xff]
        %v820 = vld [vmem:[%s505 + $0x500] sm:$0xff]
        %v821 = vld [vmem:[%s505 + $0x508] sm:$0xff]
        %v822 = vld [vmem:[%s505 + $0x510] sm:$0xff]
        %v823 = vld [vmem:[%s505 + $0x518] sm:$0xff]
        %v824 = vld [vmem:[%s505 + $0x520] sm:$0xff]
        %v825 = vld [vmem:[%s505 + $0x528] sm:$0xff]
        %v826 = vld [vmem:[%s505 + $0x530] sm:$0xff]
        %v827 = vld [vmem:[%s505 + $0x538] sm:$0xff]
        %v828 = vld [vmem:[%s505 + $0x540] sm:$0xff]
        %v829 = vld [vmem:[%s505 + $0x548] sm:$0xff]
        %v830 = vld [vmem:[%s505 + $0x550] sm:$0xff]
        %v831 = vld [vmem:[%s505 + $0x558] sm:$0xff]
        %v832 = vld [vmem:[%s505 + $0x560] sm:$0xff]
        %v833 = vld [vmem:[%s505 + $0x568] sm:$0xff]
        %v834 = vld [vmem:[%s505 + $0x570] sm:$0xff]
        %v835 = vld [vmem:[%s505 + $0x578] sm:$0xff]
        %v836 = vld [vmem:[%s505 + $0x580] sm:$0xff]
        %v837 = vld [vmem:[%s505 + $0x588] sm:$0xff]
        %v838 = vld [vmem:[%s505 + $0x590] sm:$0xff]
        %v839 = vld [vmem:[%s505 + $0x598] sm:$0xff]
        %v840 = vld [vmem:[%s505 + $0x5a0] sm:$0xff]
        %v841 = vld [vmem:[%s505 + $0x5a8] sm:$0xff]
        %v842 = vld [vmem:[%s505 + $0x5b0] sm:$0xff]
        %v843 = vld [vmem:[%s505 + $0x5b8] sm:$0xff]
        %v844 = vld [vmem:[%s505 + $0x5c0] sm:$0xff]
        %v845 = vld [vmem:[%s505 + $0x5c8] sm:$0xff]
        %v846 = vld [vmem:[%s505 + $0x5d0] sm:$0xff]
        %v847 = vld [vmem:[%s505 + $0x5d8] sm:$0xff]
        %v848 = vld [vmem:[%s505 + $0x5e0] sm:$0xff]
        %v849 = vld [vmem:[%s505 + $0x5e8] sm:$0xff]
        %v850 = vld [vmem:[%s505 + $0x5f0] sm:$0xff]
        %v851 = vld [vmem:[%s505 + $0x5f8] sm:$0xff]
        %v852 = vld [vmem:[%s505 + $0x600] sm:$0xff]
        %v853 = vld [vmem:[%s505 + $0x608] sm:$0xff]
        %v854 = vld [vmem:[%s505 + $0x610] sm:$0xff]
        %v855 = vld [vmem:[%s505 + $0x618] sm:$0xff]
        %v856 = vld [vmem:[%s505 + $0x620] sm:$0xff]
        %v857 = vld [vmem:[%s505 + $0x628] sm:$0xff]
        %v858 = vld [vmem:[%s505 + $0x630] sm:$0xff]
        %v859 = vld [vmem:[%s505 + $0x638] sm:$0xff]
        %v860 = vld [vmem:[%s505 + $0x640] sm:$0xff]
        %v861 = vld [vmem:[%s505 + $0x648] sm:$0xff]
        %v862 = vld [vmem:[%s505 + $0x650] sm:$0xff]
        %v863 = vld [vmem:[%s505 + $0x658] sm:$0xff]
        %v864 = vld [vmem:[%s505 + $0x660] sm:$0xff]
        %v865 = vld [vmem:[%s505 + $0x668] sm:$0xff]
        %v866 = vld [vmem:[%s505 + $0x670] sm:$0xff]
        %v867 = vld [vmem:[%s505 + $0x678] sm:$0xff]
        %v868 = vld [vmem:[%s505 + $0x680] sm:$0xff]
        %v869 = vld [vmem:[%s505 + $0x688] sm:$0xff]
        %v870 = vld [vmem:[%s505 + $0x690] sm:$0xff]
        %v871 = vld [vmem:[%s505 + $0x698] sm:$0xff]
        %v872 = vld [vmem:[%s505 + $0x6a0] sm:$0xff]
        %v873 = vld [vmem:[%s505 + $0x6a8] sm:$0xff]
        %v874 = vld [vmem:[%s505 + $0x6b0] sm:$0xff]
        %v875 = vld [vmem:[%s505 + $0x6b8] sm:$0xff]
        %v876 = vld [vmem:[%s505 + $0x6c0] sm:$0xff]
        %v877 = vld [vmem:[%s505 + $0x6c8] sm:$0xff]
        %v878 = vld [vmem:[%s505 + $0x6d0] sm:$0xff]
        %v879 = vld [vmem:[%s505 + $0x6d8] sm:$0xff]
        %v880 = vld [vmem:[%s505 + $0x6e0] sm:$0xff]
        %v881 = vld [vmem:[%s505 + $0x6e8] sm:$0xff]
        %v882 = vld [vmem:[%s505 + $0x6f0] sm:$0xff]
        %v883 = vld [vmem:[%s505 + $0x6f8] sm:$0xff]
        %v884 = vld [vmem:[%s505 + $0x700] sm:$0xff]
        %v885 = vld [vmem:[%s505 + $0x708] sm:$0xff]
        %v886 = vld [vmem:[%s505 + $0x710] sm:$0xff]
        %v887 = vld [vmem:[%s505 + $0x718] sm:$0xff]
        %v888 = vld [vmem:[%s505 + $0x720] sm:$0xff]
        %v889 = vld [vmem:[%s505 + $0x728] sm:$0xff]
        %v890 = vld [vmem:[%s505 + $0x730] sm:$0xff]
        %v891 = vld [vmem:[%s505 + $0x738] sm:$0xff]
        %v892 = vld [vmem:[%s505 + $0x740] sm:$0xff]
        %v893 = vld [vmem:[%s505 + $0x748] sm:$0xff]
        %v894 = vld [vmem:[%s505 + $0x750] sm:$0xff]
        %v895 = vld [vmem:[%s505 + $0x758] sm:$0xff]
        %v896 = vld [vmem:[%s505 + $0x760] sm:$0xff]
        %v897 = vld [vmem:[%s505 + $0x768] sm:$0xff]
        %v898 = vld [vmem:[%s505 + $0x770] sm:$0xff]
        %v899 = vld [vmem:[%s505 + $0x778] sm:$0xff]
        %v900 = vld [vmem:[%s505 + $0x780] sm:$0xff]
        %v901 = vld [vmem:[%s505 + $0x788] sm:$0xff]
        %v902 = vld [vmem:[%s505 + $0x790] sm:$0xff]
        %v903 = vld [vmem:[%s505 + $0x798] sm:$0xff]
        %v904 = vld [vmem:[%s505 + $0x7a0] sm:$0xff]
        %v905 = vld [vmem:[%s505 + $0x7a8] sm:$0xff]
        %v906 = vld [vmem:[%s505 + $0x7b0] sm:$0xff]
        %v907 = vld [vmem:[%s505 + $0x7b8] sm:$0xff]
        %v908 = vld [vmem:[%s505 + $0x7c0] sm:$0xff]
        %v909 = vld [vmem:[%s505 + $0x7c8] sm:$0xff]
        %v910 = vld [vmem:[%s505 + $0x7d0] sm:$0xff]
        %v911 = vld [vmem:[%s505 + $0x7d8] sm:$0xff]
        %v912 = vld [vmem:[%s505 + $0x7e0] sm:$0xff]
        %v913 = vld [vmem:[%s505 + $0x7e8] sm:$0xff]
        %v914 = vld [vmem:[%s505 + $0x7f0] sm:$0xff]
        %v915 = vld [vmem:[%s505 + $0x7f8] sm:$0xff]
        %v916 = vld [vmem:[%s505 + $0x800] sm:$0xff]
        %v917 = vld [vmem:[%s505 + $0x808] sm:$0xff]
        %v918 = vld [vmem:[%s505 + $0x810] sm:$0xff]
        %v919 = vld [vmem:[%s505 + $0x818] sm:$0xff]
        %v920 = vld [vmem:[%s505 + $0x820] sm:$0xff]
        %v921 = vld [vmem:[%s505 + $0x828] sm:$0xff]
        %v922 = vld [vmem:[%s505 + $0x830] sm:$0xff]
        %v923 = vld [vmem:[%s505 + $0x838] sm:$0xff]
        %v924 = vld [vmem:[%s505 + $0x840] sm:$0xff]
        %v925 = vld [vmem:[%s505 + $0x848] sm:$0xff]
        %v926 = vld [vmem:[%s505 + $0x850] sm:$0xff]
        %v927 = vld [vmem:[%s505 + $0x858] sm:$0xff]
        %v928 = vld [vmem:[%s505 + $0x860] sm:$0xff]
        %v929 = vld [vmem:[%s505 + $0x868] sm:$0xff]
        %v930 = vld [vmem:[%s505 + $0x870] sm:$0xff]
        %v931 = vld [vmem:[%s505 + $0x878] sm:$0xff]
        %v932 = vld [vmem:[%s505 + $0x880] sm:$0xff]
        %v933 = vld [vmem:[%s505 + $0x888] sm:$0xff]
        %v934 = vld [vmem:[%s505 + $0x890] sm:$0xff]
        %v935 = vld [vmem:[%s505 + $0x898] sm:$0xff]
        %v936 = vld [vmem:[%s505 + $0x8a0] sm:$0xff]
        %v937 = vld [vmem:[%s505 + $0x8a8] sm:$0xff]
        %v938 = vld [vmem:[%s505 + $0x8b0] sm:$0xff]
        %v939 = vld [vmem:[%s505 + $0x8b8] sm:$0xff]
        %v940 = vld [vmem:[%s505 + $0x8c0] sm:$0xff]
        %v941 = vld [vmem:[%s505 + $0x8c8] sm:$0xff]
        %v942 = vld [vmem:[%s505 + $0x8d0] sm:$0xff]
        %v943 = vld [vmem:[%s505 + $0x8d8] sm:$0xff]
        %v944 = vld [vmem:[%s505 + $0x8e0] sm:$0xff]
        %v945 = vld [vmem:[%s505 + $0x8e8] sm:$0xff]
        %v946 = vld [vmem:[%s505 + $0x8f0] sm:$0xff]
        %v947 = vld [vmem:[%s505 + $0x8f8] sm:$0xff]
        %v948 = vld [vmem:[%s505 + $0x900] sm:$0xff]
        %v949 = vld [vmem:[%s505 + $0x908] sm:$0xff]
        %v950 = vld [vmem:[%s505 + $0x910] sm:$0xff]
        %v951 = vld [vmem:[%s505 + $0x918] sm:$0xff]
        %v952 = vld [vmem:[%s505 + $0x920] sm:$0xff]
        %v953 = vld [vmem:[%s505 + $0x928] sm:$0xff]
        %v954 = vld [vmem:[%s505 + $0x930] sm:$0xff]
        %v955 = vld [vmem:[%s505 + $0x938] sm:$0xff]
        %v956 = vld [vmem:[%s505 + $0x940] sm:$0xff]
        %v957 = vld [vmem:[%s505 + $0x948] sm:$0xff]
        %v958 = vld [vmem:[%s505 + $0x950] sm:$0xff]
        %v959 = vld [vmem:[%s505 + $0x958] sm:$0xff]
        %v960 = vld [vmem:[%s505 + $0x960] sm:$0xff]
        %v961 = vld [vmem:[%s505 + $0x968] sm:$0xff]
        %v962 = vld [vmem:[%s505 + $0x970] sm:$0xff]
        %v963 = vld [vmem:[%s505 + $0x978] sm:$0xff]
        %v964 = vld [vmem:[%s505 + $0x980] sm:$0xff]
        %v965 = vld [vmem:[%s505 + $0x988] sm:$0xff]
        %v966 = vld [vmem:[%s505 + $0x990] sm:$0xff]
        %v967 = vld [vmem:[%s505 + $0x998] sm:$0xff]
        %v968 = vld [vmem:[%s505 + $0x9a0] sm:$0xff]
        %v969 = vld [vmem:[%s505 + $0x9a8] sm:$0xff]
        %v970 = vld [vmem:[%s505 + $0x9b0] sm:$0xff]
        %v971 = vld [vmem:[%s505 + $0x9b8] sm:$0xff]
        %v972 = vld [vmem:[%s505 + $0x9c0] sm:$0xff]
        %v973 = vld [vmem:[%s505 + $0x9c8] sm:$0xff]
        %v974 = vld [vmem:[%s505 + $0x9d0] sm:$0xff]
        %v975 = vld [vmem:[%s505 + $0x9d8] sm:$0xff]
        %v976 = vld [vmem:[%s505 + $0x9e0] sm:$0xff]
        %v977 = vld [vmem:[%s505 + $0x9e8] sm:$0xff]
        %v978 = vld [vmem:[%s505 + $0x9f0] sm:$0xff]
        %v979 = vld [vmem:[%s505 + $0x9f8] sm:$0xff]
        %v980 = vld [vmem:[%s505 + $0xa00] sm:$0xff]
        %v981 = vld [vmem:[%s505 + $0xa08] sm:$0xff]
        %v982 = vld [vmem:[%s505 + $0xa10] sm:$0xff]
        %v983 = vld [vmem:[%s505 + $0xa18] sm:$0xff]
        %v984 = vld [vmem:[%s505 + $0xa20] sm:$0xff]
        %v985 = vld [vmem:[%s505 + $0xa28] sm:$0xff]
        %v986 = vld [vmem:[%s505 + $0xa30] sm:$0xff]
        %v987 = vld [vmem:[%s505 + $0xa38] sm:$0xff]
        %v988 = vld [vmem:[%s505 + $0xa40] sm:$0xff]
        %v989 = vld [vmem:[%s505 + $0xa48] sm:$0xff]
        %v990 = vld [vmem:[%s505 + $0xa50] sm:$0xff]
        %v991 = vld [vmem:[%s505 + $0xa58] sm:$0xff]
        %v992 = vld [vmem:[%s505 + $0xa60] sm:$0xff]
        %v993 = vld [vmem:[%s505 + $0xa68] sm:$0xff]
        %v994 = vld [vmem:[%s505 + $0xa70] sm:$0xff]
        %v995 = vld [vmem:[%s505 + $0xa78] sm:$0xff]
        %v996 = vld [vmem:[%s505 + $0xa80] sm:$0xff]
        %v997 = vld [vmem:[%s505 + $0xa88] sm:$0xff]
        %v998 = vld [vmem:[%s505 + $0xa90] sm:$0xff]
        %v999 = vld [vmem:[%s505 + $0xa98] sm:$0xff]
        %v1000 = vld [vmem:[%s505 + $0xaa0] sm:$0xff]
        %v1001 = vld [vmem:[%s505 + $0xaa8] sm:$0xff]
        %v1002 = vld [vmem:[%s505 + $0xab0] sm:$0xff]
        %v1003 = vld [vmem:[%s505 + $0xab8] sm:$0xff]
        %v1004 = vld [vmem:[%s505 + $0xac0] sm:$0xff]
        %v1005 = vld [vmem:[%s505 + $0xac8] sm:$0xff]
        %v1006 = vld [vmem:[%s505 + $0xad0] sm:$0xff]
        %v1007 = vld [vmem:[%s505 + $0xad8] sm:$0xff]
        %v1008 = vld [vmem:[%s505 + $0xae0] sm:$0xff]
        %v1009 = vld [vmem:[%s505 + $0xae8] sm:$0xff]
        %v1010 = vld [vmem:[%s505 + $0xaf0] sm:$0xff]
        %v1011 = vld [vmem:[%s505 + $0xaf8] sm:$0xff]
        %v1012 = vld [vmem:[%s505 + $0xb00] sm:$0xff]
        %v1013 = vld [vmem:[%s505 + $0xb08] sm:$0xff]
        %v1014 = vld [vmem:[%s505 + $0xb10] sm:$0xff]
        %v1015 = vld [vmem:[%s505 + $0xb18] sm:$0xff]
        %v1016 = vld [vmem:[%s505 + $0xb20] sm:$0xff]
        %v1017 = vld [vmem:[%s505 + $0xb28] sm:$0xff]
        %v1018 = vld [vmem:[%s505 + $0xb30] sm:$0xff]
        %v1019 = vld [vmem:[%s505 + $0xb38] sm:$0xff]
        %v1020 = vld [vmem:[%s505 + $0xb40] sm:$0xff]
        %v1021 = vld [vmem:[%s505 + $0xb48] sm:$0xff]
        %v1022 = vld [vmem:[%s505 + $0xb50] sm:$0xff]
        %v1023 = vld [vmem:[%s505 + $0xb58] sm:$0xff]
        %v1024 = vld [vmem:[%s505 + $0xb60] sm:$0xff]
        %v1025 = vld [vmem:[%s505 + $0xb68] sm:$0xff]
        %v1026 = vld [vmem:[%s505 + $0xb70] sm:$0xff]
        %v1027 = vld [vmem:[%s505 + $0xb78] sm:$0xff]
        %v1028 = vld [vmem:[%s505 + $0xb80] sm:$0xff]
        %v1029 = vld [vmem:[%s505 + $0xb88] sm:$0xff]
        %v1030 = vld [vmem:[%s505 + $0xb90] sm:$0xff]
        %v1031 = vld [vmem:[%s505 + $0xb98] sm:$0xff]
        %v1032 = vld [vmem:[%s505 + $0xba0] sm:$0xff]
        %v1033 = vld [vmem:[%s505 + $0xba8] sm:$0xff]
        %v1034 = vld [vmem:[%s505 + $0xbb0] sm:$0xff]
        %v1035 = vld [vmem:[%s505 + $0xbb8] sm:$0xff]
        %v1036 = vld [vmem:[%s505 + $0xbc0] sm:$0xff]
        %v1037 = vld [vmem:[%s505 + $0xbc8] sm:$0xff]
        %v1038 = vld [vmem:[%s505 + $0xbd0] sm:$0xff]
        %v1039 = vld [vmem:[%s505 + $0xbd8] sm:$0xff]
        %v1040 = vld [vmem:[%s505 + $0xbe0] sm:$0xff]
        %v1041 = vld [vmem:[%s505 + $0xbe8] sm:$0xff]
        %v1042 = vld [vmem:[%s505 + $0xbf0] sm:$0xff]
        %v1043 = vld [vmem:[%s505 + $0xbf8] sm:$0xff]
        %v1044 = vld [vmem:[%s505 + $0xc00] sm:$0xff]
        %v1045 = vld [vmem:[%s505 + $0xc08] sm:$0xff]
        %v1046 = vld [vmem:[%s505 + $0xc10] sm:$0xff]
        %v1047 = vld [vmem:[%s505 + $0xc18] sm:$0xff]
        %v1048 = vld [vmem:[%s505 + $0xc20] sm:$0xff]
        %v1049 = vld [vmem:[%s505 + $0xc28] sm:$0xff]
        %v1050 = vld [vmem:[%s505 + $0xc30] sm:$0xff]
        %v1051 = vld [vmem:[%s505 + $0xc38] sm:$0xff]
        %v1052 = vld [vmem:[%s505 + $0xc40] sm:$0xff]
        %v1053 = vld [vmem:[%s505 + $0xc48] sm:$0xff]
        %v1054 = vld [vmem:[%s505 + $0xc50] sm:$0xff]
        %v1055 = vld [vmem:[%s505 + $0xc58] sm:$0xff]
        %v1056 = vld [vmem:[%s505 + $0xc60] sm:$0xff]
        %v1057 = vld [vmem:[%s505 + $0xc68] sm:$0xff]
        %v1058 = vld [vmem:[%s505 + $0xc70] sm:$0xff]
        %v1059 = vld [vmem:[%s505 + $0xc78] sm:$0xff]
        %v1060 = vld [vmem:[%s505 + $0xc80] sm:$0xff]
        %v1061 = vld [vmem:[%s505 + $0xc88] sm:$0xff]
        %v1062 = vld [vmem:[%s505 + $0xc90] sm:$0xff]
        %v1063 = vld [vmem:[%s505 + $0xc98] sm:$0xff]
        %v1064 = vld [vmem:[%s505 + $0xca0] sm:$0xff]
        %v1065 = vld [vmem:[%s505 + $0xca8] sm:$0xff]
        %v1066 = vld [vmem:[%s505 + $0xcb0] sm:$0xff]
        %v1067 = vld [vmem:[%s505 + $0xcb8] sm:$0xff]
        %v1068 = vld [vmem:[%s505 + $0xcc0] sm:$0xff]
        %v1069 = vld [vmem:[%s505 + $0xcc8] sm:$0xff]
        %v1070 = vld [vmem:[%s505 + $0xcd0] sm:$0xff]
        %v1071 = vld [vmem:[%s505 + $0xcd8] sm:$0xff]
        %v1072 = vld [vmem:[%s505 + $0xce0] sm:$0xff]
        %v1073 = vld [vmem:[%s505 + $0xce8] sm:$0xff]
        %v1074 = vld [vmem:[%s505 + $0xcf0] sm:$0xff]
        %v1075 = vld [vmem:[%s505 + $0xcf8] sm:$0xff]
        %v1076 = vld [vmem:[%s514] sm:$0xf]
        %v1078 = vlaneseq
        %v1079 = vshrl.u32 %v1078, 7
        %v1080 = vsub.s32 0, %v1079
        %v1081 = vrot.slane %v1076, %v1080
        %v1082 = vlaneseq
        %v1083 = vshrl.u32 %v1082, 7
        %v1084 = vsub.s32 1, %v1083
        %v1085 = vrot.slane %v1076, %v1084
        %v1086 = vlaneseq
        %v1087 = vshrl.u32 %v1086, 7
        %v1088 = vsub.s32 2, %v1087
        %v1089 = vrot.slane %v1076, %v1088
        %v1090 = vlaneseq
        %v1091 = vshrl.u32 %v1090, 7
        %v1092 = vsub.s32 3, %v1091
        %v1093 = vrot.slane %v1076, %v1092
        %v1514 = vunpack.c.l.b16 %v660
        %v1515 = vunpack.c.h.b16 %v660
        %v1516 = vunpack.c.l.b16 %v661
        %v1517 = vunpack.c.h.b16 %v661
        %v1518 = vunpack.c.l.b16 %v662
        %v1519 = vunpack.c.h.b16 %v662
        %v1520 = vunpack.c.l.b16 %v663
        %v1521 = vunpack.c.h.b16 %v663
        %v1522 = vunpack.c.l.b16 %v664
        %v1523 = vunpack.c.h.b16 %v664
        %v1524 = vunpack.c.l.b16 %v665
        %v1525 = vunpack.c.h.b16 %v665
        %v1526 = vunpack.c.l.b16 %v666
        %v1527 = vunpack.c.h.b16 %v666
        %v1528 = vunpack.c.l.b16 %v667
        %v1529 = vunpack.c.h.b16 %v667
        %v1530 = vunpack.c.l.b16 %v668
        %v1531 = vunpack.c.h.b16 %v668
        %v1532 = vunpack.c.l.b16 %v669
        %v1533 = vunpack.c.h.b16 %v669
        %v1534 = vunpack.c.l.b16 %v670
        %v1535 = vunpack.c.h.b16 %v670
        %v1536 = vunpack.c.l.b16 %v671
        %v1537 = vunpack.c.h.b16 %v671
        %v1538 = vunpack.c.l.b16 %v672
        %v1539 = vunpack.c.h.b16 %v672
        %v1540 = vunpack.c.l.b16 %v673
        %v1541 = vunpack.c.h.b16 %v673
        %v1542 = vunpack.c.l.b16 %v674
        %v1543 = vunpack.c.h.b16 %v674
        %v1544 = vunpack.c.l.b16 %v675
        %v1545 = vunpack.c.h.b16 %v675
        %v1546 = vunpack.c.l.b16 %v676
        %v1547 = vunpack.c.h.b16 %v676
        %v1548 = vunpack.c.l.b16 %v677
        %v1549 = vunpack.c.h.b16 %v677
        %v1550 = vunpack.c.l.b16 %v678
        %v1551 = vunpack.c.h.b16 %v678
        %v1552 = vunpack.c.l.b16 %v679
        %v1553 = vunpack.c.h.b16 %v679
        %v1554 = vunpack.c.l.b16 %v680
        %v1555 = vunpack.c.h.b16 %v680
        %v1556 = vunpack.c.l.b16 %v681
        %v1557 = vunpack.c.h.b16 %v681
        %v1558 = vunpack.c.l.b16 %v682
        %v1559 = vunpack.c.h.b16 %v682
        %v1560 = vunpack.c.l.b16 %v683
        %v1561 = vunpack.c.h.b16 %v683
        %v1562 = vunpack.c.l.b16 %v684
        %v1563 = vunpack.c.h.b16 %v684
        %v1564 = vunpack.c.l.b16 %v685
        %v1565 = vunpack.c.h.b16 %v685
        %v1566 = vunpack.c.l.b16 %v686
        %v1567 = vunpack.c.h.b16 %v686
        %v1568 = vunpack.c.l.b16 %v687
        %v1569 = vunpack.c.h.b16 %v687
        %v1570 = vunpack.c.l.b16 %v688
        %v1571 = vunpack.c.h.b16 %v688
        %v1572 = vunpack.c.l.b16 %v689
        %v1573 = vunpack.c.h.b16 %v689
        %v1574 = vunpack.c.l.b16 %v690
        %v1575 = vunpack.c.h.b16 %v690
        %v1576 = vunpack.c.l.b16 %v691
        %v1577 = vunpack.c.h.b16 %v691
        %v1578 = vunpack.c.l.b16 %v692
        %v1579 = vunpack.c.h.b16 %v692
        %v1580 = vunpack.c.l.b16 %v693
        %v1581 = vunpack.c.h.b16 %v693
        %v1582 = vunpack.c.l.b16 %v694
        %v1583 = vunpack.c.h.b16 %v694
        %v1584 = vunpack.c.l.b16 %v695
        %v1585 = vunpack.c.h.b16 %v695
        %v1586 = vunpack.c.l.b16 %v696
        %v1587 = vunpack.c.h.b16 %v696
        %v1588 = vunpack.c.l.b16 %v697
        %v1589 = vunpack.c.h.b16 %v697
        %v1590 = vunpack.c.l.b16 %v698
        %v1591 = vunpack.c.h.b16 %v698
        %v1592 = vunpack.c.l.b16 %v699
        %v1593 = vunpack.c.h.b16 %v699
        %v1594 = vunpack.c.l.b16 %v700
        %v1595 = vunpack.c.h.b16 %v700
        %v1596 = vunpack.c.l.b16 %v701
        %v1597 = vunpack.c.h.b16 %v701
        %v1598 = vunpack.c.l.b16 %v702
        %v1599 = vunpack.c.h.b16 %v702
        %v1600 = vunpack.c.l.b16 %v703
        %v1601 = vunpack.c.h.b16 %v703
        %v1602 = vunpack.c.l.b16 %v704
        %v1603 = vunpack.c.h.b16 %v704
        %v1604 = vunpack.c.l.b16 %v705
        %v1605 = vunpack.c.h.b16 %v705
        %v1606 = vunpack.c.l.b16 %v706
        %v1607 = vunpack.c.h.b16 %v706
        %v1608 = vunpack.c.l.b16 %v707
        %v1609 = vunpack.c.h.b16 %v707
        %v1610 = vunpack.c.l.b16 %v708
        %v1611 = vunpack.c.h.b16 %v708
        %v1612 = vunpack.c.l.b16 %v709
        %v1613 = vunpack.c.h.b16 %v709
        %v1614 = vunpack.c.l.b16 %v710
        %v1615 = vunpack.c.h.b16 %v710
        %v1616 = vunpack.c.l.b16 %v711
        %v1617 = vunpack.c.h.b16 %v711
        %v1618 = vunpack.c.l.b16 %v712
        %v1619 = vunpack.c.h.b16 %v712
        %v1620 = vunpack.c.l.b16 %v713
        %v1621 = vunpack.c.h.b16 %v713
        %v1622 = vunpack.c.l.b16 %v714
        %v1623 = vunpack.c.h.b16 %v714
        %v1624 = vunpack.c.l.b16 %v715
        %v1625 = vunpack.c.h.b16 %v715
        %v1626 = vunpack.c.l.b16 %v716
        %v1627 = vunpack.c.h.b16 %v716
        %v1628 = vunpack.c.l.b16 %v717
        %v1629 = vunpack.c.h.b16 %v717
        %v1630 = vunpack.c.l.b16 %v718
        %v1631 = vunpack.c.h.b16 %v718
        %v1632 = vunpack.c.l.b16 %v719
        %v1633 = vunpack.c.h.b16 %v719
        %v1634 = vunpack.c.l.b16 %v720
        %v1635 = vunpack.c.h.b16 %v720
        %v1636 = vunpack.c.l.b16 %v721
        %v1637 = vunpack.c.h.b16 %v721
        %v1638 = vunpack.c.l.b16 %v722
        %v1639 = vunpack.c.h.b16 %v722
        %v1640 = vunpack.c.l.b16 %v723
        %v1641 = vunpack.c.h.b16 %v723
        %v1642 = vunpack.c.l.b16 %v724
        %v1643 = vunpack.c.h.b16 %v724
        %v1644 = vunpack.c.l.b16 %v725
        %v1645 = vunpack.c.h.b16 %v725
        %v1646 = vunpack.c.l.b16 %v726
        %v1647 = vunpack.c.h.b16 %v726
        %v1648 = vunpack.c.l.b16 %v727
        %v1649 = vunpack.c.h.b16 %v727
        %v1650 = vunpack.c.l.b16 %v728
        %v1651 = vunpack.c.h.b16 %v728
        %v1652 = vunpack.c.l.b16 %v729
        %v1653 = vunpack.c.h.b16 %v729
        %v1654 = vunpack.c.l.b16 %v730
        %v1655 = vunpack.c.h.b16 %v730
        %v1656 = vunpack.c.l.b16 %v731
        %v1657 = vunpack.c.h.b16 %v731
        %v1658 = vunpack.c.l.b16 %v732
        %v1659 = vunpack.c.h.b16 %v732
        %v1660 = vunpack.c.l.b16 %v733
        %v1661 = vunpack.c.h.b16 %v733
        %v1662 = vunpack.c.l.b16 %v734
        %v1663 = vunpack.c.h.b16 %v734
        %v1664 = vunpack.c.l.b16 %v735
        %v1665 = vunpack.c.h.b16 %v735
        %v1666 = vunpack.c.l.b16 %v736
        %v1667 = vunpack.c.h.b16 %v736
        %v1668 = vunpack.c.l.b16 %v737
        %v1669 = vunpack.c.h.b16 %v737
        %v1670 = vunpack.c.l.b16 %v738
        %v1671 = vunpack.c.h.b16 %v738
        %v1672 = vunpack.c.l.b16 %v739
        %v1673 = vunpack.c.h.b16 %v739
        %v1674 = vunpack.c.l.b16 %v740
        %v1675 = vunpack.c.h.b16 %v740
        %v1676 = vunpack.c.l.b16 %v741
        %v1677 = vunpack.c.h.b16 %v741
        %v1678 = vunpack.c.l.b16 %v742
        %v1679 = vunpack.c.h.b16 %v742
        %v1680 = vunpack.c.l.b16 %v743
        %v1681 = vunpack.c.h.b16 %v743
        %v1682 = vunpack.c.l.b16 %v744
        %v1683 = vunpack.c.h.b16 %v744
        %v1684 = vunpack.c.l.b16 %v745
        %v1685 = vunpack.c.h.b16 %v745
        %v1686 = vunpack.c.l.b16 %v746
        %v1687 = vunpack.c.h.b16 %v746
        %v1688 = vunpack.c.l.b16 %v747
        %v1689 = vunpack.c.h.b16 %v747
        %v1690 = vunpack.c.l.b16 %v748
        %v1691 = vunpack.c.h.b16 %v748
        %v1692 = vunpack.c.l.b16 %v749
        %v1693 = vunpack.c.h.b16 %v749
        %v1694 = vunpack.c.l.b16 %v750
        %v1695 = vunpack.c.h.b16 %v750
        %v1696 = vunpack.c.l.b16 %v751
        %v1697 = vunpack.c.h.b16 %v751
        %v1698 = vunpack.c.l.b16 %v752
        %v1699 = vunpack.c.h.b16 %v752
        %v1700 = vunpack.c.l.b16 %v753
        %v1701 = vunpack.c.h.b16 %v753
        %v1702 = vunpack.c.l.b16 %v754
        %v1703 = vunpack.c.h.b16 %v754
        %v1704 = vunpack.c.l.b16 %v755
        %v1705 = vunpack.c.h.b16 %v755
        %v1706 = vunpack.c.l.b16 %v756
        %v1707 = vunpack.c.h.b16 %v756
        %v1708 = vunpack.c.l.b16 %v757
        %v1709 = vunpack.c.h.b16 %v757
        %v1710 = vunpack.c.l.b16 %v758
        %v1711 = vunpack.c.h.b16 %v758
        %v1712 = vunpack.c.l.b16 %v759
        %v1713 = vunpack.c.h.b16 %v759
        %v1714 = vunpack.c.l.b16 %v760
        %v1715 = vunpack.c.h.b16 %v760
        %v1716 = vunpack.c.l.b16 %v761
        %v1717 = vunpack.c.h.b16 %v761
        %v1718 = vunpack.c.l.b16 %v762
        %v1719 = vunpack.c.h.b16 %v762
        %v1720 = vunpack.c.l.b16 %v763
        %v1721 = vunpack.c.h.b16 %v763
        %v1722 = vunpack.c.l.b16 %v764
        %v1723 = vunpack.c.h.b16 %v764
        %v1724 = vunpack.c.l.b16 %v765
        %v1725 = vunpack.c.h.b16 %v765
        %v1726 = vunpack.c.l.b16 %v766
        %v1727 = vunpack.c.h.b16 %v766
        %v1728 = vunpack.c.l.b16 %v767
        %v1729 = vunpack.c.h.b16 %v767
        %v1730 = vunpack.c.l.b16 %v768
        %v1731 = vunpack.c.h.b16 %v768
        %v1732 = vunpack.c.l.b16 %v769
        %v1733 = vunpack.c.h.b16 %v769
        %v1734 = vunpack.c.l.b16 %v770
        %v1735 = vunpack.c.h.b16 %v770
        %v1736 = vunpack.c.l.b16 %v771
        %v1737 = vunpack.c.h.b16 %v771
        %v1738 = vunpack.c.l.b16 %v772
        %v1739 = vunpack.c.h.b16 %v772
        %v1740 = vunpack.c.l.b16 %v773
        %v1741 = vunpack.c.h.b16 %v773
        %v1742 = vunpack.c.l.b16 %v774
        %v1743 = vunpack.c.h.b16 %v774
        %v1744 = vunpack.c.l.b16 %v775
        %v1745 = vunpack.c.h.b16 %v775
        %v1746 = vunpack.c.l.b16 %v776
        %v1747 = vunpack.c.h.b16 %v776
        %v1748 = vunpack.c.l.b16 %v777
        %v1749 = vunpack.c.h.b16 %v777
        %v1750 = vunpack.c.l.b16 %v778
        %v1751 = vunpack.c.h.b16 %v778
        %v1752 = vunpack.c.l.b16 %v779
        %v1753 = vunpack.c.h.b16 %v779
        %v1754 = vunpack.c.l.b16 %v780
        %v1755 = vunpack.c.h.b16 %v780
        %v1756 = vunpack.c.l.b16 %v781
        %v1757 = vunpack.c.h.b16 %v781
        %v1758 = vunpack.c.l.b16 %v782
        %v1759 = vunpack.c.h.b16 %v782
        %v1760 = vunpack.c.l.b16 %v783
        %v1761 = vunpack.c.h.b16 %v783
        %v1762 = vunpack.c.l.b16 %v784
        %v1763 = vunpack.c.h.b16 %v784
        %v1764 = vunpack.c.l.b16 %v785
        %v1765 = vunpack.c.h.b16 %v785
        %v1766 = vunpack.c.l.b16 %v786
        %v1767 = vunpack.c.h.b16 %v786
        %v1768 = vunpack.c.l.b16 %v787
        %v1769 = vunpack.c.h.b16 %v787
        %v1770 = vunpack.c.l.b16 %v788
        %v1771 = vunpack.c.h.b16 %v788
        %v1772 = vunpack.c.l.b16 %v789
        %v1773 = vunpack.c.h.b16 %v789
        %v1774 = vunpack.c.l.b16 %v790
        %v1775 = vunpack.c.h.b16 %v790
        %v1776 = vunpack.c.l.b16 %v791
        %v1777 = vunpack.c.h.b16 %v791
        %v1778 = vunpack.c.l.b16 %v792
        %v1779 = vunpack.c.h.b16 %v792
        %v1780 = vunpack.c.l.b16 %v793
        %v1781 = vunpack.c.h.b16 %v793
        %v1782 = vunpack.c.l.b16 %v794
        %v1783 = vunpack.c.h.b16 %v794
        %v1784 = vunpack.c.l.b16 %v795
        %v1785 = vunpack.c.h.b16 %v795
        %v1786 = vunpack.c.l.b16 %v796
        %v1787 = vunpack.c.h.b16 %v796
        %v1788 = vunpack.c.l.b16 %v797
        %v1789 = vunpack.c.h.b16 %v797
        %v1790 = vunpack.c.l.b16 %v798
        %v1791 = vunpack.c.h.b16 %v798
        %v1792 = vunpack.c.l.b16 %v799
        %v1793 = vunpack.c.h.b16 %v799
        %v1794 = vunpack.c.l.b16 %v800
        %v1795 = vunpack.c.h.b16 %v800
        %v1796 = vunpack.c.l.b16 %v801
        %v1797 = vunpack.c.h.b16 %v801
        %v1798 = vunpack.c.l.b16 %v802
        %v1799 = vunpack.c.h.b16 %v802
        %v1800 = vunpack.c.l.b16 %v803
        %v1801 = vunpack.c.h.b16 %v803
        %v1802 = vunpack.c.l.b16 %v804
        %v1803 = vunpack.c.h.b16 %v804
        %v1804 = vunpack.c.l.b16 %v805
        %v1805 = vunpack.c.h.b16 %v805
        %v1806 = vunpack.c.l.b16 %v806
        %v1807 = vunpack.c.h.b16 %v806
        %v1808 = vunpack.c.l.b16 %v807
        %v1809 = vunpack.c.h.b16 %v807
        %v1810 = vunpack.c.l.b16 %v808
        %v1811 = vunpack.c.h.b16 %v808
        %v1812 = vunpack.c.l.b16 %v809
        %v1813 = vunpack.c.h.b16 %v809
        %v1814 = vunpack.c.l.b16 %v810
        %v1815 = vunpack.c.h.b16 %v810
        %v1816 = vunpack.c.l.b16 %v811
        %v1817 = vunpack.c.h.b16 %v811
        %v1818 = vunpack.c.l.b16 %v812
        %v1819 = vunpack.c.h.b16 %v812
        %v1820 = vunpack.c.l.b16 %v813
        %v1821 = vunpack.c.h.b16 %v813
        %v1822 = vunpack.c.l.b16 %v814
        %v1823 = vunpack.c.h.b16 %v814
        %v1824 = vunpack.c.l.b16 %v815
        %v1825 = vunpack.c.h.b16 %v815
        %v1826 = vunpack.c.l.b16 %v816
        %v1827 = vunpack.c.h.b16 %v816
        %v1828 = vunpack.c.l.b16 %v817
        %v1829 = vunpack.c.h.b16 %v817
        %v1830 = vunpack.c.l.b16 %v818
        %v1831 = vunpack.c.h.b16 %v818
        %v1832 = vunpack.c.l.b16 %v819
        %v1833 = vunpack.c.h.b16 %v819
        %v1834 = vunpack.c.l.b16 %v820
        %v1835 = vunpack.c.h.b16 %v820
        %v1836 = vunpack.c.l.b16 %v821
        %v1837 = vunpack.c.h.b16 %v821
        %v1838 = vunpack.c.l.b16 %v822
        %v1839 = vunpack.c.h.b16 %v822
        %v1840 = vunpack.c.l.b16 %v823
        %v1841 = vunpack.c.h.b16 %v823
        %v1842 = vunpack.c.l.b16 %v824
        %v1843 = vunpack.c.h.b16 %v824
        %v1844 = vunpack.c.l.b16 %v825
        %v1845 = vunpack.c.h.b16 %v825
        %v1846 = vunpack.c.l.b16 %v826
        %v1847 = vunpack.c.h.b16 %v826
        %v1848 = vunpack.c.l.b16 %v827
        %v1849 = vunpack.c.h.b16 %v827
        %v1850 = vunpack.c.l.b16 %v828
        %v1851 = vunpack.c.h.b16 %v828
        %v1852 = vunpack.c.l.b16 %v829
        %v1853 = vunpack.c.h.b16 %v829
        %v1854 = vunpack.c.l.b16 %v830
        %v1855 = vunpack.c.h.b16 %v830
        %v1856 = vunpack.c.l.b16 %v831
        %v1857 = vunpack.c.h.b16 %v831
        %v1858 = vunpack.c.l.b16 %v832
        %v1859 = vunpack.c.h.b16 %v832
        %v1860 = vunpack.c.l.b16 %v833
        %v1861 = vunpack.c.h.b16 %v833
        %v1862 = vunpack.c.l.b16 %v834
        %v1863 = vunpack.c.h.b16 %v834
        %v1864 = vunpack.c.l.b16 %v835
        %v1865 = vunpack.c.h.b16 %v835
        %v1866 = vunpack.c.l.b16 %v836
        %v1867 = vunpack.c.h.b16 %v836
        %v1868 = vunpack.c.l.b16 %v837
        %v1869 = vunpack.c.h.b16 %v837
        %v1870 = vunpack.c.l.b16 %v838
        %v1871 = vunpack.c.h.b16 %v838
        %v1872 = vunpack.c.l.b16 %v839
        %v1873 = vunpack.c.h.b16 %v839
        %v1874 = vunpack.c.l.b16 %v840
        %v1875 = vunpack.c.h.b16 %v840
        %v1876 = vunpack.c.l.b16 %v841
        %v1877 = vunpack.c.h.b16 %v841
        %v1878 = vunpack.c.l.b16 %v842
        %v1879 = vunpack.c.h.b16 %v842
        %v1880 = vunpack.c.l.b16 %v843
        %v1881 = vunpack.c.h.b16 %v843
        %v1882 = vunpack.c.l.b16 %v844
        %v1883 = vunpack.c.h.b16 %v844
        %v1884 = vunpack.c.l.b16 %v845
        %v1885 = vunpack.c.h.b16 %v845
        %v1886 = vunpack.c.l.b16 %v846
        %v1887 = vunpack.c.h.b16 %v846
        %v1888 = vunpack.c.l.b16 %v847
        %v1889 = vunpack.c.h.b16 %v847
        %v1890 = vunpack.c.l.b16 %v848
        %v1891 = vunpack.c.h.b16 %v848
        %v1892 = vunpack.c.l.b16 %v849
        %v1893 = vunpack.c.h.b16 %v849
        %v1894 = vunpack.c.l.b16 %v850
        %v1895 = vunpack.c.h.b16 %v850
        %v1896 = vunpack.c.l.b16 %v851
        %v1897 = vunpack.c.h.b16 %v851
        %v1898 = vunpack.c.l.b16 %v852
        %v1899 = vunpack.c.h.b16 %v852
        %v1900 = vunpack.c.l.b16 %v853
        %v1901 = vunpack.c.h.b16 %v853
        %v1902 = vunpack.c.l.b16 %v854
        %v1903 = vunpack.c.h.b16 %v854
        %v1904 = vunpack.c.l.b16 %v855
        %v1905 = vunpack.c.h.b16 %v855
        %v1906 = vunpack.c.l.b16 %v856
        %v1907 = vunpack.c.h.b16 %v856
        %v1908 = vunpack.c.l.b16 %v857
        %v1909 = vunpack.c.h.b16 %v857
        %v1910 = vunpack.c.l.b16 %v858
        %v1911 = vunpack.c.h.b16 %v858
        %v1912 = vunpack.c.l.b16 %v859
        %v1913 = vunpack.c.h.b16 %v859
        %v1914 = vunpack.c.l.b16 %v860
        %v1915 = vunpack.c.h.b16 %v860
        %v1916 = vunpack.c.l.b16 %v861
        %v1917 = vunpack.c.h.b16 %v861
        %v1918 = vunpack.c.l.b16 %v862
        %v1919 = vunpack.c.h.b16 %v862
        %v1920 = vunpack.c.l.b16 %v863
        %v1921 = vunpack.c.h.b16 %v863
        %v1922 = vunpack.c.l.b16 %v864
        %v1923 = vunpack.c.h.b16 %v864
        %v1924 = vunpack.c.l.b16 %v865
        %v1925 = vunpack.c.h.b16 %v865
        %v1926 = vunpack.c.l.b16 %v866
        %v1927 = vunpack.c.h.b16 %v866
        %v1928 = vunpack.c.l.b16 %v867
        %v1929 = vunpack.c.h.b16 %v867
        %v1930 = vunpack.c.l.b16 %v868
        %v1931 = vunpack.c.h.b16 %v868
        %v1932 = vunpack.c.l.b16 %v869
        %v1933 = vunpack.c.h.b16 %v869
        %v1934 = vunpack.c.l.b16 %v870
        %v1935 = vunpack.c.h.b16 %v870
        %v1936 = vunpack.c.l.b16 %v871
        %v1937 = vunpack.c.h.b16 %v871
        %v1938 = vunpack.c.l.b16 %v872
        %v1939 = vunpack.c.h.b16 %v872
        %v1940 = vunpack.c.l.b16 %v873
        %v1941 = vunpack.c.h.b16 %v873
        %v1942 = vunpack.c.l.b16 %v874
        %v1943 = vunpack.c.h.b16 %v874
        %v1944 = vunpack.c.l.b16 %v875
        %v1945 = vunpack.c.h.b16 %v875
        %v1946 = vunpack.c.l.b16 %v876
        %v1947 = vunpack.c.h.b16 %v876
        %v1948 = vunpack.c.l.b16 %v877
        %v1949 = vunpack.c.h.b16 %v877
        %v1950 = vunpack.c.l.b16 %v878
        %v1951 = vunpack.c.h.b16 %v878
        %v1952 = vunpack.c.l.b16 %v879
        %v1953 = vunpack.c.h.b16 %v879
        %v1954 = vunpack.c.l.b16 %v880
        %v1955 = vunpack.c.h.b16 %v880
        %v1956 = vunpack.c.l.b16 %v881
        %v1957 = vunpack.c.h.b16 %v881
        %v1958 = vunpack.c.l.b16 %v882
        %v1959 = vunpack.c.h.b16 %v882
        %v1960 = vunpack.c.l.b16 %v883
        %v1961 = vunpack.c.h.b16 %v883
        %v1962 = vunpack.c.l.b16 %v884
        %v1963 = vunpack.c.h.b16 %v884
        %v1964 = vunpack.c.l.b16 %v885
        %v1965 = vunpack.c.h.b16 %v885
        %v1966 = vunpack.c.l.b16 %v886
        %v1967 = vunpack.c.h.b16 %v886
        %v1968 = vunpack.c.l.b16 %v887
        %v1969 = vunpack.c.h.b16 %v887
        %v1970 = vunpack.c.l.b16 %v888
        %v1971 = vunpack.c.h.b16 %v888
        %v1972 = vunpack.c.l.b16 %v889
        %v1973 = vunpack.c.h.b16 %v889
        %v1974 = vunpack.c.l.b16 %v890
        %v1975 = vunpack.c.h.b16 %v890
        %v1976 = vunpack.c.l.b16 %v891
        %v1977 = vunpack.c.h.b16 %v891
        %v1978 = vunpack.c.l.b16 %v892
        %v1979 = vunpack.c.h.b16 %v892
        %v1980 = vunpack.c.l.b16 %v893
        %v1981 = vunpack.c.h.b16 %v893
        %v1982 = vunpack.c.l.b16 %v894
        %v1983 = vunpack.c.h.b16 %v894
        %v1984 = vunpack.c.l.b16 %v895
        %v1985 = vunpack.c.h.b16 %v895
        %v1986 = vunpack.c.l.b16 %v896
        %v1987 = vunpack.c.h.b16 %v896
        %v1988 = vunpack.c.l.b16 %v897
        %v1989 = vunpack.c.h.b16 %v897
        %v1990 = vunpack.c.l.b16 %v898
        %v1991 = vunpack.c.h.b16 %v898
        %v1992 = vunpack.c.l.b16 %v899
        %v1993 = vunpack.c.h.b16 %v899
        %v1994 = vunpack.c.l.b16 %v900
        %v1995 = vunpack.c.h.b16 %v900
        %v1996 = vunpack.c.l.b16 %v901
        %v1997 = vunpack.c.h.b16 %v901
        %v1998 = vunpack.c.l.b16 %v902
        %v1999 = vunpack.c.h.b16 %v902
        %v2000 = vunpack.c.l.b16 %v903
        %v2001 = vunpack.c.h.b16 %v903
        %v2002 = vunpack.c.l.b16 %v904
        %v2003 = vunpack.c.h.b16 %v904
        %v2004 = vunpack.c.l.b16 %v905
        %v2005 = vunpack.c.h.b16 %v905
        %v2006 = vunpack.c.l.b16 %v906
        %v2007 = vunpack.c.h.b16 %v906
        %v2008 = vunpack.c.l.b16 %v907
        %v2009 = vunpack.c.h.b16 %v907
        %v2010 = vunpack.c.l.b16 %v908
        %v2011 = vunpack.c.h.b16 %v908
        %v2012 = vunpack.c.l.b16 %v909
        %v2013 = vunpack.c.h.b16 %v909
        %v2014 = vunpack.c.l.b16 %v910
        %v2015 = vunpack.c.h.b16 %v910
        %v2016 = vunpack.c.l.b16 %v911
        %v2017 = vunpack.c.h.b16 %v911
        %v2018 = vunpack.c.l.b16 %v912
        %v2019 = vunpack.c.h.b16 %v912
        %v2020 = vunpack.c.l.b16 %v913
        %v2021 = vunpack.c.h.b16 %v913
        %v2022 = vunpack.c.l.b16 %v914
        %v2023 = vunpack.c.h.b16 %v914
        %v2024 = vunpack.c.l.b16 %v915
        %v2025 = vunpack.c.h.b16 %v915
        %v2026 = vunpack.c.l.b16 %v916
        %v2027 = vunpack.c.h.b16 %v916
        %v2028 = vunpack.c.l.b16 %v917
        %v2029 = vunpack.c.h.b16 %v917
        %v2030 = vunpack.c.l.b16 %v918
        %v2031 = vunpack.c.h.b16 %v918
        %v2032 = vunpack.c.l.b16 %v919
        %v2033 = vunpack.c.h.b16 %v919
        %v2034 = vunpack.c.l.b16 %v920
        %v2035 = vunpack.c.h.b16 %v920
        %v2036 = vunpack.c.l.b16 %v921
        %v2037 = vunpack.c.h.b16 %v921
        %v2038 = vunpack.c.l.b16 %v922
        %v2039 = vunpack.c.h.b16 %v922
        %v2040 = vunpack.c.l.b16 %v923
        %v2041 = vunpack.c.h.b16 %v923
        %v2042 = vunpack.c.l.b16 %v924
        %v2043 = vunpack.c.h.b16 %v924
        %v2044 = vunpack.c.l.b16 %v925
        %v2045 = vunpack.c.h.b16 %v925
        %v2046 = vunpack.c.l.b16 %v926
        %v2047 = vunpack.c.h.b16 %v926
        %v2048 = vunpack.c.l.b16 %v927
        %v2049 = vunpack.c.h.b16 %v927
        %v2050 = vunpack.c.l.b16 %v928
        %v2051 = vunpack.c.h.b16 %v928
        %v2052 = vunpack.c.l.b16 %v929
        %v2053 = vunpack.c.h.b16 %v929
        %v2054 = vunpack.c.l.b16 %v930
        %v2055 = vunpack.c.h.b16 %v930
        %v2056 = vunpack.c.l.b16 %v931
        %v2057 = vunpack.c.h.b16 %v931
        %v2058 = vunpack.c.l.b16 %v932
        %v2059 = vunpack.c.h.b16 %v932
        %v2060 = vunpack.c.l.b16 %v933
        %v2061 = vunpack.c.h.b16 %v933
        %v2062 = vunpack.c.l.b16 %v934
        %v2063 = vunpack.c.h.b16 %v934
        %v2064 = vunpack.c.l.b16 %v935
        %v2065 = vunpack.c.h.b16 %v935
        %v2066 = vunpack.c.l.b16 %v936
        %v2067 = vunpack.c.h.b16 %v936
        %v2068 = vunpack.c.l.b16 %v937
        %v2069 = vunpack.c.h.b16 %v937
        %v2070 = vunpack.c.l.b16 %v938
        %v2071 = vunpack.c.h.b16 %v938
        %v2072 = vunpack.c.l.b16 %v939
        %v2073 = vunpack.c.h.b16 %v939
        %v2074 = vunpack.c.l.b16 %v940
        %v2075 = vunpack.c.h.b16 %v940
        %v2076 = vunpack.c.l.b16 %v941
        %v2077 = vunpack.c.h.b16 %v941
        %v2078 = vunpack.c.l.b16 %v942
        %v2079 = vunpack.c.h.b16 %v942
        %v2080 = vunpack.c.l.b16 %v943
        %v2081 = vunpack.c.h.b16 %v943
        %v2082 = vunpack.c.l.b16 %v944
        %v2083 = vunpack.c.h.b16 %v944
        %v2084 = vunpack.c.l.b16 %v945
        %v2085 = vunpack.c.h.b16 %v945
        %v2086 = vunpack.c.l.b16 %v946
        %v2087 = vunpack.c.h.b16 %v946
        %v2088 = vunpack.c.l.b16 %v947
        %v2089 = vunpack.c.h.b16 %v947
        %v2090 = vunpack.c.l.b16 %v948
        %v2091 = vunpack.c.h.b16 %v948
        %v2092 = vunpack.c.l.b16 %v949
        %v2093 = vunpack.c.h.b16 %v949
        %v2094 = vunpack.c.l.b16 %v950
        %v2095 = vunpack.c.h.b16 %v950
        %v2096 = vunpack.c.l.b16 %v951
        %v2097 = vunpack.c.h.b16 %v951
        %v2098 = vunpack.c.l.b16 %v952
        %v2099 = vunpack.c.h.b16 %v952
        %v2100 = vunpack.c.l.b16 %v953
        %v2101 = vunpack.c.h.b16 %v953
        %v2102 = vunpack.c.l.b16 %v954
        %v2103 = vunpack.c.h.b16 %v954
        %v2104 = vunpack.c.l.b16 %v955
        %v2105 = vunpack.c.h.b16 %v955
        %v2106 = vunpack.c.l.b16 %v956
        %v2107 = vunpack.c.h.b16 %v956
        %v2108 = vunpack.c.l.b16 %v957
        %v2109 = vunpack.c.h.b16 %v957
        %v2110 = vunpack.c.l.b16 %v958
        %v2111 = vunpack.c.h.b16 %v958
        %v2112 = vunpack.c.l.b16 %v959
        %v2113 = vunpack.c.h.b16 %v959
        %v2114 = vunpack.c.l.b16 %v960
        %v2115 = vunpack.c.h.b16 %v960
        %v2116 = vunpack.c.l.b16 %v961
        %v2117 = vunpack.c.h.b16 %v961
        %v2118 = vunpack.c.l.b16 %v962
        %v2119 = vunpack.c.h.b16 %v962
        %v2120 = vunpack.c.l.b16 %v963
        %v2121 = vunpack.c.h.b16 %v963
        %v2122 = vunpack.c.l.b16 %v964
        %v2123 = vunpack.c.h.b16 %v964
        %v2124 = vunpack.c.l.b16 %v965
        %v2125 = vunpack.c.h.b16 %v965
        %v2126 = vunpack.c.l.b16 %v966
        %v2127 = vunpack.c.h.b16 %v966
        %v2128 = vunpack.c.l.b16 %v967
        %v2129 = vunpack.c.h.b16 %v967
        %v2130 = vunpack.c.l.b16 %v968
        %v2131 = vunpack.c.h.b16 %v968
        %v2132 = vunpack.c.l.b16 %v969
        %v2133 = vunpack.c.h.b16 %v969
        %v2134 = vunpack.c.l.b16 %v970
        %v2135 = vunpack.c.h.b16 %v970
        %v2136 = vunpack.c.l.b16 %v971
        %v2137 = vunpack.c.h.b16 %v971
        %v2138 = vunpack.c.l.b16 %v972
        %v2139 = vunpack.c.h.b16 %v972
        %v2140 = vunpack.c.l.b16 %v973
        %v2141 = vunpack.c.h.b16 %v973
        %v2142 = vunpack.c.l.b16 %v974
        %v2143 = vunpack.c.h.b16 %v974
        %v2144 = vunpack.c.l.b16 %v975
        %v2145 = vunpack.c.h.b16 %v975
        %v2146 = vunpack.c.l.b16 %v976
        %v2147 = vunpack.c.h.b16 %v976
        %v2148 = vunpack.c.l.b16 %v977
        %v2149 = vunpack.c.h.b16 %v977
        %v2150 = vunpack.c.l.b16 %v978
        %v2151 = vunpack.c.h.b16 %v978
        %v2152 = vunpack.c.l.b16 %v979
        %v2153 = vunpack.c.h.b16 %v979
        %v2154 = vunpack.c.l.b16 %v980
        %v2155 = vunpack.c.h.b16 %v980
        %v2156 = vunpack.c.l.b16 %v981
        %v2157 = vunpack.c.h.b16 %v981
        %v2158 = vunpack.c.l.b16 %v982
        %v2159 = vunpack.c.h.b16 %v982
        %v2160 = vunpack.c.l.b16 %v983
        %v2161 = vunpack.c.h.b16 %v983
        %v2162 = vunpack.c.l.b16 %v984
        %v2163 = vunpack.c.h.b16 %v984
        %v2164 = vunpack.c.l.b16 %v985
        %v2165 = vunpack.c.h.b16 %v985
        %v2166 = vunpack.c.l.b16 %v986
        %v2167 = vunpack.c.h.b16 %v986
        %v2168 = vunpack.c.l.b16 %v987
        %v2169 = vunpack.c.h.b16 %v987
        %v2170 = vunpack.c.l.b16 %v988
        %v2171 = vunpack.c.h.b16 %v988
        %v2172 = vunpack.c.l.b16 %v989
        %v2173 = vunpack.c.h.b16 %v989
        %v2174 = vunpack.c.l.b16 %v990
        %v2175 = vunpack.c.h.b16 %v990
        %v2176 = vunpack.c.l.b16 %v991
        %v2177 = vunpack.c.h.b16 %v991
        %v2178 = vunpack.c.l.b16 %v992
        %v2179 = vunpack.c.h.b16 %v992
        %v2180 = vunpack.c.l.b16 %v993
        %v2181 = vunpack.c.h.b16 %v993
        %v2182 = vunpack.c.l.b16 %v994
        %v2183 = vunpack.c.h.b16 %v994
        %v2184 = vunpack.c.l.b16 %v995
        %v2185 = vunpack.c.h.b16 %v995
        %v2186 = vunpack.c.l.b16 %v996
        %v2187 = vunpack.c.h.b16 %v996
        %v2188 = vunpack.c.l.b16 %v997
        %v2189 = vunpack.c.h.b16 %v997
        %v2190 = vunpack.c.l.b16 %v998
        %v2191 = vunpack.c.h.b16 %v998
        %v2192 = vunpack.c.l.b16 %v999
        %v2193 = vunpack.c.h.b16 %v999
        %v2194 = vunpack.c.l.b16 %v1000
        %v2195 = vunpack.c.h.b16 %v1000
        %v2196 = vunpack.c.l.b16 %v1001
        %v2197 = vunpack.c.h.b16 %v1001
        %v2198 = vunpack.c.l.b16 %v1002
        %v2199 = vunpack.c.h.b16 %v1002
        %v2200 = vunpack.c.l.b16 %v1003
        %v2201 = vunpack.c.h.b16 %v1003
        %v2202 = vunpack.c.l.b16 %v1004
        %v2203 = vunpack.c.h.b16 %v1004
        %v2204 = vunpack.c.l.b16 %v1005
        %v2205 = vunpack.c.h.b16 %v1005
        %v2206 = vunpack.c.l.b16 %v1006
        %v2207 = vunpack.c.h.b16 %v1006
        %v2208 = vunpack.c.l.b16 %v1007
        %v2209 = vunpack.c.h.b16 %v1007
        %v2210 = vunpack.c.l.b16 %v1008
        %v2211 = vunpack.c.h.b16 %v1008
        %v2212 = vunpack.c.l.b16 %v1009
        %v2213 = vunpack.c.h.b16 %v1009
        %v2214 = vunpack.c.l.b16 %v1010
        %v2215 = vunpack.c.h.b16 %v1010
        %v2216 = vunpack.c.l.b16 %v1011
        %v2217 = vunpack.c.h.b16 %v1011
        %v2218 = vunpack.c.l.b16 %v1012
        %v2219 = vunpack.c.h.b16 %v1012
        %v2220 = vunpack.c.l.b16 %v1013
        %v2221 = vunpack.c.h.b16 %v1013
        %v2222 = vunpack.c.l.b16 %v1014
        %v2223 = vunpack.c.h.b16 %v1014
        %v2224 = vunpack.c.l.b16 %v1015
        %v2225 = vunpack.c.h.b16 %v1015
        %v2226 = vunpack.c.l.b16 %v1016
        %v2227 = vunpack.c.h.b16 %v1016
        %v2228 = vunpack.c.l.b16 %v1017
        %v2229 = vunpack.c.h.b16 %v1017
        %v2230 = vunpack.c.l.b16 %v1018
        %v2231 = vunpack.c.h.b16 %v1018
        %v2232 = vunpack.c.l.b16 %v1019
        %v2233 = vunpack.c.h.b16 %v1019
        %v2234 = vunpack.c.l.b16 %v1020
        %v2235 = vunpack.c.h.b16 %v1020
        %v2236 = vunpack.c.l.b16 %v1021
        %v2237 = vunpack.c.h.b16 %v1021
        %v2238 = vunpack.c.l.b16 %v1022
        %v2239 = vunpack.c.h.b16 %v1022
        %v2240 = vunpack.c.l.b16 %v1023
        %v2241 = vunpack.c.h.b16 %v1023
        %v2242 = vunpack.c.l.b16 %v1024
        %v2243 = vunpack.c.h.b16 %v1024
        %v2244 = vunpack.c.l.b16 %v1025
        %v2245 = vunpack.c.h.b16 %v1025
        %v2246 = vunpack.c.l.b16 %v1026
        %v2247 = vunpack.c.h.b16 %v1026
        %v2248 = vunpack.c.l.b16 %v1027
        %v2249 = vunpack.c.h.b16 %v1027
        %v2250 = vunpack.c.l.b16 %v1028
        %v2251 = vunpack.c.h.b16 %v1028
        %v2252 = vunpack.c.l.b16 %v1029
        %v2253 = vunpack.c.h.b16 %v1029
        %v2254 = vunpack.c.l.b16 %v1030
        %v2255 = vunpack.c.h.b16 %v1030
        %v2256 = vunpack.c.l.b16 %v1031
        %v2257 = vunpack.c.h.b16 %v1031
        %v2258 = vunpack.c.l.b16 %v1032
        %v2259 = vunpack.c.h.b16 %v1032
        %v2260 = vunpack.c.l.b16 %v1033
        %v2261 = vunpack.c.h.b16 %v1033
        %v2262 = vunpack.c.l.b16 %v1034
        %v2263 = vunpack.c.h.b16 %v1034
        %v2264 = vunpack.c.l.b16 %v1035
        %v2265 = vunpack.c.h.b16 %v1035
        %v2266 = vunpack.c.l.b16 %v1036
        %v2267 = vunpack.c.h.b16 %v1036
        %v2268 = vunpack.c.l.b16 %v1037
        %v2269 = vunpack.c.h.b16 %v1037
        %v2270 = vunpack.c.l.b16 %v1038
        %v2271 = vunpack.c.h.b16 %v1038
        %v2272 = vunpack.c.l.b16 %v1039
        %v2273 = vunpack.c.h.b16 %v1039
        %v2274 = vunpack.c.l.b16 %v1040
        %v2275 = vunpack.c.h.b16 %v1040
        %v2276 = vunpack.c.l.b16 %v1041
        %v2277 = vunpack.c.h.b16 %v1041
        %v2278 = vunpack.c.l.b16 %v1042
        %v2279 = vunpack.c.h.b16 %v1042
        %v2280 = vunpack.c.l.b16 %v1043
        %v2281 = vunpack.c.h.b16 %v1043
        %v2282 = vunpack.c.l.b16 %v1044
        %v2283 = vunpack.c.h.b16 %v1044
        %v2284 = vunpack.c.l.b16 %v1045
        %v2285 = vunpack.c.h.b16 %v1045
        %v2286 = vunpack.c.l.b16 %v1046
        %v2287 = vunpack.c.h.b16 %v1046
        %v2288 = vunpack.c.l.b16 %v1047
        %v2289 = vunpack.c.h.b16 %v1047
        %v2290 = vunpack.c.l.b16 %v1048
        %v2291 = vunpack.c.h.b16 %v1048
        %v2292 = vunpack.c.l.b16 %v1049
        %v2293 = vunpack.c.h.b16 %v1049
        %v2294 = vunpack.c.l.b16 %v1050
        %v2295 = vunpack.c.h.b16 %v1050
        %v2296 = vunpack.c.l.b16 %v1051
        %v2297 = vunpack.c.h.b16 %v1051
        %v2298 = vunpack.c.l.b16 %v1052
        %v2299 = vunpack.c.h.b16 %v1052
        %v2300 = vunpack.c.l.b16 %v1053
        %v2301 = vunpack.c.h.b16 %v1053
        %v2302 = vunpack.c.l.b16 %v1054
        %v2303 = vunpack.c.h.b16 %v1054
        %v2304 = vunpack.c.l.b16 %v1055
        %v2305 = vunpack.c.h.b16 %v1055
        %v2306 = vunpack.c.l.b16 %v1056
        %v2307 = vunpack.c.h.b16 %v1056
        %v2308 = vunpack.c.l.b16 %v1057
        %v2309 = vunpack.c.h.b16 %v1057
        %v2310 = vunpack.c.l.b16 %v1058
        %v2311 = vunpack.c.h.b16 %v1058
        %v2312 = vunpack.c.l.b16 %v1059
        %v2313 = vunpack.c.h.b16 %v1059
        %v2314 = vunpack.c.l.b16 %v1060
        %v2315 = vunpack.c.h.b16 %v1060
        %v2316 = vunpack.c.l.b16 %v1061
        %v2317 = vunpack.c.h.b16 %v1061
        %v2318 = vunpack.c.l.b16 %v1062
        %v2319 = vunpack.c.h.b16 %v1062
        %v2320 = vunpack.c.l.b16 %v1063
        %v2321 = vunpack.c.h.b16 %v1063
        %v2322 = vunpack.c.l.b16 %v1064
        %v2323 = vunpack.c.h.b16 %v1064
        %v2324 = vunpack.c.l.b16 %v1065
        %v2325 = vunpack.c.h.b16 %v1065
        %v2326 = vunpack.c.l.b16 %v1066
        %v2327 = vunpack.c.h.b16 %v1066
        %v2328 = vunpack.c.l.b16 %v1067
        %v2329 = vunpack.c.h.b16 %v1067
        %v2330 = vunpack.c.l.b16 %v1068
        %v2331 = vunpack.c.h.b16 %v1068
        %v2332 = vunpack.c.l.b16 %v1069
        %v2333 = vunpack.c.h.b16 %v1069
        %v2334 = vunpack.c.l.b16 %v1070
        %v2335 = vunpack.c.h.b16 %v1070
        %v2336 = vunpack.c.l.b16 %v1071
        %v2337 = vunpack.c.h.b16 %v1071
        %v2338 = vunpack.c.l.b16 %v1072
        %v2339 = vunpack.c.h.b16 %v1072
        %v2340 = vunpack.c.l.b16 %v1073
        %v2341 = vunpack.c.h.b16 %v1073
        %v2342 = vunpack.c.l.b16 %v1074
        %v2343 = vunpack.c.h.b16 %v1074
        %v2344 = vunpack.c.l.b16 %v1075
        %v2345 = vunpack.c.h.b16 %v1075
        %v2346 = vpack.c.b16 %v1518, %v1514
        %v2347 = vpack.c.b16 %v1519, %v1515
        %v2348 = vpack.c.b16 %v1520, %v1516
        %v2349 = vpack.c.b16 %v1521, %v1517
        %v2350 = vpack.c.b16 %v1526, %v1522
        %v2351 = vpack.c.b16 %v1527, %v1523
        %v2352 = vpack.c.b16 %v1528, %v1524
        %v2353 = vpack.c.b16 %v1529, %v1525
        %v2354 = vpack.c.b16 %v1534, %v1530
        %v2355 = vpack.c.b16 %v1535, %v1531
        %v2356 = vpack.c.b16 %v1536, %v1532
        %v2357 = vpack.c.b16 %v1537, %v1533
        %v2358 = vpack.c.b16 %v1542, %v1538
        %v2359 = vpack.c.b16 %v1543, %v1539
        %v2360 = vpack.c.b16 %v1544, %v1540
        %v2361 = vpack.c.b16 %v1545, %v1541
        %v2362 = vpack.c.b16 %v1550, %v1546
        %v2363 = vpack.c.b16 %v1551, %v1547
        %v2364 = vpack.c.b16 %v1552, %v1548
        %v2365 = vpack.c.b16 %v1553, %v1549
        %v2366 = vpack.c.b16 %v1558, %v1554
        %v2367 = vpack.c.b16 %v1559, %v1555
        %v2368 = vpack.c.b16 %v1560, %v1556
        %v2369 = vpack.c.b16 %v1561, %v1557
        %v2370 = vpack.c.b16 %v1566, %v1562
        %v2371 = vpack.c.b16 %v1567, %v1563
        %v2372 = vpack.c.b16 %v1568, %v1564
        %v2373 = vpack.c.b16 %v1569, %v1565
        %v2374 = vpack.c.b16 %v1574, %v1570
        %v2375 = vpack.c.b16 %v1575, %v1571
        %v2376 = vpack.c.b16 %v1576, %v1572
        %v2377 = vpack.c.b16 %v1577, %v1573
        %v2378 = vpack.c.b16 %v1582, %v1578
        %v2379 = vpack.c.b16 %v1583, %v1579
        %v2380 = vpack.c.b16 %v1584, %v1580
        %v2381 = vpack.c.b16 %v1585, %v1581
        %v2382 = vpack.c.b16 %v1590, %v1586
        %v2383 = vpack.c.b16 %v1591, %v1587
        %v2384 = vpack.c.b16 %v1592, %v1588
        %v2385 = vpack.c.b16 %v1593, %v1589
        %v2386 = vpack.c.b16 %v1598, %v1594
        %v2387 = vpack.c.b16 %v1599, %v1595
        %v2388 = vpack.c.b16 %v1600, %v1596
        %v2389 = vpack.c.b16 %v1601, %v1597
        %v2390 = vpack.c.b16 %v1606, %v1602
        %v2391 = vpack.c.b16 %v1607, %v1603
        %v2392 = vpack.c.b16 %v1608, %v1604
        %v2393 = vpack.c.b16 %v1609, %v1605
        %v2394 = vpack.c.b16 %v1614, %v1610
        %v2395 = vpack.c.b16 %v1615, %v1611
        %v2396 = vpack.c.b16 %v1616, %v1612
        %v2397 = vpack.c.b16 %v1617, %v1613
        %v2398 = vpack.c.b16 %v1622, %v1618
        %v2399 = vpack.c.b16 %v1623, %v1619
        %v2400 = vpack.c.b16 %v1624, %v1620
        %v2401 = vpack.c.b16 %v1625, %v1621
        %v2402 = vpack.c.b16 %v1630, %v1626
        %v2403 = vpack.c.b16 %v1631, %v1627
        %v2404 = vpack.c.b16 %v1632, %v1628
        %v2405 = vpack.c.b16 %v1633, %v1629
        %v2406 = vpack.c.b16 %v1638, %v1634
        %v2407 = vpack.c.b16 %v1639, %v1635
        %v2408 = vpack.c.b16 %v1640, %v1636
        %v2409 = vpack.c.b16 %v1641, %v1637
        %v2410 = vpack.c.b16 %v1646, %v1642
        %v2411 = vpack.c.b16 %v1647, %v1643
        %v2412 = vpack.c.b16 %v1648, %v1644
        %v2413 = vpack.c.b16 %v1649, %v1645
        %v2414 = vpack.c.b16 %v1654, %v1650
        %v2415 = vpack.c.b16 %v1655, %v1651
        %v2416 = vpack.c.b16 %v1656, %v1652
        %v2417 = vpack.c.b16 %v1657, %v1653
        %v2418 = vpack.c.b16 %v1662, %v1658
        %v2419 = vpack.c.b16 %v1663, %v1659
        %v2420 = vpack.c.b16 %v1664, %v1660
        %v2421 = vpack.c.b16 %v1665, %v1661
        %v2422 = vpack.c.b16 %v1670, %v1666
        %v2423 = vpack.c.b16 %v1671, %v1667
        %v2424 = vpack.c.b16 %v1672, %v1668
        %v2425 = vpack.c.b16 %v1673, %v1669
        %v2426 = vpack.c.b16 %v1678, %v1674
        %v2427 = vpack.c.b16 %v1679, %v1675
        %v2428 = vpack.c.b16 %v1680, %v1676
        %v2429 = vpack.c.b16 %v1681, %v1677
        %v2430 = vpack.c.b16 %v1686, %v1682
        %v2431 = vpack.c.b16 %v1687, %v1683
        %v2432 = vpack.c.b16 %v1688, %v1684
        %v2433 = vpack.c.b16 %v1689, %v1685
        %v2434 = vpack.c.b16 %v1694, %v1690
        %v2435 = vpack.c.b16 %v1695, %v1691
        %v2436 = vpack.c.b16 %v1696, %v1692
        %v2437 = vpack.c.b16 %v1697, %v1693
        %v2438 = vpack.c.b16 %v1702, %v1698
        %v2439 = vpack.c.b16 %v1703, %v1699
        %v2440 = vpack.c.b16 %v1704, %v1700
        %v2441 = vpack.c.b16 %v1705, %v1701
        %v2442 = vpack.c.b16 %v1710, %v1706
        %v2443 = vpack.c.b16 %v1711, %v1707
        %v2444 = vpack.c.b16 %v1712, %v1708
        %v2445 = vpack.c.b16 %v1713, %v1709
        %v2446 = vpack.c.b16 %v1718, %v1714
        %v2447 = vpack.c.b16 %v1719, %v1715
        %v2448 = vpack.c.b16 %v1720, %v1716
        %v2449 = vpack.c.b16 %v1721, %v1717
        %v2450 = vpack.c.b16 %v1726, %v1722
        %v2451 = vpack.c.b16 %v1727, %v1723
        %v2452 = vpack.c.b16 %v1728, %v1724
        %v2453 = vpack.c.b16 %v1729, %v1725
        %v2454 = vpack.c.b16 %v1734, %v1730
        %v2455 = vpack.c.b16 %v1735, %v1731
        %v2456 = vpack.c.b16 %v1736, %v1732
        %v2457 = vpack.c.b16 %v1737, %v1733
        %v2458 = vpack.c.b16 %v1742, %v1738
        %v2459 = vpack.c.b16 %v1743, %v1739
        %v2460 = vpack.c.b16 %v1744, %v1740
        %v2461 = vpack.c.b16 %v1745, %v1741
        %v2462 = vpack.c.b16 %v1750, %v1746
        %v2463 = vpack.c.b16 %v1751, %v1747
        %v2464 = vpack.c.b16 %v1752, %v1748
        %v2465 = vpack.c.b16 %v1753, %v1749
        %v2466 = vpack.c.b16 %v1758, %v1754
        %v2467 = vpack.c.b16 %v1759, %v1755
        %v2468 = vpack.c.b16 %v1760, %v1756
        %v2469 = vpack.c.b16 %v1761, %v1757
        %v2470 = vpack.c.b16 %v1766, %v1762
        %v2471 = vpack.c.b16 %v1767, %v1763
        %v2472 = vpack.c.b16 %v1768, %v1764
        %v2473 = vpack.c.b16 %v1769, %v1765
        %v2474 = vpack.c.b16 %v1774, %v1770
        %v2475 = vpack.c.b16 %v1775, %v1771
        %v2476 = vpack.c.b16 %v1776, %v1772
        %v2477 = vpack.c.b16 %v1777, %v1773
        %v2478 = vpack.c.b16 %v1782, %v1778
        %v2479 = vpack.c.b16 %v1783, %v1779
        %v2480 = vpack.c.b16 %v1784, %v1780
        %v2481 = vpack.c.b16 %v1785, %v1781
        %v2482 = vpack.c.b16 %v1790, %v1786
        %v2483 = vpack.c.b16 %v1791, %v1787
        %v2484 = vpack.c.b16 %v1792, %v1788
        %v2485 = vpack.c.b16 %v1793, %v1789
        %v2486 = vpack.c.b16 %v1798, %v1794
        %v2487 = vpack.c.b16 %v1799, %v1795
        %v2488 = vpack.c.b16 %v1800, %v1796
        %v2489 = vpack.c.b16 %v1801, %v1797
        %v2490 = vpack.c.b16 %v1806, %v1802
        %v2491 = vpack.c.b16 %v1807, %v1803
        %v2492 = vpack.c.b16 %v1808, %v1804
        %v2493 = vpack.c.b16 %v1809, %v1805
        %v2494 = vpack.c.b16 %v1814, %v1810
        %v2495 = vpack.c.b16 %v1815, %v1811
        %v2496 = vpack.c.b16 %v1816, %v1812
        %v2497 = vpack.c.b16 %v1817, %v1813
        %v2498 = vpack.c.b16 %v1822, %v1818
        %v2499 = vpack.c.b16 %v1823, %v1819
        %v2500 = vpack.c.b16 %v1824, %v1820
        %v2501 = vpack.c.b16 %v1825, %v1821
        %v2502 = vpack.c.b16 %v1830, %v1826
        %v2503 = vpack.c.b16 %v1831, %v1827
        %v2504 = vpack.c.b16 %v1832, %v1828
        %v2505 = vpack.c.b16 %v1833, %v1829
        %v2506 = vpack.c.b16 %v1838, %v1834
        %v2507 = vpack.c.b16 %v1839, %v1835
        %v2508 = vpack.c.b16 %v1840, %v1836
        %v2509 = vpack.c.b16 %v1841, %v1837
        %v2510 = vpack.c.b16 %v1846, %v1842
        %v2511 = vpack.c.b16 %v1847, %v1843
        %v2512 = vpack.c.b16 %v1848, %v1844
        %v2513 = vpack.c.b16 %v1849, %v1845
        %v2514 = vpack.c.b16 %v1854, %v1850
        %v2515 = vpack.c.b16 %v1855, %v1851
        %v2516 = vpack.c.b16 %v1856, %v1852
        %v2517 = vpack.c.b16 %v1857, %v1853
        %v2518 = vpack.c.b16 %v1862, %v1858
        %v2519 = vpack.c.b16 %v1863, %v1859
        %v2520 = vpack.c.b16 %v1864, %v1860
        %v2521 = vpack.c.b16 %v1865, %v1861
        %v2522 = vpack.c.b16 %v1870, %v1866
        %v2523 = vpack.c.b16 %v1871, %v1867
        %v2524 = vpack.c.b16 %v1872, %v1868
        %v2525 = vpack.c.b16 %v1873, %v1869
        %v2526 = vpack.c.b16 %v1878, %v1874
        %v2527 = vpack.c.b16 %v1879, %v1875
        %v2528 = vpack.c.b16 %v1880, %v1876
        %v2529 = vpack.c.b16 %v1881, %v1877
        %v2530 = vpack.c.b16 %v1886, %v1882
        %v2531 = vpack.c.b16 %v1887, %v1883
        %v2532 = vpack.c.b16 %v1888, %v1884
        %v2533 = vpack.c.b16 %v1889, %v1885
        %v2534 = vpack.c.b16 %v1894, %v1890
        %v2535 = vpack.c.b16 %v1895, %v1891
        %v2536 = vpack.c.b16 %v1896, %v1892
        %v2537 = vpack.c.b16 %v1897, %v1893
        %v2538 = vpack.c.b16 %v1902, %v1898
        %v2539 = vpack.c.b16 %v1903, %v1899
        %v2540 = vpack.c.b16 %v1904, %v1900
        %v2541 = vpack.c.b16 %v1905, %v1901
        %v2542 = vpack.c.b16 %v1910, %v1906
        %v2543 = vpack.c.b16 %v1911, %v1907
        %v2544 = vpack.c.b16 %v1912, %v1908
        %v2545 = vpack.c.b16 %v1913, %v1909
        %v2546 = vpack.c.b16 %v1918, %v1914
        %v2547 = vpack.c.b16 %v1919, %v1915
        %v2548 = vpack.c.b16 %v1920, %v1916
        %v2549 = vpack.c.b16 %v1921, %v1917
        %v2550 = vpack.c.b16 %v1926, %v1922
        %v2551 = vpack.c.b16 %v1927, %v1923
        %v2552 = vpack.c.b16 %v1928, %v1924
        %v2553 = vpack.c.b16 %v1929, %v1925
        %v2554 = vpack.c.b16 %v1934, %v1930
        %v2555 = vpack.c.b16 %v1935, %v1931
        %v2556 = vpack.c.b16 %v1936, %v1932
        %v2557 = vpack.c.b16 %v1937, %v1933
        %v2558 = vpack.c.b16 %v1942, %v1938
        %v2559 = vpack.c.b16 %v1943, %v1939
        %v2560 = vpack.c.b16 %v1944, %v1940
        %v2561 = vpack.c.b16 %v1945, %v1941
        %v2562 = vpack.c.b16 %v1950, %v1946
        %v2563 = vpack.c.b16 %v1951, %v1947
        %v2564 = vpack.c.b16 %v1952, %v1948
        %v2565 = vpack.c.b16 %v1953, %v1949
        %v2566 = vpack.c.b16 %v1958, %v1954
        %v2567 = vpack.c.b16 %v1959, %v1955
        %v2568 = vpack.c.b16 %v1960, %v1956
        %v2569 = vpack.c.b16 %v1961, %v1957
        %v2570 = vpack.c.b16 %v1966, %v1962
        %v2571 = vpack.c.b16 %v1967, %v1963
        %v2572 = vpack.c.b16 %v1968, %v1964
        %v2573 = vpack.c.b16 %v1969, %v1965
        %v2574 = vpack.c.b16 %v1974, %v1970
        %v2575 = vpack.c.b16 %v1975, %v1971
        %v2576 = vpack.c.b16 %v1976, %v1972
        %v2577 = vpack.c.b16 %v1977, %v1973
        %v2578 = vpack.c.b16 %v1982, %v1978
        %v2579 = vpack.c.b16 %v1983, %v1979
        %v2580 = vpack.c.b16 %v1984, %v1980
        %v2581 = vpack.c.b16 %v1985, %v1981
        %v2582 = vpack.c.b16 %v1990, %v1986
        %v2583 = vpack.c.b16 %v1991, %v1987
        %v2584 = vpack.c.b16 %v1992, %v1988
        %v2585 = vpack.c.b16 %v1993, %v1989
        %v2586 = vpack.c.b16 %v1998, %v1994
        %v2587 = vpack.c.b16 %v1999, %v1995
        %v2588 = vpack.c.b16 %v2000, %v1996
        %v2589 = vpack.c.b16 %v2001, %v1997
        %v2590 = vpack.c.b16 %v2006, %v2002
        %v2591 = vpack.c.b16 %v2007, %v2003
        %v2592 = vpack.c.b16 %v2008, %v2004
        %v2593 = vpack.c.b16 %v2009, %v2005
        %v2594 = vpack.c.b16 %v2014, %v2010
        %v2595 = vpack.c.b16 %v2015, %v2011
        %v2596 = vpack.c.b16 %v2016, %v2012
        %v2597 = vpack.c.b16 %v2017, %v2013
        %v2598 = vpack.c.b16 %v2022, %v2018
        %v2599 = vpack.c.b16 %v2023, %v2019
        %v2600 = vpack.c.b16 %v2024, %v2020
        %v2601 = vpack.c.b16 %v2025, %v2021
        %v2602 = vpack.c.b16 %v2030, %v2026
        %v2603 = vpack.c.b16 %v2031, %v2027
        %v2604 = vpack.c.b16 %v2032, %v2028
        %v2605 = vpack.c.b16 %v2033, %v2029
        %v2606 = vpack.c.b16 %v2038, %v2034
        %v2607 = vpack.c.b16 %v2039, %v2035
        %v2608 = vpack.c.b16 %v2040, %v2036
        %v2609 = vpack.c.b16 %v2041, %v2037
        %v2610 = vpack.c.b16 %v2046, %v2042
        %v2611 = vpack.c.b16 %v2047, %v2043
        %v2612 = vpack.c.b16 %v2048, %v2044
        %v2613 = vpack.c.b16 %v2049, %v2045
        %v2614 = vpack.c.b16 %v2054, %v2050
        %v2615 = vpack.c.b16 %v2055, %v2051
        %v2616 = vpack.c.b16 %v2056, %v2052
        %v2617 = vpack.c.b16 %v2057, %v2053
        %v2618 = vpack.c.b16 %v2062, %v2058
        %v2619 = vpack.c.b16 %v2063, %v2059
        %v2620 = vpack.c.b16 %v2064, %v2060
        %v2621 = vpack.c.b16 %v2065, %v2061
        %v2622 = vpack.c.b16 %v2070, %v2066
        %v2623 = vpack.c.b16 %v2071, %v2067
        %v2624 = vpack.c.b16 %v2072, %v2068
        %v2625 = vpack.c.b16 %v2073, %v2069
        %v2626 = vpack.c.b16 %v2078, %v2074
        %v2627 = vpack.c.b16 %v2079, %v2075
        %v2628 = vpack.c.b16 %v2080, %v2076
        %v2629 = vpack.c.b16 %v2081, %v2077
        %v2630 = vpack.c.b16 %v2086, %v2082
        %v2631 = vpack.c.b16 %v2087, %v2083
        %v2632 = vpack.c.b16 %v2088, %v2084
        %v2633 = vpack.c.b16 %v2089, %v2085
        %v2634 = vpack.c.b16 %v2094, %v2090
        %v2635 = vpack.c.b16 %v2095, %v2091
        %v2636 = vpack.c.b16 %v2096, %v2092
        %v2637 = vpack.c.b16 %v2097, %v2093
        %v2638 = vpack.c.b16 %v2102, %v2098
        %v2639 = vpack.c.b16 %v2103, %v2099
        %v2640 = vpack.c.b16 %v2104, %v2100
        %v2641 = vpack.c.b16 %v2105, %v2101
        %v2642 = vpack.c.b16 %v2110, %v2106
        %v2643 = vpack.c.b16 %v2111, %v2107
        %v2644 = vpack.c.b16 %v2112, %v2108
        %v2645 = vpack.c.b16 %v2113, %v2109
        %v2646 = vpack.c.b16 %v2118, %v2114
        %v2647 = vpack.c.b16 %v2119, %v2115
        %v2648 = vpack.c.b16 %v2120, %v2116
        %v2649 = vpack.c.b16 %v2121, %v2117
        %v2650 = vpack.c.b16 %v2126, %v2122
        %v2651 = vpack.c.b16 %v2127, %v2123
        %v2652 = vpack.c.b16 %v2128, %v2124
        %v2653 = vpack.c.b16 %v2129, %v2125
        %v2654 = vpack.c.b16 %v2134, %v2130
        %v2655 = vpack.c.b16 %v2135, %v2131
        %v2656 = vpack.c.b16 %v2136, %v2132
        %v2657 = vpack.c.b16 %v2137, %v2133
        %v2658 = vpack.c.b16 %v2142, %v2138
        %v2659 = vpack.c.b16 %v2143, %v2139
        %v2660 = vpack.c.b16 %v2144, %v2140
        %v2661 = vpack.c.b16 %v2145, %v2141
        %v2662 = vpack.c.b16 %v2150, %v2146
        %v2663 = vpack.c.b16 %v2151, %v2147
        %v2664 = vpack.c.b16 %v2152, %v2148
        %v2665 = vpack.c.b16 %v2153, %v2149
        %v2666 = vpack.c.b16 %v2158, %v2154
        %v2667 = vpack.c.b16 %v2159, %v2155
        %v2668 = vpack.c.b16 %v2160, %v2156
        %v2669 = vpack.c.b16 %v2161, %v2157
        %v2670 = vpack.c.b16 %v2166, %v2162
        %v2671 = vpack.c.b16 %v2167, %v2163
        %v2672 = vpack.c.b16 %v2168, %v2164
        %v2673 = vpack.c.b16 %v2169, %v2165
        %v2674 = vpack.c.b16 %v2174, %v2170
        %v2675 = vpack.c.b16 %v2175, %v2171
        %v2676 = vpack.c.b16 %v2176, %v2172
        %v2677 = vpack.c.b16 %v2177, %v2173
        %v2678 = vpack.c.b16 %v2182, %v2178
        %v2679 = vpack.c.b16 %v2183, %v2179
        %v2680 = vpack.c.b16 %v2184, %v2180
        %v2681 = vpack.c.b16 %v2185, %v2181
        %v2682 = vpack.c.b16 %v2190, %v2186
        %v2683 = vpack.c.b16 %v2191, %v2187
        %v2684 = vpack.c.b16 %v2192, %v2188
        %v2685 = vpack.c.b16 %v2193, %v2189
        %v2686 = vpack.c.b16 %v2198, %v2194
        %v2687 = vpack.c.b16 %v2199, %v2195
        %v2688 = vpack.c.b16 %v2200, %v2196
        %v2689 = vpack.c.b16 %v2201, %v2197
        %v2690 = vpack.c.b16 %v2206, %v2202
        %v2691 = vpack.c.b16 %v2207, %v2203
        %v2692 = vpack.c.b16 %v2208, %v2204
        %v2693 = vpack.c.b16 %v2209, %v2205
        %v2694 = vpack.c.b16 %v2214, %v2210
        %v2695 = vpack.c.b16 %v2215, %v2211
        %v2696 = vpack.c.b16 %v2216, %v2212
        %v2697 = vpack.c.b16 %v2217, %v2213
        %v2698 = vpack.c.b16 %v2222, %v2218
        %v2699 = vpack.c.b16 %v2223, %v2219
        %v2700 = vpack.c.b16 %v2224, %v2220
        %v2701 = vpack.c.b16 %v2225, %v2221
        %v2702 = vpack.c.b16 %v2230, %v2226
        %v2703 = vpack.c.b16 %v2231, %v2227
        %v2704 = vpack.c.b16 %v2232, %v2228
        %v2705 = vpack.c.b16 %v2233, %v2229
        %v2706 = vpack.c.b16 %v2238, %v2234
        %v2707 = vpack.c.b16 %v2239, %v2235
        %v2708 = vpack.c.b16 %v2240, %v2236
        %v2709 = vpack.c.b16 %v2241, %v2237
        %v2710 = vpack.c.b16 %v2246, %v2242
        %v2711 = vpack.c.b16 %v2247, %v2243
        %v2712 = vpack.c.b16 %v2248, %v2244
        %v2713 = vpack.c.b16 %v2249, %v2245
        %v2714 = vpack.c.b16 %v2254, %v2250
        %v2715 = vpack.c.b16 %v2255, %v2251
        %v2716 = vpack.c.b16 %v2256, %v2252
        %v2717 = vpack.c.b16 %v2257, %v2253
        %v2718 = vpack.c.b16 %v2262, %v2258
        %v2719 = vpack.c.b16 %v2263, %v2259
        %v2720 = vpack.c.b16 %v2264, %v2260
        %v2721 = vpack.c.b16 %v2265, %v2261
        %v2722 = vpack.c.b16 %v2270, %v2266
        %v2723 = vpack.c.b16 %v2271, %v2267
        %v2724 = vpack.c.b16 %v2272, %v2268
        %v2725 = vpack.c.b16 %v2273, %v2269
        %v2726 = vpack.c.b16 %v2278, %v2274
        %v2727 = vpack.c.b16 %v2279, %v2275
        %v2728 = vpack.c.b16 %v2280, %v2276
        %v2729 = vpack.c.b16 %v2281, %v2277
        %v2730 = vpack.c.b16 %v2286, %v2282
        %v2731 = vpack.c.b16 %v2287, %v2283
        %v2732 = vpack.c.b16 %v2288, %v2284
        %v2733 = vpack.c.b16 %v2289, %v2285
        %v2734 = vpack.c.b16 %v2294, %v2290
        %v2735 = vpack.c.b16 %v2295, %v2291
        %v2736 = vpack.c.b16 %v2296, %v2292
        %v2737 = vpack.c.b16 %v2297, %v2293
        %v2738 = vpack.c.b16 %v2302, %v2298
        %v2739 = vpack.c.b16 %v2303, %v2299
        %v2740 = vpack.c.b16 %v2304, %v2300
        %v2741 = vpack.c.b16 %v2305, %v2301
        %v2742 = vpack.c.b16 %v2310, %v2306
        %v2743 = vpack.c.b16 %v2311, %v2307
        %v2744 = vpack.c.b16 %v2312, %v2308
        %v2745 = vpack.c.b16 %v2313, %v2309
        %v2746 = vpack.c.b16 %v2318, %v2314
        %v2747 = vpack.c.b16 %v2319, %v2315
        %v2748 = vpack.c.b16 %v2320, %v2316
        %v2749 = vpack.c.b16 %v2321, %v2317
        %v2750 = vpack.c.b16 %v2326, %v2322
        %v2751 = vpack.c.b16 %v2327, %v2323
        %v2752 = vpack.c.b16 %v2328, %v2324
        %v2753 = vpack.c.b16 %v2329, %v2325
        %v2754 = vpack.c.b16 %v2334, %v2330
        %v2755 = vpack.c.b16 %v2335, %v2331
        %v2756 = vpack.c.b16 %v2336, %v2332
        %v2757 = vpack.c.b16 %v2337, %v2333
        %v2758 = vpack.c.b16 %v2342, %v2338
        %v2759 = vpack.c.b16 %v2343, %v2339
        %v2760 = vpack.c.b16 %v2344, %v2340
        %v2761 = vpack.c.b16 %v2345, %v2341
        %3178 = vmatprep.subr.bf16.mxu0 %v2375
        %3179 = vmatpush1.bf16.msra.mxu0 %v2374
        %3180 = vmatprep.subr.bf16.mxu0 %v2371
        %3181 = vmatpush1.bf16.msra.mxu0 %v2370
        %3182 = vmatprep.subr.bf16.mxu0 %v2367
        %3183 = vmatpush1.bf16.msra.mxu0 %v2366
        %3184 = vmatprep.subr.bf16.mxu0 %v2363
        %3185 = vmatpush1.bf16.msra.mxu0 %v2362
        %3186 = vmatprep.subr.bf16.mxu0 %v2359
        %3187 = vmatpush1.bf16.msra.mxu0 %v2358
        %3188 = vmatprep.subr.bf16.mxu0 %v2355
        %3189 = vmatpush1.bf16.msra.mxu0 %v2354
        %3190 = vmatprep.subr.bf16.mxu0 %v2351
        %3191 = vmatpush1.bf16.msra.mxu0 %v2350
        %3192 = vmatprep.subr.bf16.mxu0 %v2347
        %3193 = vmatpush1.bf16.msra.mxu0 %v2346
        %3194 = vmatprep.subr.bf16.mxu0 %v2407
        %3195 = vmatpush2.bf16.msra.mxu0 %v2406
        %3196 = vmatprep.subr.bf16.mxu0 %v2403
        %3197 = vmatpush2.bf16.msra.mxu0 %v2402
        %3198 = vmatprep.subr.bf16.mxu0 %v2399
        %3199 = vmatpush2.bf16.msra.mxu0 %v2398
        %3200 = vmatprep.subr.bf16.mxu0 %v2395
        %3201 = vmatpush2.bf16.msra.mxu0 %v2394
        %3202 = vmatprep.subr.bf16.mxu0 %v2391
        %3203 = vmatpush2.bf16.msra.mxu0 %v2390
        %3204 = vmatprep.subr.bf16.mxu0 %v2387
        %3205 = vmatpush2.bf16.msra.mxu0 %v2386
        %3206 = vmatprep.subr.bf16.mxu0 %v2383
        %3207 = vmatpush2.bf16.msra.mxu0 %v2382
        %3208 = vmatprep.subr.bf16.mxu0 %v2379
        %3209 = vmatpush2.bf16.msra.mxu0 %v2378
        %3210 = vmatprep.mubr.bf16.mxu0 %v648
        %3211 = vmatmul.mubr.bf16.gmra.mxu0 %v647
        %v3212 = vpop.f32.mrf.mxu0
        %v3213 = vadd.f32 %v1081, %v3212
        %v3214 = vpop.f32.mrf.mxu0
        %v3215 = vadd.f32 %v1085, %v3214
        %v3216 = vpop.f32.mrf.mxu0
        %v3217 = vpop.f32.mrf.mxu0
        %3218 = vdwg.mxu0
        %3219 = vmatprep.subr.bf16.mxu0 %v2439
        %3220 = vmatpush1.bf16.msra.mxu0 %v2438
        %3221 = vmatprep.subr.bf16.mxu0 %v2435
        %3222 = vmatpush1.bf16.msra.mxu0 %v2434
        %3223 = vmatprep.subr.bf16.mxu0 %v2431
        %3224 = vmatpush1.bf16.msra.mxu0 %v2430
        %3225 = vmatprep.subr.bf16.mxu0 %v2427
        %3226 = vmatpush1.bf16.msra.mxu0 %v2426
        %3227 = vmatprep.subr.bf16.mxu0 %v2423
        %3228 = vmatpush1.bf16.msra.mxu0 %v2422
        %3229 = vmatprep.subr.bf16.mxu0 %v2419
        %3230 = vmatpush1.bf16.msra.mxu0 %v2418
        %3231 = vmatprep.subr.bf16.mxu0 %v2415
        %3232 = vmatpush1.bf16.msra.mxu0 %v2414
        %3233 = vmatprep.subr.bf16.mxu0 %v2411
        %3234 = vmatpush1.bf16.msra.mxu0 %v2410
        %3235 = vmatprep.subr.bf16.mxu0 %v2471
        %3236 = vmatpush2.bf16.msra.mxu0 %v2470
        %3237 = vmatprep.subr.bf16.mxu0 %v2467
        %3238 = vmatpush2.bf16.msra.mxu0 %v2466
        %3239 = vmatprep.subr.bf16.mxu0 %v2463
        %3240 = vmatpush2.bf16.msra.mxu0 %v2462
        %3241 = vmatprep.subr.bf16.mxu0 %v2459
        %3242 = vmatpush2.bf16.msra.mxu0 %v2458
        %3243 = vmatprep.subr.bf16.mxu0 %v2455
        %3244 = vmatpush2.bf16.msra.mxu0 %v2454
        %3245 = vmatprep.subr.bf16.mxu0 %v2451
        %3246 = vmatpush2.bf16.msra.mxu0 %v2450
        %3247 = vmatprep.subr.bf16.mxu0 %v2447
        %3248 = vmatpush2.bf16.msra.mxu0 %v2446
        %3249 = vmatprep.subr.bf16.mxu0 %v2443
        %3250 = vmatpush2.bf16.msra.mxu0 %v2442
        %3251 = vmatprep.mubr.bf16.mxu0 %v650
        %3252 = vmatmul.mubr.bf16.gmra.mxu0 %v649
        %v3253 = vpop.f32.mrf.mxu0
        %v3254 = vadd.f32 %v3213, %v3253
        %v3255 = vpop.f32.mrf.mxu0
        %v3256 = vadd.f32 %v3215, %v3255
        %v3257 = vpop.f32.mrf.mxu0
        %v3258 = vpop.f32.mrf.mxu0
        %3259 = vdwg.mxu0
        %3260 = vmatprep.subr.bf16.mxu0 %v2503
        %3261 = vmatpush1.bf16.msra.mxu0 %v2502
        %3262 = vmatprep.subr.bf16.mxu0 %v2499
        %3263 = vmatpush1.bf16.msra.mxu0 %v2498
        %3264 = vmatprep.subr.bf16.mxu0 %v2495
        %3265 = vmatpush1.bf16.msra.mxu0 %v2494
        %3266 = vmatprep.subr.bf16.mxu0 %v2491
        %3267 = vmatpush1.bf16.msra.mxu0 %v2490
        %3268 = vmatprep.subr.bf16.mxu0 %v2487
        %3269 = vmatpush1.bf16.msra.mxu0 %v2486
        %3270 = vmatprep.subr.bf16.mxu0 %v2483
        %3271 = vmatpush1.bf16.msra.mxu0 %v2482
        %3272 = vmatprep.subr.bf16.mxu0 %v2479
        %3273 = vmatpush1.bf16.msra.mxu0 %v2478
        %3274 = vmatprep.subr.bf16.mxu0 %v2475
        %3275 = vmatpush1.bf16.msra.mxu0 %v2474
        %3276 = vmatprep.subr.bf16.mxu0 %v2535
        %3277 = vmatpush2.bf16.msra.mxu0 %v2534
        %3278 = vmatprep.subr.bf16.mxu0 %v2531
        %3279 = vmatpush2.bf16.msra.mxu0 %v2530
        %3280 = vmatprep.subr.bf16.mxu0 %v2527
        %3281 = vmatpush2.bf16.msra.mxu0 %v2526
        %3282 = vmatprep.subr.bf16.mxu0 %v2523
        %3283 = vmatpush2.bf16.msra.mxu0 %v2522
        %3284 = vmatprep.subr.bf16.mxu0 %v2519
        %3285 = vmatpush2.bf16.msra.mxu0 %v2518
        %3286 = vmatprep.subr.bf16.mxu0 %v2515
        %3287 = vmatpush2.bf16.msra.mxu0 %v2514
        %3288 = vmatprep.subr.bf16.mxu0 %v2511
        %3289 = vmatpush2.bf16.msra.mxu0 %v2510
        %3290 = vmatprep.subr.bf16.mxu0 %v2507
        %3291 = vmatpush2.bf16.msra.mxu0 %v2506
        %3292 = vmatprep.mubr.bf16.mxu0 %v652
        %3293 = vmatmul.mubr.bf16.gmra.mxu0 %v651
        %v3294 = vpop.f32.mrf.mxu0
        %v3295 = vadd.f32 %v3254, %v3294
        %v3296 = vpop.f32.mrf.mxu0
        %v3297 = vadd.f32 %v3256, %v3296
        %v3298 = vpop.f32.mrf.mxu0
        %v3299 = vpop.f32.mrf.mxu0
        %3300 = vdwg.mxu0
        %3301 = vmatprep.subr.bf16.mxu0 %v2567
        %3302 = vmatpush1.bf16.msra.mxu0 %v2566
        %3303 = vmatprep.subr.bf16.mxu0 %v2563
        %3304 = vmatpush1.bf16.msra.mxu0 %v2562
        %3305 = vmatprep.subr.bf16.mxu0 %v2559
        %3306 = vmatpush1.bf16.msra.mxu0 %v2558
        %3307 = vmatprep.subr.bf16.mxu0 %v2555
        %3308 = vmatpush1.bf16.msra.mxu0 %v2554
        %3309 = vmatprep.subr.bf16.mxu0 %v2551
        %3310 = vmatpush1.bf16.msra.mxu0 %v2550
        %3311 = vmatprep.subr.bf16.mxu0 %v2547
        %3312 = vmatpush1.bf16.msra.mxu0 %v2546
        %3313 = vmatprep.subr.bf16.mxu0 %v2543
        %3314 = vmatpush1.bf16.msra.mxu0 %v2542
        %3315 = vmatprep.subr.bf16.mxu0 %v2539
        %3316 = vmatpush1.bf16.msra.mxu0 %v2538
        %3317 = vmatprep.subr.bf16.mxu0 %v2599
        %3318 = vmatpush2.bf16.msra.mxu0 %v2598
        %3319 = vmatprep.subr.bf16.mxu0 %v2595
        %3320 = vmatpush2.bf16.msra.mxu0 %v2594
        %3321 = vmatprep.subr.bf16.mxu0 %v2591
        %3322 = vmatpush2.bf16.msra.mxu0 %v2590
        %3323 = vmatprep.subr.bf16.mxu0 %v2587
        %3324 = vmatpush2.bf16.msra.mxu0 %v2586
        %3325 = vmatprep.subr.bf16.mxu0 %v2583
        %3326 = vmatpush2.bf16.msra.mxu0 %v2582
        %3327 = vmatprep.subr.bf16.mxu0 %v2579
        %3328 = vmatpush2.bf16.msra.mxu0 %v2578
        %3329 = vmatprep.subr.bf16.mxu0 %v2575
        %3330 = vmatpush2.bf16.msra.mxu0 %v2574
        %3331 = vmatprep.subr.bf16.mxu0 %v2571
        %3332 = vmatpush2.bf16.msra.mxu0 %v2570
        %3333 = vmatprep.mubr.bf16.mxu0 %v654
        %3334 = vmatmul.mubr.bf16.gmra.mxu0 %v653
        %v3335 = vpop.f32.mrf.mxu0
        %v3336 = vadd.f32 %v3295, %v3335
        %v3337 = vpop.f32.mrf.mxu0
        %v3338 = vadd.f32 %v3297, %v3337
        %v3339 = vpop.f32.mrf.mxu0
        %v3340 = vpop.f32.mrf.mxu0
        %3341 = vdwg.mxu0
        %3342 = vmatprep.subr.bf16.mxu0 %v2631
        %3343 = vmatpush1.bf16.msra.mxu0 %v2630
        %3344 = vmatprep.subr.bf16.mxu0 %v2627
        %3345 = vmatpush1.bf16.msra.mxu0 %v2626
        %3346 = vmatprep.subr.bf16.mxu0 %v2623
        %3347 = vmatpush1.bf16.msra.mxu0 %v2622
        %3348 = vmatprep.subr.bf16.mxu0 %v2619
        %3349 = vmatpush1.bf16.msra.mxu0 %v2618
        %3350 = vmatprep.subr.bf16.mxu0 %v2615
        %3351 = vmatpush1.bf16.msra.mxu0 %v2614
        %3352 = vmatprep.subr.bf16.mxu0 %v2611
        %3353 = vmatpush1.bf16.msra.mxu0 %v2610
        %3354 = vmatprep.subr.bf16.mxu0 %v2607
        %3355 = vmatpush1.bf16.msra.mxu0 %v2606
        %3356 = vmatprep.subr.bf16.mxu0 %v2603
        %3357 = vmatpush1.bf16.msra.mxu0 %v2602
        %3358 = vmatprep.subr.bf16.mxu0 %v2663
        %3359 = vmatpush2.bf16.msra.mxu0 %v2662
        %3360 = vmatprep.subr.bf16.mxu0 %v2659
        %3361 = vmatpush2.bf16.msra.mxu0 %v2658
        %3362 = vmatprep.subr.bf16.mxu0 %v2655
        %3363 = vmatpush2.bf16.msra.mxu0 %v2654
        %3364 = vmatprep.subr.bf16.mxu0 %v2651
        %3365 = vmatpush2.bf16.msra.mxu0 %v2650
        %3366 = vmatprep.subr.bf16.mxu0 %v2647
        %3367 = vmatpush2.bf16.msra.mxu0 %v2646
        %3368 = vmatprep.subr.bf16.mxu0 %v2643
        %3369 = vmatpush2.bf16.msra.mxu0 %v2642
        %3370 = vmatprep.subr.bf16.mxu0 %v2639
        %3371 = vmatpush2.bf16.msra.mxu0 %v2638
        %3372 = vmatprep.subr.bf16.mxu0 %v2635
        %3373 = vmatpush2.bf16.msra.mxu0 %v2634
        %3374 = vmatprep.mubr.bf16.mxu0 %v656
        %3375 = vmatmul.mubr.bf16.gmra.mxu0 %v655
        %v3376 = vpop.f32.mrf.mxu0
        %v3377 = vadd.f32 %v3336, %v3376
        %v3378 = vpop.f32.mrf.mxu0
        %v3379 = vadd.f32 %v3338, %v3378
        %v3380 = vpop.f32.mrf.mxu0
        %v3381 = vpop.f32.mrf.mxu0
        %3382 = vdwg.mxu0
        %3383 = vmatprep.subr.bf16.mxu0 %v2695
        %3384 = vmatpush1.bf16.msra.mxu0 %v2694
        %3385 = vmatprep.subr.bf16.mxu0 %v2691
        %3386 = vmatpush1.bf16.msra.mxu0 %v2690
        %3387 = vmatprep.subr.bf16.mxu0 %v2687
        %3388 = vmatpush1.bf16.msra.mxu0 %v2686
        %3389 = vmatprep.subr.bf16.mxu0 %v2683
        %3390 = vmatpush1.bf16.msra.mxu0 %v2682
        %3391 = vmatprep.subr.bf16.mxu0 %v2679
        %3392 = vmatpush1.bf16.msra.mxu0 %v2678
        %3393 = vmatprep.subr.bf16.mxu0 %v2675
        %3394 = vmatpush1.bf16.msra.mxu0 %v2674
        %3395 = vmatprep.subr.bf16.mxu0 %v2671
        %3396 = vmatpush1.bf16.msra.mxu0 %v2670
        %3397 = vmatprep.subr.bf16.mxu0 %v2667
        %3398 = vmatpush1.bf16.msra.mxu0 %v2666
        %3399 = vmatprep.subr.bf16.mxu0 %v2727
        %3400 = vmatpush2.bf16.msra.mxu0 %v2726
        %3401 = vmatprep.subr.bf16.mxu0 %v2723
        %3402 = vmatpush2.bf16.msra.mxu0 %v2722
        %3403 = vmatprep.subr.bf16.mxu0 %v2719
        %3404 = vmatpush2.bf16.msra.mxu0 %v2718
        %3405 = vmatprep.subr.bf16.mxu0 %v2715
        %3406 = vmatpush2.bf16.msra.mxu0 %v2714
        %3407 = vmatprep.subr.bf16.mxu0 %v2711
        %3408 = vmatpush2.bf16.msra.mxu0 %v2710
        %3409 = vmatprep.subr.bf16.mxu0 %v2707
        %3410 = vmatpush2.bf16.msra.mxu0 %v2706
        %3411 = vmatprep.subr.bf16.mxu0 %v2703
        %3412 = vmatpush2.bf16.msra.mxu0 %v2702
        %3413 = vmatprep.subr.bf16.mxu0 %v2699
        %3414 = vmatpush2.bf16.msra.mxu0 %v2698
        %3415 = vmatprep.mubr.bf16.mxu0 %v658
        %3416 = vmatmul.mubr.bf16.gmra.mxu0 %v657
        %v3417 = vpop.f32.mrf.mxu0
        %v3418 = vadd.f32 %v3377, %v3417
        %v3419 = vpop.f32.mrf.mxu0
        %v3420 = vadd.f32 %v3379, %v3419
        %v3421 = vpop.f32.mrf.mxu0
        %v3422 = vpop.f32.mrf.mxu0
        %3423 = vdwg.mxu0
        %3424 = vmatprep.subr.bf16.mxu0 %v2759
        %3425 = vmatpush1.bf16.msra.mxu0 %v2758
        %3426 = vmatprep.subr.bf16.mxu0 %v2755
        %3427 = vmatpush1.bf16.msra.mxu0 %v2754
        %3428 = vmatprep.subr.bf16.mxu0 %v2751
        %3429 = vmatpush1.bf16.msra.mxu0 %v2750
        %3430 = vmatprep.subr.bf16.mxu0 %v2747
        %3431 = vmatpush1.bf16.msra.mxu0 %v2746
        %3432 = vmatprep.subr.bf16.mxu0 %v2743
        %3433 = vmatpush1.bf16.msra.mxu0 %v2742
        %3434 = vmatprep.subr.bf16.mxu0 %v2739
        %3435 = vmatpush1.bf16.msra.mxu0 %v2738
        %3436 = vmatprep.subr.bf16.mxu0 %v2735
        %3437 = vmatpush1.bf16.msra.mxu0 %v2734
        %3438 = vmatprep.subr.bf16.mxu0 %v2731
        %3439 = vmatpush1.bf16.msra.mxu0 %v2730
        %3440 = vmatprep.subr.bf16.mxu0 0
        %3441 = vmatpush2.bf16.msra.mxu0 0
        %3442 = vmatprep.subr.bf16.mxu0 0
        %3443 = vmatpush2.bf16.msra.mxu0 0
        %3444 = vmatprep.subr.bf16.mxu0 0
        %3445 = vmatpush2.bf16.msra.mxu0 0
        %3446 = vmatprep.subr.bf16.mxu0 0
        %3447 = vmatpush2.bf16.msra.mxu0 0
        %3448 = vmatprep.subr.bf16.mxu0 0
        %3449 = vmatpush2.bf16.msra.mxu0 0
        %3450 = vmatprep.subr.bf16.mxu0 0
        %3451 = vmatpush2.bf16.msra.mxu0 0
        %3452 = vmatprep.subr.bf16.mxu0 0
        %3453 = vmatpush2.bf16.msra.mxu0 0
        %3454 = vmatprep.subr.bf16.mxu0 0
        %3455 = vmatpush2.bf16.msra.mxu0 0
        %3456 = vmatprep.mubr.bf16.mxu0 0
        %3457 = vmatmul.mubr.bf16.gmra.mxu0 %v659
        %v3458 = vpop.f32.mrf.mxu0
        %v3459 = vadd.f32 %v3418, %v3458
        %v3460 = vpop.f32.mrf.mxu0
        %v3461 = vadd.f32 %v3420, %v3460
        %v3462 = vpop.f32.mrf.mxu0
        %v3463 = vpop.f32.mrf.mxu0
        %3464 = vdwg.mxu0
        %3465 = vmatprep.subr.bf16.mxu0 %v2377
        %3466 = vmatpush1.bf16.msra.mxu0 %v2376
        %3467 = vmatprep.subr.bf16.mxu0 %v2373
        %3468 = vmatpush1.bf16.msra.mxu0 %v2372
        %3469 = vmatprep.subr.bf16.mxu0 %v2369
        %3470 = vmatpush1.bf16.msra.mxu0 %v2368
        %3471 = vmatprep.subr.bf16.mxu0 %v2365
        %3472 = vmatpush1.bf16.msra.mxu0 %v2364
        %3473 = vmatprep.subr.bf16.mxu0 %v2361
        %3474 = vmatpush1.bf16.msra.mxu0 %v2360
        %3475 = vmatprep.subr.bf16.mxu0 %v2357
        %3476 = vmatpush1.bf16.msra.mxu0 %v2356
        %3477 = vmatprep.subr.bf16.mxu0 %v2353
        %3478 = vmatpush1.bf16.msra.mxu0 %v2352
        %3479 = vmatprep.subr.bf16.mxu0 %v2349
        %3480 = vmatpush1.bf16.msra.mxu0 %v2348
        %3481 = vmatprep.subr.bf16.mxu0 %v2409
        %3482 = vmatpush2.bf16.msra.mxu0 %v2408
        %3483 = vmatprep.subr.bf16.mxu0 %v2405
        %3484 = vmatpush2.bf16.msra.mxu0 %v2404
        %3485 = vmatprep.subr.bf16.mxu0 %v2401
        %3486 = vmatpush2.bf16.msra.mxu0 %v2400
        %3487 = vmatprep.subr.bf16.mxu0 %v2397
        %3488 = vmatpush2.bf16.msra.mxu0 %v2396
        %3489 = vmatprep.subr.bf16.mxu0 %v2393
        %3490 = vmatpush2.bf16.msra.mxu0 %v2392
        %3491 = vmatprep.subr.bf16.mxu0 %v2389
        %3492 = vmatpush2.bf16.msra.mxu0 %v2388
        %3493 = vmatprep.subr.bf16.mxu0 %v2385
        %3494 = vmatpush2.bf16.msra.mxu0 %v2384
        %3495 = vmatprep.subr.bf16.mxu0 %v2381
        %3496 = vmatpush2.bf16.msra.mxu0 %v2380
        %3497 = vmatprep.mubr.bf16.mxu0 %v648
        %3498 = vmatmul.mubr.bf16.gmra.mxu0 %v647
        %v3499 = vpop.f32.mrf.mxu0
        %v3500 = vadd.f32 %v1089, %v3499
        %v3501 = vpop.f32.mrf.mxu0
        %v3502 = vadd.f32 %v1093, %v3501
        %v3503 = vpop.f32.mrf.mxu0
        %v3504 = vpop.f32.mrf.mxu0
        %3505 = vdwg.mxu0
        %3506 = vmatprep.subr.bf16.mxu0 %v2441
        %3507 = vmatpush1.bf16.msra.mxu0 %v2440
        %3508 = vmatprep.subr.bf16.mxu0 %v2437
        %3509 = vmatpush1.bf16.msra.mxu0 %v2436
        %3510 = vmatprep.subr.bf16.mxu0 %v2433
        %3511 = vmatpush1.bf16.msra.mxu0 %v2432
        %3512 = vmatprep.subr.bf16.mxu0 %v2429
        %3513 = vmatpush1.bf16.msra.mxu0 %v2428
        %3514 = vmatprep.subr.bf16.mxu0 %v2425
        %3515 = vmatpush1.bf16.msra.mxu0 %v2424
        %3516 = vmatprep.subr.bf16.mxu0 %v2421
        %3517 = vmatpush1.bf16.msra.mxu0 %v2420
        %3518 = vmatprep.subr.bf16.mxu0 %v2417
        %3519 = vmatpush1.bf16.msra.mxu0 %v2416
        %3520 = vmatprep.subr.bf16.mxu0 %v2413
        %3521 = vmatpush1.bf16.msra.mxu0 %v2412
        %3522 = vmatprep.subr.bf16.mxu0 %v2473
        %3523 = vmatpush2.bf16.msra.mxu0 %v2472
        %3524 = vmatprep.subr.bf16.mxu0 %v2469
        %3525 = vmatpush2.bf16.msra.mxu0 %v2468
        %3526 = vmatprep.subr.bf16.mxu0 %v2465
        %3527 = vmatpush2.bf16.msra.mxu0 %v2464
        %3528 = vmatprep.subr.bf16.mxu0 %v2461
        %3529 = vmatpush2.bf16.msra.mxu0 %v2460
        %3530 = vmatprep.subr.bf16.mxu0 %v2457
        %3531 = vmatpush2.bf16.msra.mxu0 %v2456
        %3532 = vmatprep.subr.bf16.mxu0 %v2453
        %3533 = vmatpush2.bf16.msra.mxu0 %v2452
        %3534 = vmatprep.subr.bf16.mxu0 %v2449
        %3535 = vmatpush2.bf16.msra.mxu0 %v2448
        %3536 = vmatprep.subr.bf16.mxu0 %v2445
        %3537 = vmatpush2.bf16.msra.mxu0 %v2444
        %3538 = vmatprep.mubr.bf16.mxu0 %v650
        %3539 = vmatmul.mubr.bf16.gmra.mxu0 %v649
        %v3540 = vpop.f32.mrf.mxu0
        %v3541 = vadd.f32 %v3500, %v3540
        %v3542 = vpop.f32.mrf.mxu0
        %v3543 = vadd.f32 %v3502, %v3542
        %v3544 = vpop.f32.mrf.mxu0
        %v3545 = vpop.f32.mrf.mxu0
        %3546 = vdwg.mxu0
        %3547 = vmatprep.subr.bf16.mxu0 %v2505
        %3548 = vmatpush1.bf16.msra.mxu0 %v2504
        %3549 = vmatprep.subr.bf16.mxu0 %v2501
        %3550 = vmatpush1.bf16.msra.mxu0 %v2500
        %3551 = vmatprep.subr.bf16.mxu0 %v2497
        %3552 = vmatpush1.bf16.msra.mxu0 %v2496
        %3553 = vmatprep.subr.bf16.mxu0 %v2493
        %3554 = vmatpush1.bf16.msra.mxu0 %v2492
        %3555 = vmatprep.subr.bf16.mxu0 %v2489
        %3556 = vmatpush1.bf16.msra.mxu0 %v2488
        %3557 = vmatprep.subr.bf16.mxu0 %v2485
        %3558 = vmatpush1.bf16.msra.mxu0 %v2484
        %3559 = vmatprep.subr.bf16.mxu0 %v2481
        %3560 = vmatpush1.bf16.msra.mxu0 %v2480
        %3561 = vmatprep.subr.bf16.mxu0 %v2477
        %3562 = vmatpush1.bf16.msra.mxu0 %v2476
        %3563 = vmatprep.subr.bf16.mxu0 %v2537
        %3564 = vmatpush2.bf16.msra.mxu0 %v2536
        %3565 = vmatprep.subr.bf16.mxu0 %v2533
        %3566 = vmatpush2.bf16.msra.mxu0 %v2532
        %3567 = vmatprep.subr.bf16.mxu0 %v2529
        %3568 = vmatpush2.bf16.msra.mxu0 %v2528
        %3569 = vmatprep.subr.bf16.mxu0 %v2525
        %3570 = vmatpush2.bf16.msra.mxu0 %v2524
        %3571 = vmatprep.subr.bf16.mxu0 %v2521
        %3572 = vmatpush2.bf16.msra.mxu0 %v2520
        %3573 = vmatprep.subr.bf16.mxu0 %v2517
        %3574 = vmatpush2.bf16.msra.mxu0 %v2516
        %3575 = vmatprep.subr.bf16.mxu0 %v2513
        %3576 = vmatpush2.bf16.msra.mxu0 %v2512
        %3577 = vmatprep.subr.bf16.mxu0 %v2509
        %3578 = vmatpush2.bf16.msra.mxu0 %v2508
        %3579 = vmatprep.mubr.bf16.mxu0 %v652
        %3580 = vmatmul.mubr.bf16.gmra.mxu0 %v651
        %v3581 = vpop.f32.mrf.mxu0
        %v3582 = vadd.f32 %v3541, %v3581
        %v3583 = vpop.f32.mrf.mxu0
        %v3584 = vadd.f32 %v3543, %v3583
        %v3585 = vpop.f32.mrf.mxu0
        %v3586 = vpop.f32.mrf.mxu0
        %3587 = vdwg.mxu0
        %3588 = vmatprep.subr.bf16.mxu0 %v2569
        %3589 = vmatpush1.bf16.msra.mxu0 %v2568
        %3590 = vmatprep.subr.bf16.mxu0 %v2565
        %3591 = vmatpush1.bf16.msra.mxu0 %v2564
        %3592 = vmatprep.subr.bf16.mxu0 %v2561
        %3593 = vmatpush1.bf16.msra.mxu0 %v2560
        %3594 = vmatprep.subr.bf16.mxu0 %v2557
        %3595 = vmatpush1.bf16.msra.mxu0 %v2556
        %3596 = vmatprep.subr.bf16.mxu0 %v2553
        %3597 = vmatpush1.bf16.msra.mxu0 %v2552
        %3598 = vmatprep.subr.bf16.mxu0 %v2549
        %3599 = vmatpush1.bf16.msra.mxu0 %v2548
        %3600 = vmatprep.subr.bf16.mxu0 %v2545
        %3601 = vmatpush1.bf16.msra.mxu0 %v2544
        %3602 = vmatprep.subr.bf16.mxu0 %v2541
        %3603 = vmatpush1.bf16.msra.mxu0 %v2540
        %3604 = vmatprep.subr.bf16.mxu0 %v2601
        %3605 = vmatpush2.bf16.msra.mxu0 %v2600
        %3606 = vmatprep.subr.bf16.mxu0 %v2597
        %3607 = vmatpush2.bf16.msra.mxu0 %v2596
        %3608 = vmatprep.subr.bf16.mxu0 %v2593
        %3609 = vmatpush2.bf16.msra.mxu0 %v2592
        %3610 = vmatprep.subr.bf16.mxu0 %v2589
        %3611 = vmatpush2.bf16.msra.mxu0 %v2588
        %3612 = vmatprep.subr.bf16.mxu0 %v2585
        %3613 = vmatpush2.bf16.msra.mxu0 %v2584
        %3614 = vmatprep.subr.bf16.mxu0 %v2581
        %3615 = vmatpush2.bf16.msra.mxu0 %v2580
        %3616 = vmatprep.subr.bf16.mxu0 %v2577
        %3617 = vmatpush2.bf16.msra.mxu0 %v2576
        %3618 = vmatprep.subr.bf16.mxu0 %v2573
        %3619 = vmatpush2.bf16.msra.mxu0 %v2572
        %3620 = vmatprep.mubr.bf16.mxu0 %v654
        %3621 = vmatmul.mubr.bf16.gmra.mxu0 %v653
        %v3622 = vpop.f32.mrf.mxu0
        %v3623 = vadd.f32 %v3582, %v3622
        %v3624 = vpop.f32.mrf.mxu0
        %v3625 = vadd.f32 %v3584, %v3624
        %v3626 = vpop.f32.mrf.mxu0
        %v3627 = vpop.f32.mrf.mxu0
        %3628 = vdwg.mxu0
        %3629 = vmatprep.subr.bf16.mxu0 %v2633
        %3630 = vmatpush1.bf16.msra.mxu0 %v2632
        %3631 = vmatprep.subr.bf16.mxu0 %v2629
        %3632 = vmatpush1.bf16.msra.mxu0 %v2628
        %3633 = vmatprep.subr.bf16.mxu0 %v2625
        %3634 = vmatpush1.bf16.msra.mxu0 %v2624
        %3635 = vmatprep.subr.bf16.mxu0 %v2621
        %3636 = vmatpush1.bf16.msra.mxu0 %v2620
        %3637 = vmatprep.subr.bf16.mxu0 %v2617
        %3638 = vmatpush1.bf16.msra.mxu0 %v2616
        %3639 = vmatprep.subr.bf16.mxu0 %v2613
        %3640 = vmatpush1.bf16.msra.mxu0 %v2612
        %3641 = vmatprep.subr.bf16.mxu0 %v2609
        %3642 = vmatpush1.bf16.msra.mxu0 %v2608
        %3643 = vmatprep.subr.bf16.mxu0 %v2605
        %3644 = vmatpush1.bf16.msra.mxu0 %v2604
        %3645 = vmatprep.subr.bf16.mxu0 %v2665
        %3646 = vmatpush2.bf16.msra.mxu0 %v2664
        %3647 = vmatprep.subr.bf16.mxu0 %v2661
        %3648 = vmatpush2.bf16.msra.mxu0 %v2660
        %3649 = vmatprep.subr.bf16.mxu0 %v2657
        %3650 = vmatpush2.bf16.msra.mxu0 %v2656
        %3651 = vmatprep.subr.bf16.mxu0 %v2653
        %3652 = vmatpush2.bf16.msra.mxu0 %v2652
        %3653 = vmatprep.subr.bf16.mxu0 %v2649
        %3654 = vmatpush2.bf16.msra.mxu0 %v2648
        %3655 = vmatprep.subr.bf16.mxu0 %v2645
        %3656 = vmatpush2.bf16.msra.mxu0 %v2644
        %3657 = vmatprep.subr.bf16.mxu0 %v2641
        %3658 = vmatpush2.bf16.msra.mxu0 %v2640
        %3659 = vmatprep.subr.bf16.mxu0 %v2637
        %3660 = vmatpush2.bf16.msra.mxu0 %v2636
        %3661 = vmatprep.mubr.bf16.mxu0 %v656
        %3662 = vmatmul.mubr.bf16.gmra.mxu0 %v655
        %v3663 = vpop.f32.mrf.mxu0
        %v3664 = vadd.f32 %v3623, %v3663
        %v3665 = vpop.f32.mrf.mxu0
        %v3666 = vadd.f32 %v3625, %v3665
        %v3667 = vpop.f32.mrf.mxu0
        %v3668 = vpop.f32.mrf.mxu0
        %3669 = vdwg.mxu0
        %3670 = vmatprep.subr.bf16.mxu0 %v2697
        %3671 = vmatpush1.bf16.msra.mxu0 %v2696
        %3672 = vmatprep.subr.bf16.mxu0 %v2693
        %3673 = vmatpush1.bf16.msra.mxu0 %v2692
        %3674 = vmatprep.subr.bf16.mxu0 %v2689
        %3675 = vmatpush1.bf16.msra.mxu0 %v2688
        %3676 = vmatprep.subr.bf16.mxu0 %v2685
        %3677 = vmatpush1.bf16.msra.mxu0 %v2684
        %3678 = vmatprep.subr.bf16.mxu0 %v2681
        %3679 = vmatpush1.bf16.msra.mxu0 %v2680
        %3680 = vmatprep.subr.bf16.mxu0 %v2677
        %3681 = vmatpush1.bf16.msra.mxu0 %v2676
        %3682 = vmatprep.subr.bf16.mxu0 %v2673
        %3683 = vmatpush1.bf16.msra.mxu0 %v2672
        %3684 = vmatprep.subr.bf16.mxu0 %v2669
        %3685 = vmatpush1.bf16.msra.mxu0 %v2668
        %3686 = vmatprep.subr.bf16.mxu0 %v2729
        %3687 = vmatpush2.bf16.msra.mxu0 %v2728
        %3688 = vmatprep.subr.bf16.mxu0 %v2725
        %3689 = vmatpush2.bf16.msra.mxu0 %v2724
        %3690 = vmatprep.subr.bf16.mxu0 %v2721
        %3691 = vmatpush2.bf16.msra.mxu0 %v2720
        %3692 = vmatprep.subr.bf16.mxu0 %v2717
        %3693 = vmatpush2.bf16.msra.mxu0 %v2716
        %3694 = vmatprep.subr.bf16.mxu0 %v2713
        %3695 = vmatpush2.bf16.msra.mxu0 %v2712
        %3696 = vmatprep.subr.bf16.mxu0 %v2709
        %3697 = vmatpush2.bf16.msra.mxu0 %v2708
        %3698 = vmatprep.subr.bf16.mxu0 %v2705
        %3699 = vmatpush2.bf16.msra.mxu0 %v2704
        %3700 = vmatprep.subr.bf16.mxu0 %v2701
        %3701 = vmatpush2.bf16.msra.mxu0 %v2700
        %3702 = vmatprep.mubr.bf16.mxu0 %v658
        %3703 = vmatmul.mubr.bf16.gmra.mxu0 %v657
        %v3704 = vpop.f32.mrf.mxu0
        %v3705 = vadd.f32 %v3664, %v3704
        %v3706 = vpop.f32.mrf.mxu0
        %v3707 = vadd.f32 %v3666, %v3706
        %v3708 = vpop.f32.mrf.mxu0
        %v3709 = vpop.f32.mrf.mxu0
        %3710 = vdwg.mxu0
        %3711 = vmatprep.subr.bf16.mxu0 %v2761
        %3712 = vmatpush1.bf16.msra.mxu0 %v2760
        %3713 = vmatprep.subr.bf16.mxu0 %v2757
        %3714 = vmatpush1.bf16.msra.mxu0 %v2756
        %3715 = vmatprep.subr.bf16.mxu0 %v2753
        %3716 = vmatpush1.bf16.msra.mxu0 %v2752
        %3717 = vmatprep.subr.bf16.mxu0 %v2749
        %3718 = vmatpush1.bf16.msra.mxu0 %v2748
        %3719 = vmatprep.subr.bf16.mxu0 %v2745
        %3720 = vmatpush1.bf16.msra.mxu0 %v2744
        %3721 = vmatprep.subr.bf16.mxu0 %v2741
        %3722 = vmatpush1.bf16.msra.mxu0 %v2740
        %3723 = vmatprep.subr.bf16.mxu0 %v2737
        %3724 = vmatpush1.bf16.msra.mxu0 %v2736
        %3725 = vmatprep.subr.bf16.mxu0 %v2733
        %3726 = vmatpush1.bf16.msra.mxu0 %v2732
        %3727 = vmatprep.subr.bf16.mxu0 0
        %3728 = vmatpush2.bf16.msra.mxu0 0
        %3729 = vmatprep.subr.bf16.mxu0 0
        %3730 = vmatpush2.bf16.msra.mxu0 0
        %3731 = vmatprep.subr.bf16.mxu0 0
        %3732 = vmatpush2.bf16.msra.mxu0 0
        %3733 = vmatprep.subr.bf16.mxu0 0
        %3734 = vmatpush2.bf16.msra.mxu0 0
        %3735 = vmatprep.subr.bf16.mxu0 0
        %3736 = vmatpush2.bf16.msra.mxu0 0
        %3737 = vmatprep.subr.bf16.mxu0 0
        %3738 = vmatpush2.bf16.msra.mxu0 0
        %3739 = vmatprep.subr.bf16.mxu0 0
        %3740 = vmatpush2.bf16.msra.mxu0 0
        %3741 = vmatprep.subr.bf16.mxu0 0
        %3742 = vmatpush2.bf16.msra.mxu0 0
        %3743 = vmatprep.mubr.bf16.mxu0 0
        %3744 = vmatmul.mubr.bf16.gmra.mxu0 %v659
        %v3745 = vpop.f32.mrf.mxu0
        %v3746 = vadd.f32 %v3705, %v3745
        %v3747 = vpop.f32.mrf.mxu0
        %v3748 = vadd.f32 %v3707, %v3747
        %v3749 = vpop.f32.mrf.mxu0
        %v3750 = vpop.f32.mrf.mxu0
        %3751 = vdwg.mxu0
        %v3752 = vmax.f32 %v3459, 0.0
        %v3753 = vmax.f32 %v3461, 0.0
        %v3754 = vmax.f32 %v3746, 0.0
        %v3755 = vmax.f32 %v3748, 0.0
        %v3756 = vrot.slane %v3752, 4
        %v3757 = vadd.f32 %v3752, %v3756
        %v3758 = vrot.slane %v3757, 2
        %v3759 = vadd.f32 %v3757, %v3758
        %v3760 = vrot.slane %v3759, 1
        %v3761 = vadd.f32 %v3759, %v3760
        %v3762 = vrot.slane %v3753, 4
        %v3763 = vadd.f32 %v3753, %v3762
        %v3764 = vrot.slane %v3763, 2
        %v3765 = vadd.f32 %v3763, %v3764
        %v3766 = vrot.slane %v3765, 1
        %v3767 = vadd.f32 %v3765, %v3766
        %v3768 = vrot.slane %v3754, 4
        %v3769 = vadd.f32 %v3754, %v3768
        %v3770 = vrot.slane %v3769, 2
        %v3771 = vadd.f32 %v3769, %v3770
        %v3772 = vrot.slane %v3771, 1
        %v3773 = vadd.f32 %v3771, %v3772
        %v3774 = vrot.slane %v3755, 4
        %v3775 = vadd.f32 %v3755, %v3774
        %v3776 = vrot.slane %v3775, 2
        %v3777 = vadd.f32 %v3775, %v3776
        %v3778 = vrot.slane %v3777, 1
        %v3779 = vadd.f32 %v3777, %v3778
        %v3780 = vrcp.pop 8.0
        %v3781 = vmul.f32 %v3761, %v3780
        %v3782 = vmul.f32 %v3767, %v3780
        %v3783 = vmul.f32 %v3773, %v3780
        %v3784 = vmul.f32 %v3779, %v3780
        %v3785 = vmul.f32 %v3752, %v3752
        %v3786 = vmul.f32 %v3753, %v3753
        %v3787 = vmul.f32 %v3754, %v3754
        %v3788 = vmul.f32 %v3755, %v3755
        %v3789 = vrot.slane %v3785, 4
        %v3790 = vadd.f32 %v3785, %v3789
        %v3791 = vrot.slane %v3790, 2
        %v3792 = vadd.f32 %v3790, %v3791
        %v3793 = vrot.slane %v3792, 1
        %v3794 = vadd.f32 %v3792, %v3793
        %v3795 = vrot.slane %v3786, 4
        %v3796 = vadd.f32 %v3786, %v3795
        %v3797 = vrot.slane %v3796, 2
        %v3798 = vadd.f32 %v3796, %v3797
        %v3799 = vrot.slane %v3798, 1
        %v3800 = vadd.f32 %v3798, %v3799
        %v3801 = vrot.slane %v3787, 4
        %v3802 = vadd.f32 %v3787, %v3801
        %v3803 = vrot.slane %v3802, 2
        %v3804 = vadd.f32 %v3802, %v3803
        %v3805 = vrot.slane %v3804, 1
        %v3806 = vadd.f32 %v3804, %v3805
        %v3807 = vrot.slane %v3788, 4
        %v3808 = vadd.f32 %v3788, %v3807
        %v3809 = vrot.slane %v3808, 2
        %v3810 = vadd.f32 %v3808, %v3809
        %v3811 = vrot.slane %v3810, 1
        %v3812 = vadd.f32 %v3810, %v3811
        %v3813 = vmul.f32 %v3794, %v3780
        %v3814 = vmul.f32 %v3800, %v3780
        %v3815 = vmul.f32 %v3806, %v3780
        %v3816 = vmul.f32 %v3812, %v3780
        %v3817 = vmul.f32 %v3781, %v3781
        %v3818 = vmul.f32 %v3782, %v3782
        %v3819 = vmul.f32 %v3783, %v3783
        %v3820 = vmul.f32 %v3784, %v3784
        %v3821 = vsub.f32 %v3813, %v3817
        %v3822 = vsub.f32 %v3814, %v3818
        %v3823 = vsub.f32 %v3815, %v3819
        %v3824 = vsub.f32 %v3816, %v3820
        %v3825 = vmax.f32 %v3821, 0.0
        %v3826 = vmax.f32 %v3822, 0.0
        %v3827 = vmax.f32 %v3823, 0.0
        %v3828 = vmax.f32 %v3824, 0.0
        %v3829 = vsub.f32 %v3752, %v3781
        %v3830 = vsub.f32 %v3753, %v3782
        %v3831 = vsub.f32 %v3754, %v3783
        %v3832 = vsub.f32 %v3755, %v3784
        %v3833 = vadd.f32 %v3825, 1e-05
        %v3834 = vadd.f32 %v3826, 1e-05
        %v3835 = vadd.f32 %v3827, 1e-05
        %v3836 = vadd.f32 %v3828, 1e-05
        %v3837 = vrsqrt.pop %v3833
        %v3838 = vrsqrt.pop %v3834
        %v3839 = vrsqrt.pop %v3835
        %v3840 = vrsqrt.pop %v3836
        %v3841 = vmul.f32 %v3829, %v3837
        %v3842 = vmul.f32 %v3830, %v3838
        %v3843 = vmul.f32 %v3831, %v3839
        %v3844 = vmul.f32 %v3832, %v3840
        %v3845 = vpack.c.bf16 %v3841, %v3841
        %v3846 = vpack.c.bf16 %v3842, %v3842
        %v3847 = vpack.c.bf16 %v3843, %v3843
        %v3848 = vpack.c.bf16 %v3844, %v3844
        %v3849 = vld [vmem:[%s523] sm:$0xff]
        %v3850 = vld [vmem:[%s523 + $0x8] sm:$0xff]
        %v3851 = vld [vmem:[%s523 + $0x10] sm:$0xff]
        %v3852 = vld [vmem:[%s523 + $0x18] sm:$0xff]
        %v3853 = vld [vmem:[%s523 + $0x20] sm:$0xff]
        %v3854 = vld [vmem:[%s523 + $0x28] sm:$0xff]
        %v3855 = vld [vmem:[%s523 + $0x30] sm:$0xff]
        %v3856 = vld [vmem:[%s523 + $0x38] sm:$0xff]
        %v3857 = vld [vmem:[%s523 + $0x40] sm:$0xff]
        %v3858 = vld [vmem:[%s523 + $0x48] sm:$0xff]
        %v3859 = vld [vmem:[%s523 + $0x50] sm:$0xff]
        %v3860 = vld [vmem:[%s523 + $0x58] sm:$0xff]
        %v3861 = vld [vmem:[%s523 + $0x60] sm:$0xff]
        %v3862 = vld [vmem:[%s523 + $0x68] sm:$0xff]
        %v3863 = vld [vmem:[%s523 + $0x70] sm:$0xff]
        %v3864 = vld [vmem:[%s523 + $0x78] sm:$0xff]
        %v3865 = vld [vmem:[%s523 + $0x80] sm:$0xff]
        %v3866 = vld [vmem:[%s523 + $0x88] sm:$0xff]
        %v3867 = vld [vmem:[%s523 + $0x90] sm:$0xff]
        %v3868 = vld [vmem:[%s523 + $0x98] sm:$0xff]
        %v3869 = vld [vmem:[%s523 + $0xa0] sm:$0xff]
        %v3870 = vld [vmem:[%s523 + $0xa8] sm:$0xff]
        %v3871 = vld [vmem:[%s523 + $0xb0] sm:$0xff]
        %v3872 = vld [vmem:[%s523 + $0xb8] sm:$0xff]
        %v3873 = vld [vmem:[%s523 + $0xc0] sm:$0xff]
        %v3874 = vld [vmem:[%s523 + $0xc8] sm:$0xff]
        %v3875 = vld [vmem:[%s523 + $0xd0] sm:$0xff]
        %v3876 = vld [vmem:[%s523 + $0xd8] sm:$0xff]
        %v3877 = vld [vmem:[%s523 + $0xe0] sm:$0xff]
        %v3878 = vld [vmem:[%s523 + $0xe8] sm:$0xff]
        %v3879 = vld [vmem:[%s523 + $0xf0] sm:$0xff]
        %v3880 = vld [vmem:[%s523 + $0xf8] sm:$0xff]
        %v3881 = vld [vmem:[%s523 + $0x100] sm:$0xff]
        %v3882 = vld [vmem:[%s523 + $0x108] sm:$0xff]
        %v3883 = vld [vmem:[%s523 + $0x110] sm:$0xff]
        %v3884 = vld [vmem:[%s523 + $0x118] sm:$0xff]
        %v3885 = vld [vmem:[%s523 + $0x120] sm:$0xff]
        %v3886 = vld [vmem:[%s523 + $0x128] sm:$0xff]
        %v3887 = vld [vmem:[%s523 + $0x130] sm:$0xff]
        %v3888 = vld [vmem:[%s523 + $0x138] sm:$0xff]
        %v3889 = vld [vmem:[%s523 + $0x140] sm:$0xff]
        %v3890 = vld [vmem:[%s523 + $0x148] sm:$0xff]
        %v3891 = vld [vmem:[%s523 + $0x150] sm:$0xff]
        %v3892 = vld [vmem:[%s523 + $0x158] sm:$0xff]
        %v3893 = vld [vmem:[%s523 + $0x160] sm:$0xff]
        %v3894 = vld [vmem:[%s523 + $0x168] sm:$0xff]
        %v3895 = vld [vmem:[%s523 + $0x170] sm:$0xff]
        %v3896 = vld [vmem:[%s523 + $0x178] sm:$0xff]
        %v3897 = vld [vmem:[%s523 + $0x180] sm:$0xff]
        %v3898 = vld [vmem:[%s523 + $0x188] sm:$0xff]
        %v3899 = vld [vmem:[%s523 + $0x190] sm:$0xff]
        %v3900 = vld [vmem:[%s523 + $0x198] sm:$0xff]
        %v3901 = vld [vmem:[%s523 + $0x1a0] sm:$0xff]
        %v3902 = vld [vmem:[%s523 + $0x1a8] sm:$0xff]
        %v3903 = vld [vmem:[%s523 + $0x1b0] sm:$0xff]
        %v3904 = vld [vmem:[%s523 + $0x1b8] sm:$0xff]
        %v3905 = vld [vmem:[%s523 + $0x1c0] sm:$0xff]
        %v3906 = vld [vmem:[%s523 + $0x1c8] sm:$0xff]
        %v3907 = vld [vmem:[%s523 + $0x1d0] sm:$0xff]
        %v3908 = vld [vmem:[%s523 + $0x1d8] sm:$0xff]
        %v3909 = vld [vmem:[%s523 + $0x1e0] sm:$0xff]
        %v3910 = vld [vmem:[%s523 + $0x1e8] sm:$0xff]
        %v3911 = vld [vmem:[%s523 + $0x1f0] sm:$0xff]
        %v3912 = vld [vmem:[%s523 + $0x1f8] sm:$0xff]
        %v3977 = vunpack.c.l.b16 %v3849
        %v3978 = vunpack.c.h.b16 %v3849
        %v3979 = vunpack.c.l.b16 %v3850
        %v3980 = vunpack.c.h.b16 %v3850
        %v3981 = vunpack.c.l.b16 %v3851
        %v3982 = vunpack.c.h.b16 %v3851
        %v3983 = vunpack.c.l.b16 %v3852
        %v3984 = vunpack.c.h.b16 %v3852
        %v3985 = vunpack.c.l.b16 %v3853
        %v3986 = vunpack.c.h.b16 %v3853
        %v3987 = vunpack.c.l.b16 %v3854
        %v3988 = vunpack.c.h.b16 %v3854
        %v3989 = vunpack.c.l.b16 %v3855
        %v3990 = vunpack.c.h.b16 %v3855
        %v3991 = vunpack.c.l.b16 %v3856
        %v3992 = vunpack.c.h.b16 %v3856
        %v3993 = vunpack.c.l.b16 %v3857
        %v3994 = vunpack.c.h.b16 %v3857
        %v3995 = vunpack.c.l.b16 %v3858
        %v3996 = vunpack.c.h.b16 %v3858
        %v3997 = vunpack.c.l.b16 %v3859
        %v3998 = vunpack.c.h.b16 %v3859
        %v3999 = vunpack.c.l.b16 %v3860
        %v4000 = vunpack.c.h.b16 %v3860
        %v4001 = vunpack.c.l.b16 %v3861
        %v4002 = vunpack.c.h.b16 %v3861
        %v4003 = vunpack.c.l.b16 %v3862
        %v4004 = vunpack.c.h.b16 %v3862
        %v4005 = vunpack.c.l.b16 %v3863
        %v4006 = vunpack.c.h.b16 %v3863
        %v4007 = vunpack.c.l.b16 %v3864
        %v4008 = vunpack.c.h.b16 %v3864
        %v4009 = vunpack.c.l.b16 %v3865
        %v4010 = vunpack.c.h.b16 %v3865
        %v4011 = vunpack.c.l.b16 %v3866
        %v4012 = vunpack.c.h.b16 %v3866
        %v4013 = vunpack.c.l.b16 %v3867
        %v4014 = vunpack.c.h.b16 %v3867
        %v4015 = vunpack.c.l.b16 %v3868
        %v4016 = vunpack.c.h.b16 %v3868
        %v4017 = vunpack.c.l.b16 %v3869
        %v4018 = vunpack.c.h.b16 %v3869
        %v4019 = vunpack.c.l.b16 %v3870
        %v4020 = vunpack.c.h.b16 %v3870
        %v4021 = vunpack.c.l.b16 %v3871
        %v4022 = vunpack.c.h.b16 %v3871
        %v4023 = vunpack.c.l.b16 %v3872
        %v4024 = vunpack.c.h.b16 %v3872
        %v4025 = vunpack.c.l.b16 %v3873
        %v4026 = vunpack.c.h.b16 %v3873
        %v4027 = vunpack.c.l.b16 %v3874
        %v4028 = vunpack.c.h.b16 %v3874
        %v4029 = vunpack.c.l.b16 %v3875
        %v4030 = vunpack.c.h.b16 %v3875
        %v4031 = vunpack.c.l.b16 %v3876
        %v4032 = vunpack.c.h.b16 %v3876
        %v4033 = vunpack.c.l.b16 %v3877
        %v4034 = vunpack.c.h.b16 %v3877
        %v4035 = vunpack.c.l.b16 %v3878
        %v4036 = vunpack.c.h.b16 %v3878
        %v4037 = vunpack.c.l.b16 %v3879
        %v4038 = vunpack.c.h.b16 %v3879
        %v4039 = vunpack.c.l.b16 %v3880
        %v4040 = vunpack.c.h.b16 %v3880
        %v4041 = vunpack.c.l.b16 %v3881
        %v4042 = vunpack.c.h.b16 %v3881
        %v4043 = vunpack.c.l.b16 %v3882
        %v4044 = vunpack.c.h.b16 %v3882
        %v4045 = vunpack.c.l.b16 %v3883
        %v4046 = vunpack.c.h.b16 %v3883
        %v4047 = vunpack.c.l.b16 %v3884
        %v4048 = vunpack.c.h.b16 %v3884
        %v4049 = vunpack.c.l.b16 %v3885
        %v4050 = vunpack.c.h.b16 %v3885
        %v4051 = vunpack.c.l.b16 %v3886
        %v4052 = vunpack.c.h.b16 %v3886
        %v4053 = vunpack.c.l.b16 %v3887
        %v4054 = vunpack.c.h.b16 %v3887
        %v4055 = vunpack.c.l.b16 %v3888
        %v4056 = vunpack.c.h.b16 %v3888
        %v4057 = vunpack.c.l.b16 %v3889
        %v4058 = vunpack.c.h.b16 %v3889
        %v4059 = vunpack.c.l.b16 %v3890
        %v4060 = vunpack.c.h.b16 %v3890
        %v4061 = vunpack.c.l.b16 %v3891
        %v4062 = vunpack.c.h.b16 %v3891
        %v4063 = vunpack.c.l.b16 %v3892
        %v4064 = vunpack.c.h.b16 %v3892
        %v4065 = vunpack.c.l.b16 %v3893
        %v4066 = vunpack.c.h.b16 %v3893
        %v4067 = vunpack.c.l.b16 %v3894
        %v4068 = vunpack.c.h.b16 %v3894
        %v4069 = vunpack.c.l.b16 %v3895
        %v4070 = vunpack.c.h.b16 %v3895
        %v4071 = vunpack.c.l.b16 %v3896
        %v4072 = vunpack.c.h.b16 %v3896
        %v4073 = vunpack.c.l.b16 %v3897
        %v4074 = vunpack.c.h.b16 %v3897
        %v4075 = vunpack.c.l.b16 %v3898
        %v4076 = vunpack.c.h.b16 %v3898
        %v4077 = vunpack.c.l.b16 %v3899
        %v4078 = vunpack.c.h.b16 %v3899
        %v4079 = vunpack.c.l.b16 %v3900
        %v4080 = vunpack.c.h.b16 %v3900
        %v4081 = vunpack.c.l.b16 %v3901
        %v4082 = vunpack.c.h.b16 %v3901
        %v4083 = vunpack.c.l.b16 %v3902
        %v4084 = vunpack.c.h.b16 %v3902
        %v4085 = vunpack.c.l.b16 %v3903
        %v4086 = vunpack.c.h.b16 %v3903
        %v4087 = vunpack.c.l.b16 %v3904
        %v4088 = vunpack.c.h.b16 %v3904
        %v4089 = vunpack.c.l.b16 %v3905
        %v4090 = vunpack.c.h.b16 %v3905
        %v4091 = vunpack.c.l.b16 %v3906
        %v4092 = vunpack.c.h.b16 %v3906
        %v4093 = vunpack.c.l.b16 %v3907
        %v4094 = vunpack.c.h.b16 %v3907
        %v4095 = vunpack.c.l.b16 %v3908
        %v4096 = vunpack.c.h.b16 %v3908
        %v4097 = vunpack.c.l.b16 %v3909
        %v4098 = vunpack.c.h.b16 %v3909
        %v4099 = vunpack.c.l.b16 %v3910
        %v4100 = vunpack.c.h.b16 %v3910
        %v4101 = vunpack.c.l.b16 %v3911
        %v4102 = vunpack.c.h.b16 %v3911
        %v4103 = vunpack.c.l.b16 %v3912
        %v4104 = vunpack.c.h.b16 %v3912
        %v4105 = vpack.c.b16 %v3979, %v3977
        %v4106 = vpack.c.b16 %v3980, %v3978
        %v4107 = vpack.c.b16 %v3983, %v3981
        %v4108 = vpack.c.b16 %v3984, %v3982
        %v4109 = vpack.c.b16 %v3987, %v3985
        %v4110 = vpack.c.b16 %v3988, %v3986
        %v4111 = vpack.c.b16 %v3991, %v3989
        %v4112 = vpack.c.b16 %v3992, %v3990
        %v4113 = vpack.c.b16 %v3995, %v3993
        %v4114 = vpack.c.b16 %v3996, %v3994
        %v4115 = vpack.c.b16 %v3999, %v3997
        %v4116 = vpack.c.b16 %v4000, %v3998
        %v4117 = vpack.c.b16 %v4003, %v4001
        %v4118 = vpack.c.b16 %v4004, %v4002
        %v4119 = vpack.c.b16 %v4007, %v4005
        %v4120 = vpack.c.b16 %v4008, %v4006
        %v4121 = vpack.c.b16 %v4011, %v4009
        %v4122 = vpack.c.b16 %v4012, %v4010
        %v4123 = vpack.c.b16 %v4015, %v4013
        %v4124 = vpack.c.b16 %v4016, %v4014
        %v4125 = vpack.c.b16 %v4019, %v4017
        %v4126 = vpack.c.b16 %v4020, %v4018
        %v4127 = vpack.c.b16 %v4023, %v4021
        %v4128 = vpack.c.b16 %v4024, %v4022
        %v4129 = vpack.c.b16 %v4027, %v4025
        %v4130 = vpack.c.b16 %v4028, %v4026
        %v4131 = vpack.c.b16 %v4031, %v4029
        %v4132 = vpack.c.b16 %v4032, %v4030
        %v4133 = vpack.c.b16 %v4035, %v4033
        %v4134 = vpack.c.b16 %v4036, %v4034
        %v4135 = vpack.c.b16 %v4039, %v4037
        %v4136 = vpack.c.b16 %v4040, %v4038
        %v4137 = vpack.c.b16 %v4043, %v4041
        %v4138 = vpack.c.b16 %v4044, %v4042
        %v4139 = vpack.c.b16 %v4047, %v4045
        %v4140 = vpack.c.b16 %v4048, %v4046
        %v4141 = vpack.c.b16 %v4051, %v4049
        %v4142 = vpack.c.b16 %v4052, %v4050
        %v4143 = vpack.c.b16 %v4055, %v4053
        %v4144 = vpack.c.b16 %v4056, %v4054
        %v4145 = vpack.c.b16 %v4059, %v4057
        %v4146 = vpack.c.b16 %v4060, %v4058
        %v4147 = vpack.c.b16 %v4063, %v4061
        %v4148 = vpack.c.b16 %v4064, %v4062
        %v4149 = vpack.c.b16 %v4067, %v4065
        %v4150 = vpack.c.b16 %v4068, %v4066
        %v4151 = vpack.c.b16 %v4071, %v4069
        %v4152 = vpack.c.b16 %v4072, %v4070
        %v4153 = vpack.c.b16 %v4075, %v4073
        %v4154 = vpack.c.b16 %v4076, %v4074
        %v4155 = vpack.c.b16 %v4079, %v4077
        %v4156 = vpack.c.b16 %v4080, %v4078
        %v4157 = vpack.c.b16 %v4083, %v4081
        %v4158 = vpack.c.b16 %v4084, %v4082
        %v4159 = vpack.c.b16 %v4087, %v4085
        %v4160 = vpack.c.b16 %v4088, %v4086
        %v4161 = vpack.c.b16 %v4091, %v4089
        %v4162 = vpack.c.b16 %v4092, %v4090
        %v4163 = vpack.c.b16 %v4095, %v4093
        %v4164 = vpack.c.b16 %v4096, %v4094
        %v4165 = vpack.c.b16 %v4099, %v4097
        %v4166 = vpack.c.b16 %v4100, %v4098
        %v4167 = vpack.c.b16 %v4103, %v4101
        %v4168 = vpack.c.b16 %v4104, %v4102
        %4233 = vmatprep.subr.bf16.mxu0 %v4120
        %4234 = vmatpush1.bf16.msra.mxu0 %v4119
        %4235 = vmatprep.subr.bf16.mxu0 %v4118
        %4236 = vmatpush1.bf16.msra.mxu0 %v4117
        %4237 = vmatprep.subr.bf16.mxu0 %v4116
        %4238 = vmatpush1.bf16.msra.mxu0 %v4115
        %4239 = vmatprep.subr.bf16.mxu0 %v4114
        %4240 = vmatpush1.bf16.msra.mxu0 %v4113
        %4241 = vmatprep.subr.bf16.mxu0 %v4112
        %4242 = vmatpush1.bf16.msra.mxu0 %v4111
        %4243 = vmatprep.subr.bf16.mxu0 %v4110
        %4244 = vmatpush1.bf16.msra.mxu0 %v4109
        %4245 = vmatprep.subr.bf16.mxu0 %v4108
        %4246 = vmatpush1.bf16.msra.mxu0 %v4107
        %4247 = vmatprep.subr.bf16.mxu0 %v4106
        %4248 = vmatpush1.bf16.msra.mxu0 %v4105
        %4249 = vmatprep.subr.bf16.mxu0 %v4136
        %4250 = vmatpush2.bf16.msra.mxu0 %v4135
        %4251 = vmatprep.subr.bf16.mxu0 %v4134
        %4252 = vmatpush2.bf16.msra.mxu0 %v4133
        %4253 = vmatprep.subr.bf16.mxu0 %v4132
        %4254 = vmatpush2.bf16.msra.mxu0 %v4131
        %4255 = vmatprep.subr.bf16.mxu0 %v4130
        %4256 = vmatpush2.bf16.msra.mxu0 %v4129
        %4257 = vmatprep.subr.bf16.mxu0 %v4128
        %4258 = vmatpush2.bf16.msra.mxu0 %v4127
        %4259 = vmatprep.subr.bf16.mxu0 %v4126
        %4260 = vmatpush2.bf16.msra.mxu0 %v4125
        %4261 = vmatprep.subr.bf16.mxu0 %v4124
        %4262 = vmatpush2.bf16.msra.mxu0 %v4123
        %4263 = vmatprep.subr.bf16.mxu0 %v4122
        %4264 = vmatpush2.bf16.msra.mxu0 %v4121
        %4265 = vmatprep.mubr.bf16.mxu0 %v3846
        %4266 = vmatmul.mubr.bf16.gmra.mxu0 %v3845
        %v4267 = vpop.f32.mrf.mxu0
        %v4268 = vadd.f32 0.0, %v4267
        %v4269 = vpop.f32.mrf.mxu0
        %v4270 = vadd.f32 0.0, %v4269
        %v4271 = vpop.f32.mrf.mxu0
        %v4272 = vpop.f32.mrf.mxu0
        %4273 = vdwg.mxu0
        %4274 = vmatprep.subr.bf16.mxu0 %v4152
        %4275 = vmatpush1.bf16.msra.mxu0 %v4151
        %4276 = vmatprep.subr.bf16.mxu0 %v4150
        %4277 = vmatpush1.bf16.msra.mxu0 %v4149
        %4278 = vmatprep.subr.bf16.mxu0 %v4148
        %4279 = vmatpush1.bf16.msra.mxu0 %v4147
        %4280 = vmatprep.subr.bf16.mxu0 %v4146
        %4281 = vmatpush1.bf16.msra.mxu0 %v4145
        %4282 = vmatprep.subr.bf16.mxu0 %v4144
        %4283 = vmatpush1.bf16.msra.mxu0 %v4143
        %4284 = vmatprep.subr.bf16.mxu0 %v4142
        %4285 = vmatpush1.bf16.msra.mxu0 %v4141
        %4286 = vmatprep.subr.bf16.mxu0 %v4140
        %4287 = vmatpush1.bf16.msra.mxu0 %v4139
        %4288 = vmatprep.subr.bf16.mxu0 %v4138
        %4289 = vmatpush1.bf16.msra.mxu0 %v4137
        %4290 = vmatprep.subr.bf16.mxu0 %v4168
        %4291 = vmatpush2.bf16.msra.mxu0 %v4167
        %4292 = vmatprep.subr.bf16.mxu0 %v4166
        %4293 = vmatpush2.bf16.msra.mxu0 %v4165
        %4294 = vmatprep.subr.bf16.mxu0 %v4164
        %4295 = vmatpush2.bf16.msra.mxu0 %v4163
        %4296 = vmatprep.subr.bf16.mxu0 %v4162
        %4297 = vmatpush2.bf16.msra.mxu0 %v4161
        %4298 = vmatprep.subr.bf16.mxu0 %v4160
        %4299 = vmatpush2.bf16.msra.mxu0 %v4159
        %4300 = vmatprep.subr.bf16.mxu0 %v4158
        %4301 = vmatpush2.bf16.msra.mxu0 %v4157
        %4302 = vmatprep.subr.bf16.mxu0 %v4156
        %4303 = vmatpush2.bf16.msra.mxu0 %v4155
        %4304 = vmatprep.subr.bf16.mxu0 %v4154
        %4305 = vmatpush2.bf16.msra.mxu0 %v4153
        %4306 = vmatprep.mubr.bf16.mxu0 %v3848
        %4307 = vmatmul.mubr.bf16.gmra.mxu0 %v3847
        %v4308 = vpop.f32.mrf.mxu0
        %v4309 = vadd.f32 %v4268, %v4308
        %v4310 = vpop.f32.mrf.mxu0
        %v4311 = vadd.f32 %v4270, %v4310
        %v4312 = vpop.f32.mrf.mxu0
        %v4313 = vpop.f32.mrf.mxu0
        %4314 = vdwg.mxu0
        // Predicated region
        $region109: #{_hybrid_forward.1} parent=71 // pred_check
          %p4315 = pneg %p590
        $region110: #{_hybrid_forward.1} parent=71 // pred_check_branch
          %4317 = sbr.rel (%p4315) target = $region112
        $region111: #{_hybrid_forward.1} parent=71 // pred_region
          %4318 = vst [vmem:[#allocation3] sm:$0xff] %v4309
          %4319 = vst [vmem:[#allocation3 + $0x8] sm:$0xff] %v4311
        $region112: #{_hybrid_forward.1} parent=71 // pred_fallthru
          _
        %p4320 = scmp.gt.s32.totalorder %s35, 0
        // Predicated region
        $region113: #{_hybrid_forward.1} parent=71 // pred_check
          %p4321 = pneg %p4320
        $region114: #{_hybrid_forward.1} parent=71 // pred_check_branch
          %4323 = sbr.rel (%p4321) target = $region116
        $region115: #{_hybrid_forward.1} parent=71 // pred_region
          %v4324 = vld [vmem:[#allocation3] sm:$0xff]
          %v4325 = vld [vmem:[#allocation3 + $0x8] sm:$0xff]
          %v4326 = vadd.f32 %v4324, %v4309
          %v4327 = vadd.f32 %v4325, %v4311
          %4328 = vst [vmem:[#allocation3] sm:$0xff] %v4326
          %4329 = vst [vmem:[#allocation3 + $0x8] sm:$0xff] %v4327
        $region116: #{_hybrid_forward.1} parent=71 // pred_fallthru
          _
        %p4330 = scmp.eq.s32.totalorder %s35, 1
        // Predicated region
        $region117: #{_hybrid_forward.1} parent=71 // pred_check
          %p4331 = pneg %p4330
        $region118: #{_hybrid_forward.1} parent=71 // pred_check_branch
          %4333 = sbr.rel (%p4331) target = $region120
        $region119: #{_hybrid_forward.1} parent=71 // pred_region
          %v4334 = vld [vmem:[#allocation3] sm:$0xff]
          %v4335 = vld [vmem:[#allocation3 + $0x8] sm:$0xff]
          %v4336 = vld [vmem:[#allocation12] sm:$0x3]
          %v4338 = vlaneseq
          %v4339 = vshrl.u32 %v4338, 7
          %v4340 = vsub.s32 0, %v4339
          %v4341 = vrot.slane %v4336, %v4340
          %v4342 = vlaneseq
          %v4343 = vshrl.u32 %v4342, 7
          %v4344 = vsub.s32 1, %v4343
          %v4345 = vrot.slane %v4336, %v4344
          %v4348 = vadd.f32 %v4334, %v4341
          %v4349 = vadd.f32 %v4335, %v4345
          %v4350 = vmax.f32 %v4348, 0.0
          %v4351 = vmax.f32 %v4349, 0.0
          %v4352 = vrot.slane %v4350, 4
          %v4353 = vadd.f32 %v4350, %v4352
          %v4354 = vrot.slane %v4353, 2
          %v4355 = vadd.f32 %v4353, %v4354
          %v4356 = vrot.slane %v4355, 1
          %v4357 = vadd.f32 %v4355, %v4356
          %v4358 = vrot.slane %v4351, 4
          %v4359 = vadd.f32 %v4351, %v4358
          %v4360 = vrot.slane %v4359, 2
          %v4361 = vadd.f32 %v4359, %v4360
          %v4362 = vrot.slane %v4361, 1
          %v4363 = vadd.f32 %v4361, %v4362
          %v4364 = vmul.f32 %v4357, %v3780
          %v4365 = vmul.f32 %v4363, %v3780
          %v4366 = vmul.f32 %v4350, %v4350
          %v4367 = vmul.f32 %v4351, %v4351
          %v4368 = vrot.slane %v4366, 4
          %v4369 = vadd.f32 %v4366, %v4368
          %v4370 = vrot.slane %v4369, 2
          %v4371 = vadd.f32 %v4369, %v4370
          %v4372 = vrot.slane %v4371, 1
          %v4373 = vadd.f32 %v4371, %v4372
          %v4374 = vrot.slane %v4367, 4
          %v4375 = vadd.f32 %v4367, %v4374
          %v4376 = vrot.slane %v4375, 2
          %v4377 = vadd.f32 %v4375, %v4376
          %v4378 = vrot.slane %v4377, 1
          %v4379 = vadd.f32 %v4377, %v4378
          %v4380 = vmul.f32 %v4373, %v3780
          %v4381 = vmul.f32 %v4379, %v3780
          %v4382 = vmul.f32 %v4364, %v4364
          %v4383 = vmul.f32 %v4365, %v4365
          %v4384 = vsub.f32 %v4380, %v4382
          %v4385 = vsub.f32 %v4381, %v4383
          %v4386 = vmax.f32 %v4384, 0.0
          %v4387 = vmax.f32 %v4385, 0.0
          %v4388 = vsub.f32 %v4350, %v4364
          %v4389 = vsub.f32 %v4351, %v4365
          %v4390 = vadd.f32 %v4386, 1e-05
          %v4391 = vadd.f32 %v4387, 1e-05
          %v4392 = vrsqrt.pop %v4390
          %v4393 = vrsqrt.pop %v4391
          %v4394 = vmul.f32 %v4388, %v4392
          %v4395 = vmul.f32 %v4389, %v4393
          %v4396 = vld [vmem:[%s5] sm:$0xff]
          %v4397 = vld [vmem:[%s5 + $0x8] sm:$0xff]
          %v4398 = vld [vmem:[%s5 + $0x10] sm:$0xff]
          %v4399 = vld [vmem:[%s5 + $0x18] sm:$0xff]
          %v4400 = vld [vmem:[%s5 + $0x20] sm:$0xff]
          %v4401 = vld [vmem:[%s5 + $0x28] sm:$0xff]
          %v4402 = vld [vmem:[%s5 + $0x30] sm:$0xff]
          %v4403 = vld [vmem:[%s5 + $0x38] sm:$0xff]
          %v4404 = vld [vmem:[%s5 + $0x40] sm:$0xff]
          %v4405 = vld [vmem:[%s5 + $0x48] sm:$0xff]
          %v4406 = vld [vmem:[%s5 + $0x50] sm:$0xff]
          %v4407 = vld [vmem:[%s5 + $0x58] sm:$0xff]
          %v4408 = vld [vmem:[%s5 + $0x60] sm:$0xff]
          %v4409 = vld [vmem:[%s5 + $0x68] sm:$0xff]
          %v4410 = vld [vmem:[%s5 + $0x70] sm:$0xff]
          %v4411 = vld [vmem:[%s5 + $0x78] sm:$0xff]
          %v4412 = vld [vmem:[%s5 + $0x80] sm:$0xff]
          %v4413 = vld [vmem:[%s5 + $0x88] sm:$0xff]
          %v4414 = vld [vmem:[%s5 + $0x90] sm:$0xff]
          %v4415 = vld [vmem:[%s5 + $0x98] sm:$0xff]
          %v4416 = vld [vmem:[%s5 + $0xa0] sm:$0xff]
          %v4417 = vld [vmem:[%s5 + $0xa8] sm:$0xff]
          %v4418 = vld [vmem:[%s5 + $0xb0] sm:$0xff]
          %v4419 = vld [vmem:[%s5 + $0xb8] sm:$0xff]
          %v4420 = vld [vmem:[%s5 + $0xc0] sm:$0xff]
          %v4421 = vld [vmem:[%s5 + $0xc8] sm:$0xff]
          %v4422 = vld [vmem:[%s5 + $0xd0] sm:$0xff]
          %v4423 = vld [vmem:[%s5 + $0xd8] sm:$0xff]
          %v4424 = vld [vmem:[%s5 + $0xe0] sm:$0xff]
          %v4425 = vld [vmem:[%s5 + $0xe8] sm:$0xff]
          %v4426 = vld [vmem:[%s5 + $0xf0] sm:$0xff]
          %v4427 = vld [vmem:[%s5 + $0xf8] sm:$0xff]
          %v4428 = vld [vmem:[#allocation13] sm:$0x1]
          %v4430 = vlaneseq
          %v4431 = vshrl.u32 %v4430, 7
          %v4432 = vsub.s32 0, %v4431
          %v4433 = vrot.slane %v4428, %v4432
          %4435 = vmatprep.subr.mxu0 0.0
          %4436 = vmatpush1.msra.mxu0 %v4411
          %4437 = vmatprep.subr.mxu0 0.0
          %4438 = vmatpush1.msra.mxu0 %v4410
          %4439 = vmatprep.subr.mxu0 0.0
          %4440 = vmatpush1.msra.mxu0 %v4409
          %4441 = vmatprep.subr.mxu0 0.0
          %4442 = vmatpush1.msra.mxu0 %v4408
          %4443 = vmatprep.subr.mxu0 0.0
          %4444 = vmatpush1.msra.mxu0 %v4407
          %4445 = vmatprep.subr.mxu0 0.0
          %4446 = vmatpush1.msra.mxu0 %v4406
          %4447 = vmatprep.subr.mxu0 0.0
          %4448 = vmatpush1.msra.mxu0 %v4405
          %4449 = vmatprep.subr.mxu0 0.0
          %4450 = vmatpush1.msra.mxu0 %v4404
          %4451 = vmatprep.subr.mxu0 0.0
          %4452 = vmatpush1.msra.mxu0 %v4403
          %4453 = vmatprep.subr.mxu0 0.0
          %4454 = vmatpush1.msra.mxu0 %v4402
          %4455 = vmatprep.subr.mxu0 0.0
          %4456 = vmatpush1.msra.mxu0 %v4401
          %4457 = vmatprep.subr.mxu0 0.0
          %4458 = vmatpush1.msra.mxu0 %v4400
          %4459 = vmatprep.subr.mxu0 0.0
          %4460 = vmatpush1.msra.mxu0 %v4399
          %4461 = vmatprep.subr.mxu0 0.0
          %4462 = vmatpush1.msra.mxu0 %v4398
          %4463 = vmatprep.subr.mxu0 0.0
          %4464 = vmatpush1.msra.mxu0 %v4397
          %4465 = vmatprep.subr.mxu0 0.0
          %4466 = vmatpush1.msra.mxu0 %v4396
          %4467 = vmatprep.subr.mxu0 0.0
          %4468 = vmatpush2.msra.mxu0 %v4427
          %4469 = vmatprep.subr.mxu0 0.0
          %4470 = vmatpush2.msra.mxu0 %v4426
          %4471 = vmatprep.subr.mxu0 0.0
          %4472 = vmatpush2.msra.mxu0 %v4425
          %4473 = vmatprep.subr.mxu0 0.0
          %4474 = vmatpush2.msra.mxu0 %v4424
          %4475 = vmatprep.subr.mxu0 0.0
          %4476 = vmatpush2.msra.mxu0 %v4423
          %4477 = vmatprep.subr.mxu0 0.0
          %4478 = vmatpush2.msra.mxu0 %v4422
          %4479 = vmatprep.subr.mxu0 0.0
          %4480 = vmatpush2.msra.mxu0 %v4421
          %4481 = vmatprep.subr.mxu0 0.0
          %4482 = vmatpush2.msra.mxu0 %v4420
          %4483 = vmatprep.subr.mxu0 0.0
          %4484 = vmatpush2.msra.mxu0 %v4419
          %4485 = vmatprep.subr.mxu0 0.0
          %4486 = vmatpush2.msra.mxu0 %v4418
          %4487 = vmatprep.subr.mxu0 0.0
          %4488 = vmatpush2.msra.mxu0 %v4417
          %4489 = vmatprep.subr.mxu0 0.0
          %4490 = vmatpush2.msra.mxu0 %v4416
          %4491 = vmatprep.subr.mxu0 0.0
          %4492 = vmatpush2.msra.mxu0 %v4415
          %4493 = vmatprep.subr.mxu0 0.0
          %4494 = vmatpush2.msra.mxu0 %v4414
          %4495 = vmatprep.subr.mxu0 0.0
          %4496 = vmatpush2.msra.mxu0 %v4413
          %4497 = vmatprep.subr.mxu0 0.0
          %4498 = vmatpush2.msra.mxu0 %v4412
          %4499 = vmatprep.mubr.f32.mxu0 %v4395
          %4500 = vmatmul.mubr.f32.gmra.mxu0 %v4394
          %v4501 = vpop.f32.mrf.mxu0
          %v4502 = vadd.f32 %v4433, %v4501
          %v4503 = vpop.f32.mrf.mxu0
          %4504 = vdwg.mxu0
          %v4505 = vmax.f32 %v4502, 0.0
          %vm4506 = vcmask 261120
          %v4507 = vsel %vm4506, %v4505, 0.0
          %v4508 = vrot.slane %v4507, 4
          %v4509 = vadd.f32 %v4507, %v4508
          %v4510 = vrot.slane %v4509, 2
          %v4511 = vadd.f32 %v4509, %v4510
          %v4512 = vrot.slane %v4511, 1
          %v4513 = vadd.f32 %v4511, %v4512
          %v4514 = vmul.f32 %v4513, %v3780
          %v4515 = vmul.f32 %v4505, %v4505
          %v4516 = vsel %vm4506, %v4515, 0.0
          %v4517 = vrot.slane %v4516, 4
          %v4518 = vadd.f32 %v4516, %v4517
          %v4519 = vrot.slane %v4518, 2
          %v4520 = vadd.f32 %v4518, %v4519
          %v4521 = vrot.slane %v4520, 1
          %v4522 = vadd.f32 %v4520, %v4521
          %v4523 = vmul.f32 %v4522, %v3780
          %v4524 = vmul.f32 %v4514, %v4514
          %v4525 = vsub.f32 %v4523, %v4524
          %v4526 = vmax.f32 %v4525, 0.0
          %v4527 = vsub.f32 %v4505, %v4514
          %v4528 = vadd.f32 %v4526, 1e-05
          %v4529 = vrsqrt.pop %v4528
          %v4530 = vmul.f32 %v4527, %v4529
          %v4531 = vld [vmem:[%s7] sm:$0xff]
          %v4532 = vld [vmem:[%s7 + $0x8] sm:$0xff]
          %v4533 = vld [vmem:[%s7 + $0x10] sm:$0xff]
          %v4534 = vld [vmem:[%s7 + $0x18] sm:$0xff]
          %v4535 = vld [vmem:[#allocation15] sm:$0x1]
          %v4537 = vlaneseq
          %v4538 = vshrl.u32 %v4537, 7
          %v4539 = vsub.s32 0, %v4538
          %v4540 = vrot.slane %v4535, %v4539
          %v4543 = vsel %vm4506, %v4530, 0
          %4545 = vmatprep.subr.mxu0 0.0
          %4546 = vmatpush1.msra.mxu0 0.0
          %4547 = vmatprep.subr.mxu0 0.0
          %4548 = vmatpush1.msra.mxu0 0.0
          %4549 = vmatprep.subr.mxu0 0.0
          %4550 = vmatpush1.msra.mxu0 0.0
          %4551 = vmatprep.subr.mxu0 0.0
          %4552 = vmatpush1.msra.mxu0 0.0
          %4553 = vmatprep.subr.mxu0 0.0
          %4554 = vmatpush1.msra.mxu0 0.0
          %4555 = vmatprep.subr.mxu0 0.0
          %4556 = vmatpush1.msra.mxu0 0.0
          %4557 = vmatprep.subr.mxu0 0.0
          %4558 = vmatpush1.msra.mxu0 0.0
          %4559 = vmatprep.subr.mxu0 0.0
          %4560 = vmatpush1.msra.mxu0 0.0
          %4561 = vmatprep.subr.mxu0 0.0
          %4562 = vmatpush1.msra.mxu0 0.0
          %4563 = vmatprep.subr.mxu0 0.0
          %4564 = vmatpush1.msra.mxu0 0.0
          %4565 = vmatprep.subr.mxu0 0.0
          %4566 = vmatpush1.msra.mxu0 0.0
          %4567 = vmatprep.subr.mxu0 0.0
          %4568 = vmatpush1.msra.mxu0 0.0
          %4569 = vmatprep.subr.mxu0 0.0
          %4570 = vmatpush1.msra.mxu0 %v4534
          %4571 = vmatprep.subr.mxu0 0.0
          %4572 = vmatpush1.msra.mxu0 %v4533
          %4573 = vmatprep.subr.mxu0 0.0
          %4574 = vmatpush1.msra.mxu0 %v4532
          %4575 = vmatprep.subr.mxu0 0.0
          %4576 = vmatpush1.msra.mxu0 %v4531
          %4577 = vmatprep.subr.mxu0 0.0
          %4578 = vmatpush2.msra.mxu0 0.0
          %4579 = vmatprep.subr.mxu0 0.0
          %4580 = vmatpush2.msra.mxu0 0.0
          %4581 = vmatprep.subr.mxu0 0.0
          %4582 = vmatpush2.msra.mxu0 0.0
          %4583 = vmatprep.subr.mxu0 0.0
          %4584 = vmatpush2.msra.mxu0 0.0
          %4585 = vmatprep.subr.mxu0 0.0
          %4586 = vmatpush2.msra.mxu0 0.0
          %4587 = vmatprep.subr.mxu0 0.0
          %4588 = vmatpush2.msra.mxu0 0.0
          %4589 = vmatprep.subr.mxu0 0.0
          %4590 = vmatpush2.msra.mxu0 0.0
          %4591 = vmatprep.subr.mxu0 0.0
          %4592 = vmatpush2.msra.mxu0 0.0
          %4593 = vmatprep.subr.mxu0 0.0
          %4594 = vmatpush2.msra.mxu0 0.0
          %4595 = vmatprep.subr.mxu0 0.0
          %4596 = vmatpush2.msra.mxu0 0.0
          %4597 = vmatprep.subr.mxu0 0.0
          %4598 = vmatpush2.msra.mxu0 0.0
          %4599 = vmatprep.subr.mxu0 0.0
          %4600 = vmatpush2.msra.mxu0 0.0
          %4601 = vmatprep.subr.mxu0 0.0
          %4602 = vmatpush2.msra.mxu0 0.0
          %4603 = vmatprep.subr.mxu0 0.0
          %4604 = vmatpush2.msra.mxu0 0.0
          %4605 = vmatprep.subr.mxu0 0.0
          %4606 = vmatpush2.msra.mxu0 0.0
          %4607 = vmatprep.subr.mxu0 0.0
          %4608 = vmatpush2.msra.mxu0 0.0
          %4609 = vmatprep.mubr.f32.mxu0 0.0
          %4610 = vmatmul.mubr.f32.gmra.mxu0 %v4543
          %v4611 = vpop.f32.mrf.mxu0
          %v4612 = vadd.f32 %v4540, %v4611
          %v4613 = vpop.f32.mrf.mxu0
          %4614 = vdwg.mxu0
          %v4615 = vmax.f32 %v4612, 0.0
          %vm4616 = vcmask 130048
          %v4617 = vsel %vm4616, %v4615, 0.0
          %v4618 = vrot.slane %v4617, 4
          %v4619 = vadd.f32 %v4617, %v4618
          %v4620 = vrot.slane %v4619, 2
          %v4621 = vadd.f32 %v4619, %v4620
          %v4622 = vrot.slane %v4621, 1
          %v4623 = vadd.f32 %v4621, %v4622
          %v4624 = vmul.f32 %v4623, %v3780
          %v4625 = vmul.f32 %v4615, %v4615
          %v4626 = vsel %vm4616, %v4625, 0.0
          %v4627 = vrot.slane %v4626, 4
          %v4628 = vadd.f32 %v4626, %v4627
          %v4629 = vrot.slane %v4628, 2
          %v4630 = vadd.f32 %v4628, %v4629
          %v4631 = vrot.slane %v4630, 1
          %v4632 = vadd.f32 %v4630, %v4631
          %v4633 = vmul.f32 %v4632, %v3780
          %v4634 = vmul.f32 %v4624, %v4624
          %v4635 = vsub.f32 %v4633, %v4634
          %v4636 = vmax.f32 %v4635, 0.0
          %v4637 = vsub.f32 %v4615, %v4624
          %v4638 = vadd.f32 %v4636, 1e-05
          %v4639 = vrsqrt.pop %v4638
          %v4640 = vmul.f32 %v4637, %v4639
          %v4641 = vld [vmem:[%s9] sm:$0xff]
          %v4642 = vld [vmem:[%s9 + $0x8] sm:$0xff]
          %v4643 = vld [vmem:[#allocation16] sm:$0x1]
          %v4645 = vlaneseq
          %v4646 = vshrl.u32 %v4645, 7
          %v4647 = vsub.s32 0, %v4646
          %v4648 = vrot.slane %v4643, %v4647
          %v4651 = vsel %vm4616, %v4640, 0
          %4653 = vmatprep.subr.mxu0 0.0
          %4654 = vmatpush1.msra.mxu0 0.0
          %4655 = vmatprep.subr.mxu0 0.0
          %4656 = vmatpush1.msra.mxu0 0.0
          %4657 = vmatprep.subr.mxu0 0.0
          %4658 = vmatpush1.msra.mxu0 0.0
          %4659 = vmatprep.subr.mxu0 0.0
          %4660 = vmatpush1.msra.mxu0 0.0
          %4661 = vmatprep.subr.mxu0 0.0
          %4662 = vmatpush1.msra.mxu0 0.0
          %4663 = vmatprep.subr.mxu0 0.0
          %4664 = vmatpush1.msra.mxu0 0.0
          %4665 = vmatprep.subr.mxu0 0.0
          %4666 = vmatpush1.msra.mxu0 0.0
          %4667 = vmatprep.subr.mxu0 0.0
          %4668 = vmatpush1.msra.mxu0 0.0
          %4669 = vmatprep.subr.mxu0 0.0
          %4670 = vmatpush1.msra.mxu0 0.0
          %4671 = vmatprep.subr.mxu0 0.0
          %4672 = vmatpush1.msra.mxu0 0.0
          %4673 = vmatprep.subr.mxu0 0.0
          %4674 = vmatpush1.msra.mxu0 0.0
          %4675 = vmatprep.subr.mxu0 0.0
          %4676 = vmatpush1.msra.mxu0 0.0
          %4677 = vmatprep.subr.mxu0 0.0
          %4678 = vmatpush1.msra.mxu0 0.0
          %4679 = vmatprep.subr.mxu0 0.0
          %4680 = vmatpush1.msra.mxu0 0.0
          %4681 = vmatprep.subr.mxu0 0.0
          %4682 = vmatpush1.msra.mxu0 %v4642
          %4683 = vmatprep.subr.mxu0 0.0
          %4684 = vmatpush1.msra.mxu0 %v4641
          %4685 = vmatprep.subr.mxu0 0.0
          %4686 = vmatpush2.msra.mxu0 0.0
          %4687 = vmatprep.subr.mxu0 0.0
          %4688 = vmatpush2.msra.mxu0 0.0
          %4689 = vmatprep.subr.mxu0 0.0
          %4690 = vmatpush2.msra.mxu0 0.0
          %4691 = vmatprep.subr.mxu0 0.0
          %4692 = vmatpush2.msra.mxu0 0.0
          %4693 = vmatprep.subr.mxu0 0.0
          %4694 = vmatpush2.msra.mxu0 0.0
          %4695 = vmatprep.subr.mxu0 0.0
          %4696 = vmatpush2.msra.mxu0 0.0
          %4697 = vmatprep.subr.mxu0 0.0
          %4698 = vmatpush2.msra.mxu0 0.0
          %4699 = vmatprep.subr.mxu0 0.0
          %4700 = vmatpush2.msra.mxu0 0.0
          %4701 = vmatprep.subr.mxu0 0.0
          %4702 = vmatpush2.msra.mxu0 0.0
          %4703 = vmatprep.subr.mxu0 0.0
          %4704 = vmatpush2.msra.mxu0 0.0
          %4705 = vmatprep.subr.mxu0 0.0
          %4706 = vmatpush2.msra.mxu0 0.0
          %4707 = vmatprep.subr.mxu0 0.0
          %4708 = vmatpush2.msra.mxu0 0.0
          %4709 = vmatprep.subr.mxu0 0.0
          %4710 = vmatpush2.msra.mxu0 0.0
          %4711 = vmatprep.subr.mxu0 0.0
          %4712 = vmatpush2.msra.mxu0 0.0
          %4713 = vmatprep.subr.mxu0 0.0
          %4714 = vmatpush2.msra.mxu0 0.0
          %4715 = vmatprep.subr.mxu0 0.0
          %4716 = vmatpush2.msra.mxu0 0.0
          %4717 = vmatprep.mubr.f32.mxu0 0.0
          %4718 = vmatmul.mubr.f32.gmra.mxu0 %v4651
          %v4719 = vpop.f32.mrf.mxu0
          %v4720 = vadd.f32 %v4648, %v4719
          %v4721 = vpop.f32.mrf.mxu0
          %4722 = vdwg.mxu0
          %v4723 = vmax.f32 %v4720, 0.0
          %vm4724 = vcmask 31744
          %v4725 = vsel %vm4724, %v4723, 0.0
          %v4726 = vrot.slane %v4725, 4
          %v4727 = vadd.f32 %v4725, %v4726
          %v4728 = vrot.slane %v4727, 2
          %v4729 = vadd.f32 %v4727, %v4728
          %v4730 = vrot.slane %v4729, 1
          %v4731 = vadd.f32 %v4729, %v4730
          %v4732 = vmul.f32 %v4731, %v3780
          %v4733 = vmul.f32 %v4723, %v4723
          %v4734 = vsel %vm4724, %v4733, 0.0
          %v4735 = vrot.slane %v4734, 4
          %v4736 = vadd.f32 %v4734, %v4735
          %v4737 = vrot.slane %v4736, 2
          %v4738 = vadd.f32 %v4736, %v4737
          %v4739 = vrot.slane %v4738, 1
          %v4740 = vadd.f32 %v4738, %v4739
          %v4741 = vmul.f32 %v4740, %v3780
          %v4742 = vmul.f32 %v4732, %v4732
          %v4743 = vsub.f32 %v4741, %v4742
          %v4744 = vmax.f32 %v4743, 0.0
          %v4745 = vsub.f32 %v4723, %v4732
          %v4746 = vadd.f32 %v4744, 1e-05
          %v4747 = vrsqrt.pop %v4746
          %v4748 = vmul.f32 %v4745, %v4747
          %v4749 = vld [vmem:[%s11] sm:$0xf]
          %v4750 = vld [vmem:[#allocation4] sm:$0x1]
          %v4752 = vlaneseq
          %v4753 = vshrl.u32 %v4752, 7
          %v4754 = vsub.s32 0, %v4753
          %v4755 = vrot.slane %v4750, %v4754
          %v4758 = vsel %vm4724, %v4748, 0
          %vm4760 = vcmask 1043456
          %v4762 = vsel %vm4760, %v4749, 0
          %4764 = vmatprep.subr.mxu0 0.0
          %4765 = vmatpush1.msra.mxu0 0.0
          %4766 = vmatprep.subr.mxu0 0.0
          %4767 = vmatpush1.msra.mxu0 0.0
          %4768 = vmatprep.subr.mxu0 0.0
          %4769 = vmatpush1.msra.mxu0 0.0
          %4770 = vmatprep.subr.mxu0 0.0
          %4771 = vmatpush1.msra.mxu0 0.0
          %4772 = vmatprep.subr.mxu0 0.0
          %4773 = vmatpush1.msra.mxu0 0.0
          %4774 = vmatprep.subr.mxu0 0.0
          %4775 = vmatpush1.msra.mxu0 0.0
          %4776 = vmatprep.subr.mxu0 0.0
          %4777 = vmatpush1.msra.mxu0 0.0
          %4778 = vmatprep.subr.mxu0 0.0
          %4779 = vmatpush1.msra.mxu0 0.0
          %4780 = vmatprep.subr.mxu0 0.0
          %4781 = vmatpush1.msra.mxu0 0.0
          %4782 = vmatprep.subr.mxu0 0.0
          %4783 = vmatpush1.msra.mxu0 0.0
          %4784 = vmatprep.subr.mxu0 0.0
          %4785 = vmatpush1.msra.mxu0 0.0
          %4786 = vmatprep.subr.mxu0 0.0
          %4787 = vmatpush1.msra.mxu0 0.0
          %4788 = vmatprep.subr.mxu0 0.0
          %4789 = vmatpush1.msra.mxu0 0.0
          %4790 = vmatprep.subr.mxu0 0.0
          %4791 = vmatpush1.msra.mxu0 0.0
          %4792 = vmatprep.subr.mxu0 0.0
          %4793 = vmatpush1.msra.mxu0 0.0
          %4794 = vmatprep.subr.mxu0 0.0
          %4795 = vmatpush1.msra.mxu0 %v4762
          %4796 = vmatprep.subr.mxu0 0.0
          %4797 = vmatpush2.msra.mxu0 0.0
          %4798 = vmatprep.subr.mxu0 0.0
          %4799 = vmatpush2.msra.mxu0 0.0
          %4800 = vmatprep.subr.mxu0 0.0
          %4801 = vmatpush2.msra.mxu0 0.0
          %4802 = vmatprep.subr.mxu0 0.0
          %4803 = vmatpush2.msra.mxu0 0.0
          %4804 = vmatprep.subr.mxu0 0.0
          %4805 = vmatpush2.msra.mxu0 0.0
          %4806 = vmatprep.subr.mxu0 0.0
          %4807 = vmatpush2.msra.mxu0 0.0
          %4808 = vmatprep.subr.mxu0 0.0
          %4809 = vmatpush2.msra.mxu0 0.0
          %4810 = vmatprep.subr.mxu0 0.0
          %4811 = vmatpush2.msra.mxu0 0.0
          %4812 = vmatprep.subr.mxu0 0.0
          %4813 = vmatpush2.msra.mxu0 0.0
          %4814 = vmatprep.subr.mxu0 0.0
          %4815 = vmatpush2.msra.mxu0 0.0
          %4816 = vmatprep.subr.mxu0 0.0
          %4817 = vmatpush2.msra.mxu0 0.0
          %4818 = vmatprep.subr.mxu0 0.0
          %4819 = vmatpush2.msra.mxu0 0.0
          %4820 = vmatprep.subr.mxu0 0.0
          %4821 = vmatpush2.msra.mxu0 0.0
          %4822 = vmatprep.subr.mxu0 0.0
          %4823 = vmatpush2.msra.mxu0 0.0
          %4824 = vmatprep.subr.mxu0 0.0
          %4825 = vmatpush2.msra.mxu0 0.0
          %4826 = vmatprep.subr.mxu0 0.0
          %4827 = vmatpush2.msra.mxu0 0.0
          %4828 = vmatprep.mubr.f32.mxu0 0.0
          %4829 = vmatmul.mubr.f32.gmra.mxu0 %v4758
          %v4830 = vpop.f32.mrf.mxu0
          %v4831 = vadd.f32 %v4755, %v4830
          %v4832 = vpop.f32.mrf.mxu0
          %4833 = vdwg.mxu0
          %v4834 = vmax.f32 %v4831, 0.0
          %vm4835 = vcmask 7168
          %v4836 = vsel %vm4835, %v4834, 0.0
          %v4837 = vrot.slane %v4836, 4
          %v4838 = vadd.f32 %v4836, %v4837
          %v4839 = vrot.slane %v4838, 2
          %v4840 = vadd.f32 %v4838, %v4839
          %v4841 = vrot.slane %v4840, 1
          %v4842 = vadd.f32 %v4840, %v4841
          %v4843 = vmul.f32 %v4842, %v3780
          %v4844 = vmul.f32 %v4834, %v4834
          %v4845 = vsel %vm4835, %v4844, 0.0
          %v4846 = vrot.slane %v4845, 4
          %v4847 = vadd.f32 %v4845, %v4846
          %v4848 = vrot.slane %v4847, 2
          %v4849 = vadd.f32 %v4847, %v4848
          %v4850 = vrot.slane %v4849, 1
          %v4851 = vadd.f32 %v4849, %v4850
          %v4852 = vmul.f32 %v4851, %v3780
          %v4853 = vmul.f32 %v4843, %v4843
          %v4854 = vsub.f32 %v4852, %v4853
          %v4855 = vmax.f32 %v4854, 0.0
          %v4856 = vsub.f32 %v4834, %v4843
          %v4857 = vadd.f32 %v4855, 1e-05
          %v4858 = vrsqrt.pop %v4857
          %v4859 = vmul.f32 %v4856, %v4858
          %4860 = vst.msk [vmem:[%s13] sm:$0xff] %vm4835, %v4859
        $region120: #{_hybrid_forward.1} parent=71 // pred_fallthru
          _
        // Predicated region
        $region121: #{_hybrid_forward.1} parent=71 // pred_check
          %p4861 = pneg %p336
        $region122: #{_hybrid_forward.1} parent=71 // pred_check_branch
          %4863 = sbr.rel (%p4861) target = $region124
        $region123: #{_hybrid_forward.1} parent=71 // pred_region
          _
        $region124: #{_hybrid_forward.1} parent=71 // pred_fallthru
          _
        // Predicated region
        $region125: #{_hybrid_forward.1} parent=71 // pred_check
          %p4864 = pneg %p336
        $region126: #{_hybrid_forward.1} parent=71 // pred_check_branch
          %4866 = sbr.rel (%p4864) target = $region128
        $region127: #{_hybrid_forward.1} parent=71 // pred_region
          _
        $region128: #{_hybrid_forward.1} parent=71 // pred_fallthru
          _
      $region72: #{_hybrid_forward.1} parent=5 // pred_fallthru
        _
      %p4867 = scmp.le.s32.totalorder 2, %s30
      // Predicated region
      $region129: #{_hybrid_forward.1} parent=5 // pred_check
        %p4868 = pneg %p4867
      $region130: #{_hybrid_forward.1} parent=5 // pred_check_branch
        %4870 = sbr.rel (%p4868) target = $region132
      $region131: #{_hybrid_forward.1} parent=5 // pred_region
        %s4871 = ssub.s32 %s30, 2
      $region132: #{_hybrid_forward.1} parent=5 // pred_fallthru
        _
    $region6: #{_hybrid_forward.1} parent=1 // loop_footer
      %s34 = sadd.s32 1, %s30
    $region7: #{_hybrid_forward.1} parent=1 // loop_footer_branch
      %29 = sbr.rel target = $region3
    $region8: #{_hybrid_forward.1} parent=1 // loop_exit
      _
    %4872 = vsyncpa [#allocation6], 1
    %s4873 = scalar_lea.sflag [#allocation6], 1
    %4874 = vsyncpa %s4873, 1
    %4875 = vsyncpa [#allocation8], 1
    %s4876 = scalar_lea.sflag [#allocation8], 1
    %4877 = vsyncpa %s4876, 1
    %4878 = vsyncpa [#allocation11], 1
    %s4879 = scalar_lea.sflag [#allocation11], 1
    %4880 = vsyncpa %s4879, 1
    %4881 = vsyncpa [#allocation14], 1
    %4882 = vsyncpa [#allocation17], 1

</llo_original>
